<compile_context>
chip_gen: v5e
topology: v5e:2x2
jax: 0.10.0
libtpu: 0.0.40
codegen_flags: <defaults>
</compile_context>

<pallas_src>
import jax
import jax.numpy as jnp
import numpy as np
from jax.experimental import pallas as pl
from jax.experimental.pallas import tpu as pltpu

DIM_X = 32                       # model_config['graph_embedding_dim']
N_BLOCKS = 4
HIDDEN = 512
SPLIT1 = DIM_X - DIM_X // 2      # passive half (subnet input)
SPLIT2 = DIM_X // 2              # actively transformed half
CLAMP = 2.0                      # affine_clamping default in AllInOneBlock
TB_DEFAULT = 2048                # batch tile (sweepable 1024-4096)
TB_MAX = 4096


def _round_up(n, m):
    return ((n + m - 1) // m) * m


def _cdiv(a, b):
    return -(-a // b)


def _nvp_kernel(x_ref, w1_ref, b1_ref, w2_ref, b2_ref, wp_ref, pb_ref,
                out_ref, jac_ref):
    x = x_ref[...].astype(jnp.float32)
    logdet = jnp.zeros((x.shape[0], 1), jnp.float32)
    for k in range(N_BLOCKS):                      # unrolled: 4 blocks
        w1k = w1_ref[k]
        w2k = w2_ref[k]                            # subnet 0.1 already folded in
        wpk = wp_ref[k]                            # global-affine scale folded in
        cdt = w1k.dtype                            # compute dtype (bf16 or f32)

        x1 = x[:, :SPLIT1]
        x2 = x[:, SPLIT1:]
        # subnet_fc: Linear(16, 512) -> ReLU -> Linear(512, 32) (x0.1 folded)
        h = jnp.dot(x1.astype(cdt), w1k,
                    preferred_element_type=jnp.float32) + b1_ref[k]
        h = jnp.maximum(h, 0.0)
        a = jnp.dot(h.astype(cdt), w2k,
                    preferred_element_type=jnp.float32) + b2_ref[k]
        # affine coupling
        sub_jac = CLAMP * jnp.tanh(a[:, :SPLIT2])
        x2 = x2 * jnp.exp(sub_jac) + a[:, SPLIT2:]
        logdet = logdet + jnp.sum(sub_jac, axis=1, keepdims=True)
        # single fused K=32 permutation matmul with the global affine folded in:
        #   (cat(x1,x2) * scale + go) @ wpT == cat(x1,x2) @ wp_scaled + perm_bias
        # The concat is a cheap lane-select (VPU/XLU), off the MXU slot.
        x_cat = jnp.concatenate([x1, x2], axis=1).astype(cdt)
        x = jnp.dot(x_cat, wpk, preferred_element_type=jnp.float32) + pb_ref[k]
        # batch-independent sum(log(scale)) logdet term is added in the wrapper
    out_ref[...] = x
    jac_ref[...] = logdet


def _preprocess(params, use_bf16):
    """Fold the SOFTPLUS global affine into the permutation weights and the
    subnet 0.1 output scale into w2/b2."""
    w1, b1, w2, b2, gs, go, wpT = params
    scale = 0.2 * jnp.log1p(jnp.exp(0.5 * gs))              # (N, 1, C)
    wpT_scaled = scale.transpose(0, 2, 1) * wpT             # diag(scale) @ wpT
    perm_bias = jnp.einsum('nij,njk->nik', go, wpT)         # (N, 1, C)
    log_scale_const = jnp.sum(jnp.log(scale))               # scalar, all blocks
    cdt = jnp.bfloat16 if use_bf16 else jnp.float32
    prep = (w1.astype(cdt), b1,
            (0.1 * w2).astype(cdt), 0.1 * b2,
            wpT_scaled.astype(cdt), perm_bias)
    return prep, log_scale_const


def _pick_tile(B, tb_req):
    tb_req = max(8, min(tb_req, TB_MAX))
    b8 = _round_up(B, 8)
    tb = min(tb_req, b8)
    # v7x: keep the grid at >= 2 steps so the "parallel" batch axis actually
    # shards across both TensorCores (neutral on single-TC v5e/v6e).
    if b8 > 8 and _cdiv(b8, tb) < 2:
        tb = _round_up(_cdiv(b8, 2), 8)
    bp = _round_up(b8, tb)
    return tb, bp


def nvp_forward(x, params, *, use_bf16=True, tb=TB_DEFAULT):
    """Returns (z, log_jac_det) exactly like NVP.forward(x) / SequenceINN."""
    B, C = x.shape
    assert C == DIM_X
    prep, log_scale_const = _preprocess(params, use_bf16)

    tb, Bp = _pick_tile(B, tb)
    if Bp != B:
        x = jnp.pad(x, ((0, Bp - B), (0, 0)))

    def full(a):
        n = a.ndim
        return pl.BlockSpec(a.shape, lambda i, _n=n: (0,) * _n)

    weight_bytes = sum(int(np.prod(a.shape)) * a.dtype.itemsize for a in prep)
    cost = pl.CostEstimate(
        flops=2 * Bp * N_BLOCKS * (SPLIT1 * HIDDEN + HIDDEN * 2 * SPLIT2
                                   + DIM_X * DIM_X),
        transcendentals=Bp * N_BLOCKS * 2 * SPLIT2,          # tanh + exp
        bytes_accessed=Bp * DIM_X * 4 * 2 + Bp * 4 + weight_bytes)

    out, jac = pl.pallas_call(
        _nvp_kernel,
        out_shape=(jax.ShapeDtypeStruct((Bp, C), jnp.float32),
                   jax.ShapeDtypeStruct((Bp, 1), jnp.float32)),
        grid_spec=pltpu.PrefetchScalarGridSpec(
            num_scalar_prefetch=0,
            grid=(Bp // tb,),
            in_specs=[pl.BlockSpec((tb, C), lambda i: (i, 0))]
                     + [full(a) for a in prep],
            out_specs=[
                pl.BlockSpec((tb, C), lambda i: (i, 0)),
                pl.BlockSpec((tb, 1), lambda i: (i, 0)),
            ],
        ),
        compiler_params=pltpu.CompilerParams(
            dimension_semantics=("parallel",),
            vmem_limit_bytes=48 * 1024 * 1024),
        cost_estimate=cost,
    )(x, *prep)
    z = out[:B]
    logdet = jac[:B, 0] + log_scale_const
    return z, logdet


def nvp_forward_ref(x, params):
    """Pure-JAX f32 reference (matches the PyTorch module's forward)."""
    w1, b1, w2, b2, gs, go, wpT = params
    logdet = jnp.zeros((x.shape[0],), jnp.float32)
    for k in range(N_BLOCKS):
        x1, x2 = x[:, :SPLIT1], x[:, SPLIT1:]
        h = jnp.maximum(x1 @ w1[k] + b1[k], 0.0)
        a = (h @ w2[k] + b2[k]) * 0.1
        sj = CLAMP * jnp.tanh(a[:, :SPLIT2])
        x2 = x2 * jnp.exp(sj) + a[:, SPLIT2:]
        logdet = logdet + jnp.sum(sj, axis=1)
        xc = jnp.concatenate([x1, x2], axis=1)
        scale = 0.2 * jnp.log1p(jnp.exp(0.5 * gs[k]))
        x = (xc * scale + go[k]) @ wpT[k]
        logdet = logdet + jnp.sum(jnp.log(scale))
    return x, logdet


def _special_ortho(key, n):
    """Deterministic random rotation (det = +1), like scipy special_ortho_group."""
    a = jax.random.normal(key, (n, n), dtype=jnp.float32)
    q, r = jnp.linalg.qr(a)
    q = q * jnp.sign(jnp.diag(r))[None, :]
    q = q.at[:, 0].multiply(jnp.sign(jnp.linalg.det(q)))
    return q


def init_params(key):
    """Deterministic synthetic parameters with the module's shapes."""
    w1s, b1s, w2s, b2s, gss, gos, wps = [], [], [], [], [], [], []
    # SOFTPLUS global-affine init with global_affine_init=1.0
    gs_init = 2.0 * np.log(np.exp(0.5 * 10.0 * 1.0) - 1.0)
    for _ in range(N_BLOCKS):
        k0, k1, k2, k3, k4, key = jax.random.split(key, 6)
        w1s.append(jax.random.normal(k0, (SPLIT1, HIDDEN), jnp.float32)
                   / np.sqrt(SPLIT1))
        b1s.append(0.01 * jax.random.normal(k1, (1, HIDDEN), jnp.float32))
        w2s.append(jax.random.normal(k2, (HIDDEN, 2 * SPLIT2), jnp.float32)
                   / np.sqrt(HIDDEN))
        b2s.append(0.01 * jax.random.normal(k3, (1, 2 * SPLIT2), jnp.float32))
        gss.append(jnp.full((1, DIM_X), gs_init, jnp.float32))
        gos.append(jnp.zeros((1, DIM_X), jnp.float32))
        wps.append(_special_ortho(k4, DIM_X).T)   # pre-transposed for x @ w.T
    stack = lambda xs: jnp.stack(xs, axis=0)
    return (stack(w1s), stack(b1s), stack(w2s), stack(b2s),
            stack(gss), stack(gos), stack(wps))


if __name__ == "__main__":
    key = jax.random.PRNGKey(0)
    pkey, xkey = jax.random.split(key)
    params = init_params(pkey)

    B = 256
    x = jax.random.normal(xkey, (B, DIM_X), jnp.float32)

    z_ref, logdet_ref = nvp_forward_ref(x, params)

    # f32 path: tight correctness check
    z32, ld32 = nvp_forward(x, params, use_bf16=False)
    jax.block_until_ready(z32)
    jax.block_until_ready(ld32)
    np.testing.assert_allclose(np.asarray(z32), np.asarray(z_ref),
                               rtol=1e-4, atol=1e-4)
    np.testing.assert_allclose(np.asarray(ld32), np.asarray(logdet_ref),
                               rtol=1e-4, atol=1e-4)

    # bf16-operand path (default, fastest on v6e/v7x): loose tolerance
    zbf, ldbf = nvp_forward(x, params, use_bf16=True)
    jax.block_until_ready(zbf)
    jax.block_until_ready(ldbf)
    np.testing.assert_allclose(np.asarray(zbf), np.asarray(z_ref),
                               rtol=5e-2, atol=1e-1)
    np.testing.assert_allclose(np.asarray(ldbf), np.asarray(logdet_ref),
                               rtol=5e-2, atol=1e-1)

    print("KERNEL_OK")
</pallas_src>

<mosaic_0001>
module attributes {stable_mosaic.version = 11 : i64} {
  func.func @_nvp_kernel(%arg0: i32, %arg1: memref<128x32xf32, #tpu.memory_space<vmem>>, %arg2: memref<4x16x512xf32, #tpu.memory_space<vmem>>, %arg3: memref<4x1x512xf32, #tpu.memory_space<vmem>>, %arg4: memref<4x512x32xf32, #tpu.memory_space<vmem>>, %arg5: memref<4x1x32xf32, #tpu.memory_space<vmem>>, %arg6: memref<4x32x32xf32, #tpu.memory_space<vmem>>, %arg7: memref<4x1x32xf32, #tpu.memory_space<vmem>>, %arg8: memref<128x32xf32, #tpu.memory_space<vmem>>, %arg9: memref<128x1xf32, #tpu.memory_space<vmem>>) attributes {dimension_semantics = [#tpu.dimension_semantics<parallel>], iteration_bounds = array<i64: 2>, scalar_prefetch = 0 : i64, scratch_operands = 0 : i64, tpu.core_type = #tpu.core_type<tc>, window_params = [{transform_indices = @transform_0, window_bounds = array<i64: 128, 32>}, {pipeline_mode = #tpu.pipeline_mode<synchronous>, transform_indices = @transform_1, window_bounds = array<i64: 4, 16, 512>}, {pipeline_mode = #tpu.pipeline_mode<synchronous>, transform_indices = @transform_2, window_bounds = array<i64: 4, 1, 512>}, {pipeline_mode = #tpu.pipeline_mode<synchronous>, transform_indices = @transform_3, window_bounds = array<i64: 4, 512, 32>}, {pipeline_mode = #tpu.pipeline_mode<synchronous>, transform_indices = @transform_4, window_bounds = array<i64: 4, 1, 32>}, {pipeline_mode = #tpu.pipeline_mode<synchronous>, transform_indices = @transform_5, window_bounds = array<i64: 4, 32, 32>}, {pipeline_mode = #tpu.pipeline_mode<synchronous>, transform_indices = @transform_6, window_bounds = array<i64: 4, 1, 32>}, {transform_indices = @transform_7, window_bounds = array<i64: 128, 32>}, {transform_indices = @transform_8, window_bounds = array<i64: 128, 1>}]} {
    %c0 = arith.constant 0 : index
    %c0_0 = arith.constant 0 : index
    %0 = vector.load %arg1[%c0, %c0_0] : memref<128x32xf32, #tpu.memory_space<vmem>>, vector<128x32xf32>
    %cst = arith.constant 0.000000e+00 : f32
    %1 = vector.broadcast %cst : f32 to vector<128x1xf32>
    %c0_1 = arith.constant 0 : index
    %c0_2 = arith.constant 0 : index
    %c0_3 = arith.constant 0 : index
    %2 = vector.load %arg2[%c0_1, %c0_2, %c0_3] : memref<4x16x512xf32, #tpu.memory_space<vmem>>, vector<1x16x512xf32>
    %3 = vector.shape_cast %2 : vector<1x16x512xf32> to vector<16x512xf32>
    %c0_4 = arith.constant 0 : index
    %c0_5 = arith.constant 0 : index
    %c0_6 = arith.constant 0 : index
    %4 = vector.load %arg4[%c0_4, %c0_5, %c0_6] : memref<4x512x32xf32, #tpu.memory_space<vmem>>, vector<1x512x32xf32>
    %5 = vector.shape_cast %4 : vector<1x512x32xf32> to vector<512x32xf32>
    %c0_7 = arith.constant 0 : index
    %c0_8 = arith.constant 0 : index
    %c0_9 = arith.constant 0 : index
    %6 = vector.load %arg6[%c0_7, %c0_8, %c0_9] : memref<4x32x32xf32, #tpu.memory_space<vmem>>, vector<1x32x32xf32>
    %7 = vector.shape_cast %6 : vector<1x32x32xf32> to vector<32x32xf32>
    %8 = vector.extract_strided_slice %0 {offsets = [0, 0], sizes = [128, 16], strides = [1, 1]} : vector<128x32xf32> to vector<128x16xf32>
    %9 = vector.extract_strided_slice %0 {offsets = [0, 16], sizes = [128, 16], strides = [1, 1]} : vector<128x32xf32> to vector<128x16xf32>
    %cst_10 = arith.constant dense<0.000000e+00> : vector<128x512xf32>
    %10 = tpu.matmul %8, %3, %cst_10 {dimension_numbers = #tpu.dot_dimension_numbers<[1], [0], [0], [1], [0, 0, 1, 1], [], []>} : vector<128x16xf32>, vector<16x512xf32>, vector<128x512xf32> -> vector<128x512xf32>
    %c0_11 = arith.constant 0 : index
    %c0_12 = arith.constant 0 : index
    %c0_13 = arith.constant 0 : index
    %11 = vector.load %arg3[%c0_11, %c0_12, %c0_13] : memref<4x1x512xf32, #tpu.memory_space<vmem>>, vector<1x1x512xf32>
    %12 = vector.shape_cast %11 : vector<1x1x512xf32> to vector<1x512xf32>
    %13 = vector.broadcast %12 : vector<1x512xf32> to vector<128x512xf32>
    %14 = arith.addf %10, %13 : vector<128x512xf32>
    %cst_14 = arith.constant 0.000000e+00 : f32
    %15 = vector.broadcast %cst_14 : f32 to vector<128x512xf32>
    %16 = arith.maximumf %14, %15 : vector<128x512xf32>
    %cst_15 = arith.constant dense<0.000000e+00> : vector<128x32xf32>
    %17 = tpu.matmul %16, %5, %cst_15 {dimension_numbers = #tpu.dot_dimension_numbers<[1], [0], [0], [1], [0, 0, 1, 1], [], []>} : vector<128x512xf32>, vector<512x32xf32>, vector<128x32xf32> -> vector<128x32xf32>
    %c0_16 = arith.constant 0 : index
    %c0_17 = arith.constant 0 : index
    %c0_18 = arith.constant 0 : index
    %18 = vector.load %arg5[%c0_16, %c0_17, %c0_18] : memref<4x1x32xf32, #tpu.memory_space<vmem>>, vector<1x1x32xf32>
    %19 = vector.shape_cast %18 : vector<1x1x32xf32> to vector<1x32xf32>
    %20 = vector.broadcast %19 : vector<1x32xf32> to vector<128x32xf32>
    %21 = arith.addf %17, %20 : vector<128x32xf32>
    %22 = vector.extract_strided_slice %21 {offsets = [0, 0], sizes = [128, 16], strides = [1, 1]} : vector<128x32xf32> to vector<128x16xf32>
    %23 = math.tanh %22 : vector<128x16xf32>
    %cst_19 = arith.constant 2.000000e+00 : f32
    %24 = vector.broadcast %cst_19 : f32 to vector<128x16xf32>
    %25 = arith.mulf %24, %23 : vector<128x16xf32>
    %26 = math.exp %25 : vector<128x16xf32>
    %27 = arith.mulf %9, %26 : vector<128x16xf32>
    %28 = vector.extract_strided_slice %21 {offsets = [0, 16], sizes = [128, 16], strides = [1, 1]} : vector<128x32xf32> to vector<128x16xf32>
    %29 = arith.addf %27, %28 : vector<128x16xf32>
    %cst_20 = arith.constant dense<0.000000e+00> : vector<128xf32>
    %30 = vector.multi_reduction <add>, %25, %cst_20 [1] : vector<128x16xf32> to vector<128xf32>
    %31 = vector.shape_cast %30 : vector<128xf32> to vector<128x1xf32>
    %32 = arith.addf %1, %31 : vector<128x1xf32>
    %33 = tpu.concatenate %8, %29 in 1 : vector<128x16xf32>, vector<128x16xf32> -> vector<128x32xf32>
    %cst_21 = arith.constant dense<0.000000e+00> : vector<128x32xf32>
    %34 = tpu.matmul %33, %7, %cst_21 {dimension_numbers = #tpu.dot_dimension_numbers<[1], [0], [0], [1], [0, 0, 1, 1], [], []>} : vector<128x32xf32>, vector<32x32xf32>, vector<128x32xf32> -> vector<128x32xf32>
    %c0_22 = arith.constant 0 : index
    %c0_23 = arith.constant 0 : index
    %c0_24 = arith.constant 0 : index
    %35 = vector.load %arg7[%c0_22, %c0_23, %c0_24] : memref<4x1x32xf32, #tpu.memory_space<vmem>>, vector<1x1x32xf32>
    %36 = vector.shape_cast %35 : vector<1x1x32xf32> to vector<1x32xf32>
    %37 = vector.broadcast %36 : vector<1x32xf32> to vector<128x32xf32>
    %38 = arith.addf %34, %37 : vector<128x32xf32>
    %c1 = arith.constant 1 : index
    %c0_25 = arith.constant 0 : index
    %c0_26 = arith.constant 0 : index
    %39 = vector.load %arg2[%c1, %c0_25, %c0_26] : memref<4x16x512xf32, #tpu.memory_space<vmem>>, vector<1x16x512xf32>
    %40 = vector.shape_cast %39 : vector<1x16x512xf32> to vector<16x512xf32>
    %c1_27 = arith.constant 1 : index
    %c0_28 = arith.constant 0 : index
    %c0_29 = arith.constant 0 : index
    %41 = vector.load %arg4[%c1_27, %c0_28, %c0_29] : memref<4x512x32xf32, #tpu.memory_space<vmem>>, vector<1x512x32xf32>
    %42 = vector.shape_cast %41 : vector<1x512x32xf32> to vector<512x32xf32>
    %c1_30 = arith.constant 1 : index
    %c0_31 = arith.constant 0 : index
    %c0_32 = arith.constant 0 : index
    %43 = vector.load %arg6[%c1_30, %c0_31, %c0_32] : memref<4x32x32xf32, #tpu.memory_space<vmem>>, vector<1x32x32xf32>
    %44 = vector.shape_cast %43 : vector<1x32x32xf32> to vector<32x32xf32>
    %45 = vector.extract_strided_slice %38 {offsets = [0, 0], sizes = [128, 16], strides = [1, 1]} : vector<128x32xf32> to vector<128x16xf32>
    %46 = vector.extract_strided_slice %38 {offsets = [0, 16], sizes = [128, 16], strides = [1, 1]} : vector<128x32xf32> to vector<128x16xf32>
    %cst_33 = arith.constant dense<0.000000e+00> : vector<128x512xf32>
    %47 = tpu.matmul %45, %40, %cst_33 {dimension_numbers = #tpu.dot_dimension_numbers<[1], [0], [0], [1], [0, 0, 1, 1], [], []>} : vector<128x16xf32>, vector<16x512xf32>, vector<128x512xf32> -> vector<128x512xf32>
    %c1_34 = arith.constant 1 : index
    %c0_35 = arith.constant 0 : index
    %c0_36 = arith.constant 0 : index
    %48 = vector.load %arg3[%c1_34, %c0_35, %c0_36] : memref<4x1x512xf32, #tpu.memory_space<vmem>>, vector<1x1x512xf32>
    %49 = vector.shape_cast %48 : vector<1x1x512xf32> to vector<1x512xf32>
    %50 = vector.broadcast %49 : vector<1x512xf32> to vector<128x512xf32>
    %51 = arith.addf %47, %50 : vector<128x512xf32>
    %cst_37 = arith.constant 0.000000e+00 : f32
    %52 = vector.broadcast %cst_37 : f32 to vector<128x512xf32>
    %53 = arith.maximumf %51, %52 : vector<128x512xf32>
    %cst_38 = arith.constant dense<0.000000e+00> : vector<128x32xf32>
    %54 = tpu.matmul %53, %42, %cst_38 {dimension_numbers = #tpu.dot_dimension_numbers<[1], [0], [0], [1], [0, 0, 1, 1], [], []>} : vector<128x512xf32>, vector<512x32xf32>, vector<128x32xf32> -> vector<128x32xf32>
    %c1_39 = arith.constant 1 : index
    %c0_40 = arith.constant 0 : index
    %c0_41 = arith.constant 0 : index
    %55 = vector.load %arg5[%c1_39, %c0_40, %c0_41] : memref<4x1x32xf32, #tpu.memory_space<vmem>>, vector<1x1x32xf32>
    %56 = vector.shape_cast %55 : vector<1x1x32xf32> to vector<1x32xf32>
    %57 = vector.broadcast %56 : vector<1x32xf32> to vector<128x32xf32>
    %58 = arith.addf %54, %57 : vector<128x32xf32>
    %59 = vector.extract_strided_slice %58 {offsets = [0, 0], sizes = [128, 16], strides = [1, 1]} : vector<128x32xf32> to vector<128x16xf32>
    %60 = math.tanh %59 : vector<128x16xf32>
    %cst_42 = arith.constant 2.000000e+00 : f32
    %61 = vector.broadcast %cst_42 : f32 to vector<128x16xf32>
    %62 = arith.mulf %61, %60 : vector<128x16xf32>
    %63 = math.exp %62 : vector<128x16xf32>
    %64 = arith.mulf %46, %63 : vector<128x16xf32>
    %65 = vector.extract_strided_slice %58 {offsets = [0, 16], sizes = [128, 16], strides = [1, 1]} : vector<128x32xf32> to vector<128x16xf32>
    %66 = arith.addf %64, %65 : vector<128x16xf32>
    %cst_43 = arith.constant dense<0.000000e+00> : vector<128xf32>
    %67 = vector.multi_reduction <add>, %62, %cst_43 [1] : vector<128x16xf32> to vector<128xf32>
    %68 = vector.shape_cast %67 : vector<128xf32> to vector<128x1xf32>
    %69 = arith.addf %32, %68 : vector<128x1xf32>
    %70 = tpu.concatenate %45, %66 in 1 : vector<128x16xf32>, vector<128x16xf32> -> vector<128x32xf32>
    %cst_44 = arith.constant dense<0.000000e+00> : vector<128x32xf32>
    %71 = tpu.matmul %70, %44, %cst_44 {dimension_numbers = #tpu.dot_dimension_numbers<[1], [0], [0], [1], [0, 0, 1, 1], [], []>} : vector<128x32xf32>, vector<32x32xf32>, vector<128x32xf32> -> vector<128x32xf32>
    %c1_45 = arith.constant 1 : index
    %c0_46 = arith.constant 0 : index
    %c0_47 = arith.constant 0 : index
    %72 = vector.load %arg7[%c1_45, %c0_46, %c0_47] : memref<4x1x32xf32, #tpu.memory_space<vmem>>, vector<1x1x32xf32>
    %73 = vector.shape_cast %72 : vector<1x1x32xf32> to vector<1x32xf32>
    %74 = vector.broadcast %73 : vector<1x32xf32> to vector<128x32xf32>
    %75 = arith.addf %71, %74 : vector<128x32xf32>
    %c2 = arith.constant 2 : index
    %c0_48 = arith.constant 0 : index
    %c0_49 = arith.constant 0 : index
    %76 = vector.load %arg2[%c2, %c0_48, %c0_49] : memref<4x16x512xf32, #tpu.memory_space<vmem>>, vector<1x16x512xf32>
    %77 = vector.shape_cast %76 : vector<1x16x512xf32> to vector<16x512xf32>
    %c2_50 = arith.constant 2 : index
    %c0_51 = arith.constant 0 : index
    %c0_52 = arith.constant 0 : index
    %78 = vector.load %arg4[%c2_50, %c0_51, %c0_52] : memref<4x512x32xf32, #tpu.memory_space<vmem>>, vector<1x512x32xf32>
    %79 = vector.shape_cast %78 : vector<1x512x32xf32> to vector<512x32xf32>
    %c2_53 = arith.constant 2 : index
    %c0_54 = arith.constant 0 : index
    %c0_55 = arith.constant 0 : index
    %80 = vector.load %arg6[%c2_53, %c0_54, %c0_55] : memref<4x32x32xf32, #tpu.memory_space<vmem>>, vector<1x32x32xf32>
    %81 = vector.shape_cast %80 : vector<1x32x32xf32> to vector<32x32xf32>
    %82 = vector.extract_strided_slice %75 {offsets = [0, 0], sizes = [128, 16], strides = [1, 1]} : vector<128x32xf32> to vector<128x16xf32>
    %83 = vector.extract_strided_slice %75 {offsets = [0, 16], sizes = [128, 16], strides = [1, 1]} : vector<128x32xf32> to vector<128x16xf32>
    %cst_56 = arith.constant dense<0.000000e+00> : vector<128x512xf32>
    %84 = tpu.matmul %82, %77, %cst_56 {dimension_numbers = #tpu.dot_dimension_numbers<[1], [0], [0], [1], [0, 0, 1, 1], [], []>} : vector<128x16xf32>, vector<16x512xf32>, vector<128x512xf32> -> vector<128x512xf32>
    %c2_57 = arith.constant 2 : index
    %c0_58 = arith.constant 0 : index
    %c0_59 = arith.constant 0 : index
    %85 = vector.load %arg3[%c2_57, %c0_58, %c0_59] : memref<4x1x512xf32, #tpu.memory_space<vmem>>, vector<1x1x512xf32>
    %86 = vector.shape_cast %85 : vector<1x1x512xf32> to vector<1x512xf32>
    %87 = vector.broadcast %86 : vector<1x512xf32> to vector<128x512xf32>
    %88 = arith.addf %84, %87 : vector<128x512xf32>
    %cst_60 = arith.constant 0.000000e+00 : f32
    %89 = vector.broadcast %cst_60 : f32 to vector<128x512xf32>
    %90 = arith.maximumf %88, %89 : vector<128x512xf32>
    %cst_61 = arith.constant dense<0.000000e+00> : vector<128x32xf32>
    %91 = tpu.matmul %90, %79, %cst_61 {dimension_numbers = #tpu.dot_dimension_numbers<[1], [0], [0], [1], [0, 0, 1, 1], [], []>} : vector<128x512xf32>, vector<512x32xf32>, vector<128x32xf32> -> vector<128x32xf32>
    %c2_62 = arith.constant 2 : index
    %c0_63 = arith.constant 0 : index
    %c0_64 = arith.constant 0 : index
    %92 = vector.load %arg5[%c2_62, %c0_63, %c0_64] : memref<4x1x32xf32, #tpu.memory_space<vmem>>, vector<1x1x32xf32>
    %93 = vector.shape_cast %92 : vector<1x1x32xf32> to vector<1x32xf32>
    %94 = vector.broadcast %93 : vector<1x32xf32> to vector<128x32xf32>
    %95 = arith.addf %91, %94 : vector<128x32xf32>
    %96 = vector.extract_strided_slice %95 {offsets = [0, 0], sizes = [128, 16], strides = [1, 1]} : vector<128x32xf32> to vector<128x16xf32>
    %97 = math.tanh %96 : vector<128x16xf32>
    %cst_65 = arith.constant 2.000000e+00 : f32
    %98 = vector.broadcast %cst_65 : f32 to vector<128x16xf32>
    %99 = arith.mulf %98, %97 : vector<128x16xf32>
    %100 = math.exp %99 : vector<128x16xf32>
    %101 = arith.mulf %83, %100 : vector<128x16xf32>
    %102 = vector.extract_strided_slice %95 {offsets = [0, 16], sizes = [128, 16], strides = [1, 1]} : vector<128x32xf32> to vector<128x16xf32>
    %103 = arith.addf %101, %102 : vector<128x16xf32>
    %cst_66 = arith.constant dense<0.000000e+00> : vector<128xf32>
    %104 = vector.multi_reduction <add>, %99, %cst_66 [1] : vector<128x16xf32> to vector<128xf32>
    %105 = vector.shape_cast %104 : vector<128xf32> to vector<128x1xf32>
    %106 = arith.addf %69, %105 : vector<128x1xf32>
    %107 = tpu.concatenate %82, %103 in 1 : vector<128x16xf32>, vector<128x16xf32> -> vector<128x32xf32>
    %cst_67 = arith.constant dense<0.000000e+00> : vector<128x32xf32>
    %108 = tpu.matmul %107, %81, %cst_67 {dimension_numbers = #tpu.dot_dimension_numbers<[1], [0], [0], [1], [0, 0, 1, 1], [], []>} : vector<128x32xf32>, vector<32x32xf32>, vector<128x32xf32> -> vector<128x32xf32>
    %c2_68 = arith.constant 2 : index
    %c0_69 = arith.constant 0 : index
    %c0_70 = arith.constant 0 : index
    %109 = vector.load %arg7[%c2_68, %c0_69, %c0_70] : memref<4x1x32xf32, #tpu.memory_space<vmem>>, vector<1x1x32xf32>
    %110 = vector.shape_cast %109 : vector<1x1x32xf32> to vector<1x32xf32>
    %111 = vector.broadcast %110 : vector<1x32xf32> to vector<128x32xf32>
    %112 = arith.addf %108, %111 : vector<128x32xf32>
    %c3 = arith.constant 3 : index
    %c0_71 = arith.constant 0 : index
    %c0_72 = arith.constant 0 : index
    %113 = vector.load %arg2[%c3, %c0_71, %c0_72] : memref<4x16x512xf32, #tpu.memory_space<vmem>>, vector<1x16x512xf32>
    %114 = vector.shape_cast %113 : vector<1x16x512xf32> to vector<16x512xf32>
    %c3_73 = arith.constant 3 : index
    %c0_74 = arith.constant 0 : index
    %c0_75 = arith.constant 0 : index
    %115 = vector.load %arg4[%c3_73, %c0_74, %c0_75] : memref<4x512x32xf32, #tpu.memory_space<vmem>>, vector<1x512x32xf32>
    %116 = vector.shape_cast %115 : vector<1x512x32xf32> to vector<512x32xf32>
    %c3_76 = arith.constant 3 : index
    %c0_77 = arith.constant 0 : index
    %c0_78 = arith.constant 0 : index
    %117 = vector.load %arg6[%c3_76, %c0_77, %c0_78] : memref<4x32x32xf32, #tpu.memory_space<vmem>>, vector<1x32x32xf32>
    %118 = vector.shape_cast %117 : vector<1x32x32xf32> to vector<32x32xf32>
    %119 = vector.extract_strided_slice %112 {offsets = [0, 0], sizes = [128, 16], strides = [1, 1]} : vector<128x32xf32> to vector<128x16xf32>
    %120 = vector.extract_strided_slice %112 {offsets = [0, 16], sizes = [128, 16], strides = [1, 1]} : vector<128x32xf32> to vector<128x16xf32>
    %cst_79 = arith.constant dense<0.000000e+00> : vector<128x512xf32>
    %121 = tpu.matmul %119, %114, %cst_79 {dimension_numbers = #tpu.dot_dimension_numbers<[1], [0], [0], [1], [0, 0, 1, 1], [], []>} : vector<128x16xf32>, vector<16x512xf32>, vector<128x512xf32> -> vector<128x512xf32>
    %c3_80 = arith.constant 3 : index
    %c0_81 = arith.constant 0 : index
    %c0_82 = arith.constant 0 : index
    %122 = vector.load %arg3[%c3_80, %c0_81, %c0_82] : memref<4x1x512xf32, #tpu.memory_space<vmem>>, vector<1x1x512xf32>
    %123 = vector.shape_cast %122 : vector<1x1x512xf32> to vector<1x512xf32>
    %124 = vector.broadcast %123 : vector<1x512xf32> to vector<128x512xf32>
    %125 = arith.addf %121, %124 : vector<128x512xf32>
    %cst_83 = arith.constant 0.000000e+00 : f32
    %126 = vector.broadcast %cst_83 : f32 to vector<128x512xf32>
    %127 = arith.maximumf %125, %126 : vector<128x512xf32>
    %cst_84 = arith.constant dense<0.000000e+00> : vector<128x32xf32>
    %128 = tpu.matmul %127, %116, %cst_84 {dimension_numbers = #tpu.dot_dimension_numbers<[1], [0], [0], [1], [0, 0, 1, 1], [], []>} : vector<128x512xf32>, vector<512x32xf32>, vector<128x32xf32> -> vector<128x32xf32>
    %c3_85 = arith.constant 3 : index
    %c0_86 = arith.constant 0 : index
    %c0_87 = arith.constant 0 : index
    %129 = vector.load %arg5[%c3_85, %c0_86, %c0_87] : memref<4x1x32xf32, #tpu.memory_space<vmem>>, vector<1x1x32xf32>
    %130 = vector.shape_cast %129 : vector<1x1x32xf32> to vector<1x32xf32>
    %131 = vector.broadcast %130 : vector<1x32xf32> to vector<128x32xf32>
    %132 = arith.addf %128, %131 : vector<128x32xf32>
    %133 = vector.extract_strided_slice %132 {offsets = [0, 0], sizes = [128, 16], strides = [1, 1]} : vector<128x32xf32> to vector<128x16xf32>
    %134 = math.tanh %133 : vector<128x16xf32>
    %cst_88 = arith.constant 2.000000e+00 : f32
    %135 = vector.broadcast %cst_88 : f32 to vector<128x16xf32>
    %136 = arith.mulf %135, %134 : vector<128x16xf32>
    %137 = math.exp %136 : vector<128x16xf32>
    %138 = arith.mulf %120, %137 : vector<128x16xf32>
    %139 = vector.extract_strided_slice %132 {offsets = [0, 16], sizes = [128, 16], strides = [1, 1]} : vector<128x32xf32> to vector<128x16xf32>
    %140 = arith.addf %138, %139 : vector<128x16xf32>
    %cst_89 = arith.constant dense<0.000000e+00> : vector<128xf32>
    %141 = vector.multi_reduction <add>, %136, %cst_89 [1] : vector<128x16xf32> to vector<128xf32>
    %142 = vector.shape_cast %141 : vector<128xf32> to vector<128x1xf32>
    %143 = arith.addf %106, %142 : vector<128x1xf32>
    %144 = tpu.concatenate %119, %140 in 1 : vector<128x16xf32>, vector<128x16xf32> -> vector<128x32xf32>
    %cst_90 = arith.constant dense<0.000000e+00> : vector<128x32xf32>
    %145 = tpu.matmul %144, %118, %cst_90 {dimension_numbers = #tpu.dot_dimension_numbers<[1], [0], [0], [1], [0, 0, 1, 1], [], []>} : vector<128x32xf32>, vector<32x32xf32>, vector<128x32xf32> -> vector<128x32xf32>
    %c3_91 = arith.constant 3 : index
    %c0_92 = arith.constant 0 : index
    %c0_93 = arith.constant 0 : index
    %146 = vector.load %arg7[%c3_91, %c0_92, %c0_93] : memref<4x1x32xf32, #tpu.memory_space<vmem>>, vector<1x1x32xf32>
    %147 = vector.shape_cast %146 : vector<1x1x32xf32> to vector<1x32xf32>
    %148 = vector.broadcast %147 : vector<1x32xf32> to vector<128x32xf32>
    %149 = arith.addf %145, %148 : vector<128x32xf32>
    %c0_94 = arith.constant 0 : index
    %c0_95 = arith.constant 0 : index
    %150 = vector.load %arg8[%c0_94, %c0_95] : memref<128x32xf32, #tpu.memory_space<vmem>>, vector<128x32xf32>
    tpu.vector_store %arg8[%c0_94, %c0_95], %149 {strides = array<i32>} : memref<128x32xf32, #tpu.memory_space<vmem>>, vector<128x32xf32>,
    %c0_96 = arith.constant 0 : index
    %c0_97 = arith.constant 0 : index
    %151 = vector.load %arg9[%c0_96, %c0_97] : memref<128x1xf32, #tpu.memory_space<vmem>>, vector<128x1xf32>
    tpu.vector_store %arg9[%c0_96, %c0_97], %143 {strides = array<i32>} : memref<128x1xf32, #tpu.memory_space<vmem>>, vector<128x1xf32>,
    return
  }
  func.func @transform_0(%arg0: i32) -> (i32, i32) {
    %c0_i32 = arith.constant 0 : i32
    %c0_i32_0 = arith.constant 0 : i32
    return %arg0, %c0_i32 : i32, i32
  }
  func.func @transform_1(%arg0: i32) -> (i32, i32, i32) {
    %c0_i32 = arith.constant 0 : i32
    %c0_i32_0 = arith.constant 0 : i32
    %c0_i32_1 = arith.constant 0 : i32
    %c0_i32_2 = arith.constant 0 : i32
    return %c0_i32, %c0_i32_0, %c0_i32_1 : i32, i32, i32
  }
  func.func @transform_2(%arg0: i32) -> (i32, i32, i32) {
    %c0_i32 = arith.constant 0 : i32
    %c0_i32_0 = arith.constant 0 : i32
    %c0_i32_1 = arith.constant 0 : i32
    %c0_i32_2 = arith.constant 0 : i32
    return %c0_i32, %c0_i32_0, %c0_i32_1 : i32, i32, i32
  }
  func.func @transform_3(%arg0: i32) -> (i32, i32, i32) {
    %c0_i32 = arith.constant 0 : i32
    %c0_i32_0 = arith.constant 0 : i32
    %c0_i32_1 = arith.constant 0 : i32
    %c0_i32_2 = arith.constant 0 : i32
    return %c0_i32, %c0_i32_0, %c0_i32_1 : i32, i32, i32
  }
  func.func @transform_4(%arg0: i32) -> (i32, i32, i32) {
    %c0_i32 = arith.constant 0 : i32
    %c0_i32_0 = arith.constant 0 : i32
    %c0_i32_1 = arith.constant 0 : i32
    %c0_i32_2 = arith.constant 0 : i32
    return %c0_i32, %c0_i32_0, %c0_i32_1 : i32, i32, i32
  }
  func.func @transform_5(%arg0: i32) -> (i32, i32, i32) {
    %c0_i32 = arith.constant 0 : i32
    %c0_i32_0 = arith.constant 0 : i32
    %c0_i32_1 = arith.constant 0 : i32
    %c0_i32_2 = arith.constant 0 : i32
    return %c0_i32, %c0_i32_0, %c0_i32_1 : i32, i32, i32
  }
  func.func @transform_6(%arg0: i32) -> (i32, i32, i32) {
    %c0_i32 = arith.constant 0 : i32
    %c0_i32_0 = arith.constant 0 : i32
    %c0_i32_1 = arith.constant 0 : i32
    %c0_i32_2 = arith.constant 0 : i32
    return %c0_i32, %c0_i32_0, %c0_i32_1 : i32, i32, i32
  }
  func.func @transform_7(%arg0: i32) -> (i32, i32) {
    %c0_i32 = arith.constant 0 : i32
    %c0_i32_0 = arith.constant 0 : i32
    return %arg0, %c0_i32 : i32, i32
  }
  func.func @transform_8(%arg0: i32) -> (i32, i32) {
    %c0_i32 = arith.constant 0 : i32
    %c0_i32_0 = arith.constant 0 : i32
    return %arg0, %c0_i32 : i32, i32
  }
}

</mosaic_0001>

<llo_original>
// kernel: tpu_custom_call.1
$region0: #{tpu_custom_call.1}
  #allocation0 [shape = 'u32[]', space=smem, size = 0x4, offset = 0x4, fixed_abs, tag = 'smem constant byte address 0x4 - core index']
  #allocation1 [shape = 'u32[72,128]{1,0:T(1,128)}', space=vmem, size = 0x9000, scoped, tag = 'internal scratch']
  %s0 = inlined_call_operand.vmem [shape: f32[256,32], index: 0, kind: input, shape index: {}]
  %s1 = inlined_call_operand.vmem [shape: f32[4,16,512], index: 1, kind: input, shape index: {}]
  %s2 = inlined_call_operand.vmem [shape: f32[4,1,512], index: 2, kind: input, shape index: {}]
  %s3 = inlined_call_operand.vmem [shape: f32[4,512,32], index: 3, kind: input, shape index: {}]
  %s4 = inlined_call_operand.vmem [shape: f32[4,1,32], index: 4, kind: input, shape index: {}]
  %s5 = inlined_call_operand.vmem [shape: f32[4,32,32], index: 5, kind: input, shape index: {}]
  %s6 = inlined_call_operand.vmem [shape: f32[4,1,32], index: 6, kind: input, shape index: {}]
  %s7 = inlined_call_operand.vmem [shape: f32[256,32], index: 7, kind: output, shape index: {0}]
  %s8 = inlined_call_operand.vmem [shape: f32[256,1], index: 8, kind: output, shape index: {1}]
  %9 = xla_tuple %s7, %s8
  %s10 = sld [smem:[#allocation0]]
  $region69: #{tpu_custom_call.1} parent=0
    _
  %s12 = ssub.s32 1, %s10
  %s13 = scalar_select 0, %s12, %s10
  loop: start=0, step=1, limit=4
  $region2: #{tpu_custom_call.1} parent=0 // loop_pre_header
    _
  $region3: #{tpu_custom_call.1} parent=0 // loop_header
    %s15 = sphi 0, %s19
    %p16 = scmp.ge.s32.totalorder %s15, 4
    %s25 = sphi 0, %s27
    %s28 = sphi 0, %s25
    %s29 = sphi 0, %s28
    %s45 = sphi 0, %s29
    %s49 = sphi 0, %s49
    %s51 = sphi 0, %s49
    %s52 = sphi 0, %s51
    %s66 = sphi 0, %s52
    %s70 = sphi 0, %s70
    %s72 = sphi 0, %s70
    %s73 = sphi 0, %s72
    %s87 = sphi 0, %s73
    %s91 = sphi 0, %s91
    %s93 = sphi 0, %s91
    %s94 = sphi 0, %s93
    %s108 = sphi 0, %s94
    %s112 = sphi 0, %s112
    %s114 = sphi 0, %s112
    %s115 = sphi 0, %s114
    %s129 = sphi 0, %s115
    %s133 = sphi 0, %s133
    %s135 = sphi 0, %s133
    %s136 = sphi 0, %s135
    %s150 = sphi 0, %s136
    %s154 = sphi 0, %s154
    %s156 = sphi 0, %s154
    %s157 = sphi 0, %s156
    %s171 = sphi 0, %s157
    %s177 = sphi 0, %s179
    %s180 = sphi 0, %s177
    %s181 = sphi 0, %s180
    %s197 = sphi 0, %s181
    %s203 = sphi 0, %s205
    %s206 = sphi 0, %s203
    %s207 = sphi 0, %s206
    %s223 = sphi 0, %s207
  $region4: #{tpu_custom_call.1} parent=0 // loop_header_branch
    %18 = sbr.rel (%p16) target = $region8
  $region5: #{tpu_custom_call.1} parent=0 // loop_body
    %s20 = ssub.s32 %s15, 1
    %s21 = ssub.s32 %s15, 2
    %s22 = sadd.s32 %s15, 1
    %s23 = ssub.s32 %s15, %s22
    %p24 = scmp.eq.s32.totalorder %s23, 0
    %s26 = sadd.s32 %s25, 1
    %s27 = scalar_select %p24, %s25, %s26
    %p30 = pneg %p24
    %p31 = scmp.eq.s32.totalorder %s15, 1
    %p32 = por %p30, %p31
    %p33 = scmp.ne.s32.totalorder %s25, %s28
    %p34 = scmp.eq.s32.totalorder %s15, 0
    %p35 = por %p33, %p34
    %p36 = scmp.ne.s32.totalorder %s25, %s28
    %p37 = scmp.eq.s32.totalorder %s20, 1
    %p38 = por %p36, %p37
    %p39 = scmp.ne.s32.totalorder %s28, %s29
    %p40 = scmp.eq.s32.totalorder %s20, 0
    %p41 = por %p39, %p40
    %p42 = scmp.ne.s32.totalorder %s28, %s29
    %p43 = scmp.eq.s32.totalorder %s21, 1
    %p44 = por %p42, %p43
    %p46 = scmp.ne.s32.totalorder %s29, %s45
    %p47 = scmp.eq.s32.totalorder %s21, 0
    %p48 = por %p46, %p47
    %s50 = sadd.s32 %s49, 1
    %p53 = scmp.eq.s32.totalorder %s15, 1
    %p54 = scmp.ne.s32.totalorder %s49, %s51
    %p55 = scmp.eq.s32.totalorder %s15, 0
    %p56 = por %p54, %p55
    %p57 = scmp.ne.s32.totalorder %s49, %s51
    %p58 = scmp.eq.s32.totalorder %s20, 1
    %p59 = por %p57, %p58
    %p60 = scmp.ne.s32.totalorder %s51, %s52
    %p61 = scmp.eq.s32.totalorder %s20, 0
    %p62 = por %p60, %p61
    %p63 = scmp.ne.s32.totalorder %s51, %s52
    %p64 = scmp.eq.s32.totalorder %s21, 1
    %p65 = por %p63, %p64
    %p67 = scmp.ne.s32.totalorder %s52, %s66
    %p68 = scmp.eq.s32.totalorder %s21, 0
    %p69 = por %p67, %p68
    %s71 = sadd.s32 %s70, 1
    %p74 = scmp.eq.s32.totalorder %s15, 1
    %p75 = scmp.ne.s32.totalorder %s70, %s72
    %p76 = scmp.eq.s32.totalorder %s15, 0
    %p77 = por %p75, %p76
    %p78 = scmp.ne.s32.totalorder %s70, %s72
    %p79 = scmp.eq.s32.totalorder %s20, 1
    %p80 = por %p78, %p79
    %p81 = scmp.ne.s32.totalorder %s72, %s73
    %p82 = scmp.eq.s32.totalorder %s20, 0
    %p83 = por %p81, %p82
    %p84 = scmp.ne.s32.totalorder %s72, %s73
    %p85 = scmp.eq.s32.totalorder %s21, 1
    %p86 = por %p84, %p85
    %p88 = scmp.ne.s32.totalorder %s73, %s87
    %p89 = scmp.eq.s32.totalorder %s21, 0
    %p90 = por %p88, %p89
    %s92 = sadd.s32 %s91, 1
    %p95 = scmp.eq.s32.totalorder %s15, 1
    %p96 = scmp.ne.s32.totalorder %s91, %s93
    %p97 = scmp.eq.s32.totalorder %s15, 0
    %p98 = por %p96, %p97
    %p99 = scmp.ne.s32.totalorder %s91, %s93
    %p100 = scmp.eq.s32.totalorder %s20, 1
    %p101 = por %p99, %p100
    %p102 = scmp.ne.s32.totalorder %s93, %s94
    %p103 = scmp.eq.s32.totalorder %s20, 0
    %p104 = por %p102, %p103
    %p105 = scmp.ne.s32.totalorder %s93, %s94
    %p106 = scmp.eq.s32.totalorder %s21, 1
    %p107 = por %p105, %p106
    %p109 = scmp.ne.s32.totalorder %s94, %s108
    %p110 = scmp.eq.s32.totalorder %s21, 0
    %p111 = por %p109, %p110
    %s113 = sadd.s32 %s112, 1
    %p116 = scmp.eq.s32.totalorder %s15, 1
    %p117 = scmp.ne.s32.totalorder %s112, %s114
    %p118 = scmp.eq.s32.totalorder %s15, 0
    %p119 = por %p117, %p118
    %p120 = scmp.ne.s32.totalorder %s112, %s114
    %p121 = scmp.eq.s32.totalorder %s20, 1
    %p122 = por %p120, %p121
    %p123 = scmp.ne.s32.totalorder %s114, %s115
    %p124 = scmp.eq.s32.totalorder %s20, 0
    %p125 = por %p123, %p124
    %p126 = scmp.ne.s32.totalorder %s114, %s115
    %p127 = scmp.eq.s32.totalorder %s21, 1
    %p128 = por %p126, %p127
    %p130 = scmp.ne.s32.totalorder %s115, %s129
    %p131 = scmp.eq.s32.totalorder %s21, 0
    %p132 = por %p130, %p131
    %s134 = sadd.s32 %s133, 1
    %p137 = scmp.eq.s32.totalorder %s15, 1
    %p138 = scmp.ne.s32.totalorder %s133, %s135
    %p139 = scmp.eq.s32.totalorder %s15, 0
    %p140 = por %p138, %p139
    %p141 = scmp.ne.s32.totalorder %s133, %s135
    %p142 = scmp.eq.s32.totalorder %s20, 1
    %p143 = por %p141, %p142
    %p144 = scmp.ne.s32.totalorder %s135, %s136
    %p145 = scmp.eq.s32.totalorder %s20, 0
    %p146 = por %p144, %p145
    %p147 = scmp.ne.s32.totalorder %s135, %s136
    %p148 = scmp.eq.s32.totalorder %s21, 1
    %p149 = por %p147, %p148
    %p151 = scmp.ne.s32.totalorder %s136, %s150
    %p152 = scmp.eq.s32.totalorder %s21, 0
    %p153 = por %p151, %p152
    %s155 = sadd.s32 %s154, 1
    %p158 = scmp.eq.s32.totalorder %s15, 1
    %p159 = scmp.ne.s32.totalorder %s154, %s156
    %p160 = scmp.eq.s32.totalorder %s15, 0
    %p161 = por %p159, %p160
    %p162 = scmp.ne.s32.totalorder %s154, %s156
    %p163 = scmp.eq.s32.totalorder %s20, 1
    %p164 = por %p162, %p163
    %p165 = scmp.ne.s32.totalorder %s156, %s157
    %p166 = scmp.eq.s32.totalorder %s20, 0
    %p167 = por %p165, %p166
    %p168 = scmp.ne.s32.totalorder %s156, %s157
    %p169 = scmp.eq.s32.totalorder %s21, 1
    %p170 = por %p168, %p169
    %p172 = scmp.ne.s32.totalorder %s157, %s171
    %p173 = scmp.eq.s32.totalorder %s21, 0
    %p174 = por %p172, %p173
    %s175 = ssub.s32 %s15, %s22
    %p176 = scmp.eq.s32.totalorder %s175, 0
    %s178 = sadd.s32 %s177, 1
    %s179 = scalar_select %p176, %s177, %s178
    %p182 = pneg %p176
    %p183 = scmp.eq.s32.totalorder %s15, 1
    %p184 = por %p182, %p183
    %p185 = scmp.ne.s32.totalorder %s177, %s180
    %p186 = scmp.eq.s32.totalorder %s15, 0
    %p187 = por %p185, %p186
    %p188 = scmp.ne.s32.totalorder %s177, %s180
    %p189 = scmp.eq.s32.totalorder %s20, 1
    %p190 = por %p188, %p189
    %p191 = scmp.ne.s32.totalorder %s180, %s181
    %p192 = scmp.eq.s32.totalorder %s20, 0
    %p193 = por %p191, %p192
    %p194 = scmp.ne.s32.totalorder %s180, %s181
    %p195 = scmp.eq.s32.totalorder %s21, 1
    %p196 = por %p194, %p195
    %p198 = scmp.ne.s32.totalorder %s181, %s197
    %p199 = scmp.eq.s32.totalorder %s21, 0
    %p200 = por %p198, %p199
    %s201 = ssub.s32 %s15, %s22
    %p202 = scmp.eq.s32.totalorder %s201, 0
    %s204 = sadd.s32 %s203, 1
    %s205 = scalar_select %p202, %s203, %s204
    %p208 = pneg %p202
    %p209 = scmp.eq.s32.totalorder %s15, 1
    %p210 = por %p208, %p209
    %p211 = scmp.ne.s32.totalorder %s203, %s206
    %p212 = scmp.eq.s32.totalorder %s15, 0
    %p213 = por %p211, %p212
    %p214 = scmp.ne.s32.totalorder %s203, %s206
    %p215 = scmp.eq.s32.totalorder %s20, 1
    %p216 = por %p214, %p215
    %p217 = scmp.ne.s32.totalorder %s206, %s207
    %p218 = scmp.eq.s32.totalorder %s20, 0
    %p219 = por %p217, %p218
    %p220 = scmp.ne.s32.totalorder %s206, %s207
    %p221 = scmp.eq.s32.totalorder %s21, 1
    %p222 = por %p220, %p221
    %p224 = scmp.ne.s32.totalorder %s207, %s223
    %p225 = scmp.eq.s32.totalorder %s21, 0
    %p226 = por %p224, %p225
    %p227 = scmp.le.s32.totalorder 1, %s15
    %p228 = scmp.lt.s32.totalorder %s15, 3
    %p229 = pnand %p227, %p228
    %p230 = pneg %p229
    // Predicated region
    $region9: #{tpu_custom_call.1} parent=5 // pred_check
      _
    $region10: #{tpu_custom_call.1} parent=5 // pred_check_branch
      %232 = sbr.rel (%p229) target = $region12
    $region11: #{tpu_custom_call.1} parent=5 // pred_region
      %s233 = ssub.s32 %s15, 1
      // Predicated region
      $region13: #{tpu_custom_call.1} parent=11 // pred_check
        %p234 = pneg %p62
      $region14: #{tpu_custom_call.1} parent=11 // pred_check_branch
        %236 = sbr.rel (%p234) target = $region16
      $region15: #{tpu_custom_call.1} parent=11 // pred_region
        _
      $region16: #{tpu_custom_call.1} parent=11 // pred_fallthru
        _
      // Predicated region
      $region17: #{tpu_custom_call.1} parent=11 // pred_check
        %p237 = pneg %p83
      $region18: #{tpu_custom_call.1} parent=11 // pred_check_branch
        %239 = sbr.rel (%p237) target = $region20
      $region19: #{tpu_custom_call.1} parent=11 // pred_region
        _
      $region20: #{tpu_custom_call.1} parent=11 // pred_fallthru
        _
      // Predicated region
      $region21: #{tpu_custom_call.1} parent=11 // pred_check
        %p240 = pneg %p104
      $region22: #{tpu_custom_call.1} parent=11 // pred_check_branch
        %242 = sbr.rel (%p240) target = $region24
      $region23: #{tpu_custom_call.1} parent=11 // pred_region
        _
      $region24: #{tpu_custom_call.1} parent=11 // pred_fallthru
        _
      // Predicated region
      $region25: #{tpu_custom_call.1} parent=11 // pred_check
        %p243 = pneg %p125
      $region26: #{tpu_custom_call.1} parent=11 // pred_check_branch
        %245 = sbr.rel (%p243) target = $region28
      $region27: #{tpu_custom_call.1} parent=11 // pred_region
        _
      $region28: #{tpu_custom_call.1} parent=11 // pred_fallthru
        _
      // Predicated region
      $region29: #{tpu_custom_call.1} parent=11 // pred_check
        %p246 = pneg %p146
      $region30: #{tpu_custom_call.1} parent=11 // pred_check_branch
        %248 = sbr.rel (%p246) target = $region32
      $region31: #{tpu_custom_call.1} parent=11 // pred_region
        _
      $region32: #{tpu_custom_call.1} parent=11 // pred_fallthru
        _
      // Predicated region
      $region33: #{tpu_custom_call.1} parent=11 // pred_check
        %p249 = pneg %p167
      $region34: #{tpu_custom_call.1} parent=11 // pred_check_branch
        %251 = sbr.rel (%p249) target = $region36
      $region35: #{tpu_custom_call.1} parent=11 // pred_region
        _
      $region36: #{tpu_custom_call.1} parent=11 // pred_fallthru
        _
    $region12: #{tpu_custom_call.1} parent=5 // pred_fallthru
      _
    %p252 = scmp.lt.s32.totalorder %s15, 2
    // Predicated region
    $region37: #{tpu_custom_call.1} parent=5 // pred_check
      %p253 = pneg %p252
    $region38: #{tpu_custom_call.1} parent=5 // pred_check_branch
      %255 = sbr.rel (%p253) target = $region40
    $region39: #{tpu_custom_call.1} parent=5 // pred_region
      // Predicated region
      $region41: #{tpu_custom_call.1} parent=39 // pred_check
        %p256 = pneg %p35
      $region42: #{tpu_custom_call.1} parent=39 // pred_check_branch
        %258 = sbr.rel (%p256) target = $region44
      $region43: #{tpu_custom_call.1} parent=39 // pred_region
        %s259 = smul.u32 16, %s15
        %p260 = scmp.lt.s32.totalorder %s259, 31
        %s261 = scalar_select %p260, %s259, 31
        %s262 = smul.addr %s261, 8
        %s263 = scalar_lea.vmem %s0, %s262
        %s264 = smul.u32 16, %s15
      $region44: #{tpu_custom_call.1} parent=39 // pred_fallthru
        _
    $region40: #{tpu_custom_call.1} parent=5 // pred_fallthru
      _
    %p265 = scmp.le.s32.totalorder 1, %s15
    %p266 = scmp.lt.s32.totalorder %s15, 3
    %p267 = pnand %p265, %p266
    %p268 = pneg %p267
    // Predicated region
    $region45: #{tpu_custom_call.1} parent=5 // pred_check
      _
    $region46: #{tpu_custom_call.1} parent=5 // pred_check_branch
      %270 = sbr.rel (%p267) target = $region48
    $region47: #{tpu_custom_call.1} parent=5 // pred_region
      %s271 = ssub.s32 %s15, 1
      %s272 = smul.u32 16, %s20
      %p273 = scmp.lt.s32.totalorder %s272, 31
      %s274 = scalar_select %p273, %s272, 31
      %s275 = smul.addr %s274, 8
      %s276 = scalar_lea.vmem %s0, %s275
      %p277 = pneg %p41
      %p278 = pneg %p38
      %p279 = pneg %p62
      %p280 = pneg %p59
      %p281 = pneg %p83
      %p282 = pneg %p80
      %p283 = pneg %p104
      %p284 = pneg %p101
      %p285 = pneg %p125
      %p286 = pneg %p122
      %p287 = pneg %p146
      %p288 = pneg %p143
      %p289 = pneg %p167
      %p290 = pneg %p164
      %p291 = pneg %p193
      %p292 = pneg %p190
      %s293 = smul.u32 16, %s20
      %p294 = scmp.lt.s32.totalorder %s293, 31
      %s295 = scalar_select %p294, %s293, 31
      %s296 = smul.addr %s295, 8
      %s297 = scalar_lea.vmem %s7, %s296
      %p298 = pneg %p219
      %p299 = pneg %p216
      %s300 = smul.u32 16, %s20
      %p301 = scmp.lt.s32.totalorder %s300, 31
      %s302 = scalar_select %p301, %s300, 31
      %s303 = smul.addr %s302, 8
      %s304 = scalar_lea.vmem %s8, %s303
      %s305 = smul.u32 16, %s20
      %p306 = scmp.lt.s32.totalorder %s305, 31
      %s307 = scalar_select %p306, %s305, 31
      %s308 = smul.addr %s307, 8
      %s309 = scalar_lea.vmem %s0, %s308
      %s310 = smul.u32 16, %s20
      %s311 = smul.u32 16, %s20
      %p312 = scmp.lt.s32.totalorder %s311, 31
      %s313 = scalar_select %p312, %s311, 31
      %s314 = smul.addr %s313, 8
      %s315 = scalar_lea.vmem %s7, %s314
      %s316 = smul.u32 16, %s20
      %s317 = smul.u32 16, %s20
      %p318 = scmp.lt.s32.totalorder %s317, 31
      %s319 = scalar_select %p318, %s317, 31
      %s320 = smul.addr %s319, 8
      %s321 = scalar_lea.vmem %s8, %s320
      %s322 = smul.u32 16, %s20
      %v323 = vld [vmem:[%s309] sm:$0xff]
      %v324 = vld [vmem:[%s309 + $0x8] sm:$0xff]
      %v325 = vld [vmem:[%s309 + $0x10] sm:$0xff]
      %v326 = vld [vmem:[%s309 + $0x18] sm:$0xff]
      %v327 = vld [vmem:[%s309 + $0x20] sm:$0xff]
      %v328 = vld [vmem:[%s309 + $0x28] sm:$0xff]
      %v329 = vld [vmem:[%s309 + $0x30] sm:$0xff]
      %v330 = vld [vmem:[%s309 + $0x38] sm:$0xff]
      %v331 = vld [vmem:[%s309 + $0x40] sm:$0xff]
      %v332 = vld [vmem:[%s309 + $0x48] sm:$0xff]
      %v333 = vld [vmem:[%s309 + $0x50] sm:$0xff]
      %v334 = vld [vmem:[%s309 + $0x58] sm:$0xff]
      %v335 = vld [vmem:[%s309 + $0x60] sm:$0xff]
      %v336 = vld [vmem:[%s309 + $0x68] sm:$0xff]
      %v337 = vld [vmem:[%s309 + $0x70] sm:$0xff]
      %v338 = vld [vmem:[%s309 + $0x78] sm:$0xff]
      %v339 = vld [vmem:[%s1] sm:$0xff]
      %v340 = vld [vmem:[%s1 + $0x8] sm:$0xff]
      %v341 = vld [vmem:[%s1 + $0x10] sm:$0xff]
      %v342 = vld [vmem:[%s1 + $0x18] sm:$0xff]
      %v343 = vld [vmem:[%s1 + $0x20] sm:$0xff]
      %v344 = vld [vmem:[%s1 + $0x28] sm:$0xff]
      %v345 = vld [vmem:[%s1 + $0x30] sm:$0xff]
      %v346 = vld [vmem:[%s1 + $0x38] sm:$0xff]
      %v347 = vld [vmem:[%s3] sm:$0xff]
      %v348 = vld [vmem:[%s3 + $0x8] sm:$0xff]
      %v349 = vld [vmem:[%s3 + $0x10] sm:$0xff]
      %v350 = vld [vmem:[%s3 + $0x18] sm:$0xff]
      %v351 = vld [vmem:[%s3 + $0x20] sm:$0xff]
      %v352 = vld [vmem:[%s3 + $0x28] sm:$0xff]
      %v353 = vld [vmem:[%s3 + $0x30] sm:$0xff]
      %v354 = vld [vmem:[%s3 + $0x38] sm:$0xff]
      %v355 = vld [vmem:[%s3 + $0x40] sm:$0xff]
      %v356 = vld [vmem:[%s3 + $0x48] sm:$0xff]
      %v357 = vld [vmem:[%s3 + $0x50] sm:$0xff]
      %v358 = vld [vmem:[%s3 + $0x58] sm:$0xff]
      %v359 = vld [vmem:[%s3 + $0x60] sm:$0xff]
      %v360 = vld [vmem:[%s3 + $0x68] sm:$0xff]
      %v361 = vld [vmem:[%s3 + $0x70] sm:$0xff]
      %v362 = vld [vmem:[%s3 + $0x78] sm:$0xff]
      %v363 = vld [vmem:[%s3 + $0x80] sm:$0xff]
      %v364 = vld [vmem:[%s3 + $0x88] sm:$0xff]
      %v365 = vld [vmem:[%s3 + $0x90] sm:$0xff]
      %v366 = vld [vmem:[%s3 + $0x98] sm:$0xff]
      %v367 = vld [vmem:[%s3 + $0xa0] sm:$0xff]
      %v368 = vld [vmem:[%s3 + $0xa8] sm:$0xff]
      %v369 = vld [vmem:[%s3 + $0xb0] sm:$0xff]
      %v370 = vld [vmem:[%s3 + $0xb8] sm:$0xff]
      %v371 = vld [vmem:[%s3 + $0xc0] sm:$0xff]
      %v372 = vld [vmem:[%s3 + $0xc8] sm:$0xff]
      %v373 = vld [vmem:[%s3 + $0xd0] sm:$0xff]
      %v374 = vld [vmem:[%s3 + $0xd8] sm:$0xff]
      %v375 = vld [vmem:[%s3 + $0xe0] sm:$0xff]
      %v376 = vld [vmem:[%s3 + $0xe8] sm:$0xff]
      %v377 = vld [vmem:[%s3 + $0xf0] sm:$0xff]
      %v378 = vld [vmem:[%s3 + $0xf8] sm:$0xff]
      %v379 = vld [vmem:[%s3 + $0x100] sm:$0xff]
      %v380 = vld [vmem:[%s3 + $0x108] sm:$0xff]
      %v381 = vld [vmem:[%s3 + $0x110] sm:$0xff]
      %v382 = vld [vmem:[%s3 + $0x118] sm:$0xff]
      %v383 = vld [vmem:[%s3 + $0x120] sm:$0xff]
      %v384 = vld [vmem:[%s3 + $0x128] sm:$0xff]
      %v385 = vld [vmem:[%s3 + $0x130] sm:$0xff]
      %v386 = vld [vmem:[%s3 + $0x138] sm:$0xff]
      %v387 = vld [vmem:[%s3 + $0x140] sm:$0xff]
      %v388 = vld [vmem:[%s3 + $0x148] sm:$0xff]
      %v389 = vld [vmem:[%s3 + $0x150] sm:$0xff]
      %v390 = vld [vmem:[%s3 + $0x158] sm:$0xff]
      %v391 = vld [vmem:[%s3 + $0x160] sm:$0xff]
      %v392 = vld [vmem:[%s3 + $0x168] sm:$0xff]
      %v393 = vld [vmem:[%s3 + $0x170] sm:$0xff]
      %v394 = vld [vmem:[%s3 + $0x178] sm:$0xff]
      %v395 = vld [vmem:[%s3 + $0x180] sm:$0xff]
      %v396 = vld [vmem:[%s3 + $0x188] sm:$0xff]
      %v397 = vld [vmem:[%s3 + $0x190] sm:$0xff]
      %v398 = vld [vmem:[%s3 + $0x198] sm:$0xff]
      %v399 = vld [vmem:[%s3 + $0x1a0] sm:$0xff]
      %v400 = vld [vmem:[%s3 + $0x1a8] sm:$0xff]
      %v401 = vld [vmem:[%s3 + $0x1b0] sm:$0xff]
      %v402 = vld [vmem:[%s3 + $0x1b8] sm:$0xff]
      %v403 = vld [vmem:[%s3 + $0x1c0] sm:$0xff]
      %v404 = vld [vmem:[%s3 + $0x1c8] sm:$0xff]
      %v405 = vld [vmem:[%s3 + $0x1d0] sm:$0xff]
      %v406 = vld [vmem:[%s3 + $0x1d8] sm:$0xff]
      %v407 = vld [vmem:[%s3 + $0x1e0] sm:$0xff]
      %v408 = vld [vmem:[%s3 + $0x1e8] sm:$0xff]
      %v409 = vld [vmem:[%s3 + $0x1f0] sm:$0xff]
      %v410 = vld [vmem:[%s3 + $0x1f8] sm:$0xff]
      %v411 = vld [vmem:[%s5] sm:$0xff]
      %v412 = vld [vmem:[%s5 + $0x8] sm:$0xff]
      %v413 = vld [vmem:[%s5 + $0x10] sm:$0xff]
      %v414 = vld [vmem:[%s5 + $0x18] sm:$0xff]
      %v415 = vld [vmem:[%s2] sm:$0xf]
      %v417 = vperm.slane %v415, 0
      %v418 = vperm.slane %v415, 1
      %v419 = vperm.slane %v415, 2
      %v420 = vperm.slane %v415, 3
      %vm425 = vcmask 130048
      %v427 = vsel %vm425, %v323, 0
      %v430 = vsel %vm425, %v324, 0
      %v433 = vsel %vm425, %v325, 0
      %v436 = vsel %vm425, %v326, 0
      %v439 = vsel %vm425, %v327, 0
      %v442 = vsel %vm425, %v328, 0
      %v445 = vsel %vm425, %v329, 0
      %v448 = vsel %vm425, %v330, 0
      %v451 = vsel %vm425, %v331, 0
      %v454 = vsel %vm425, %v332, 0
      %v457 = vsel %vm425, %v333, 0
      %v460 = vsel %vm425, %v334, 0
      %v463 = vsel %vm425, %v335, 0
      %v466 = vsel %vm425, %v336, 0
      %v469 = vsel %vm425, %v337, 0
      %v472 = vsel %vm425, %v338, 0
      %474 = vmatpush.msra.mxu0 0.0
      %475 = vmatpush.msra.mxu0 0.0
      %476 = vmatpush.msra.mxu0 0.0
      %477 = vmatpush.msra.mxu0 0.0
      %478 = vmatpush.msra.mxu0 0.0
      %479 = vmatpush.msra.mxu0 0.0
      %480 = vmatpush.msra.mxu0 0.0
      %481 = vmatpush.msra.mxu0 0.0
      %482 = vmatpush.msra.mxu0 0.0
      %483 = vmatpush.msra.mxu0 0.0
      %484 = vmatpush.msra.mxu0 0.0
      %485 = vmatpush.msra.mxu0 0.0
      %486 = vmatpush.msra.mxu0 0.0
      %487 = vmatpush.msra.mxu0 0.0
      %488 = vmatpush.msra.mxu0 %v343
      %489 = vmatpush.msra.mxu0 %v339
      %490 = vmatmul.f32.gmra.mxu0 %v427
      %v491 = vpop.f32.mrf.mxu0
      %v492 = vadd.f32 %v417, %v491
      %493 = vmatmul.f32.gmra.mxu0 %v430
      %v494 = vpop.f32.mrf.mxu0
      %v495 = vadd.f32 %v417, %v494
      %496 = vmatmul.f32.gmra.mxu0 %v433
      %v497 = vpop.f32.mrf.mxu0
      %v498 = vadd.f32 %v417, %v497
      %499 = vmatmul.f32.gmra.mxu0 %v436
      %v500 = vpop.f32.mrf.mxu0
      %v501 = vadd.f32 %v417, %v500
      %502 = vmatmul.f32.gmra.mxu0 %v439
      %v503 = vpop.f32.mrf.mxu0
      %v504 = vadd.f32 %v417, %v503
      %505 = vmatmul.f32.gmra.mxu0 %v442
      %v506 = vpop.f32.mrf.mxu0
      %v507 = vadd.f32 %v417, %v506
      %508 = vmatmul.f32.gmra.mxu0 %v445
      %v509 = vpop.f32.mrf.mxu0
      %v510 = vadd.f32 %v417, %v509
      %511 = vmatmul.f32.gmra.mxu0 %v448
      %v512 = vpop.f32.mrf.mxu0
      %v513 = vadd.f32 %v417, %v512
      %514 = vmatmul.f32.gmra.mxu0 %v451
      %v515 = vpop.f32.mrf.mxu0
      %v516 = vadd.f32 %v417, %v515
      %517 = vmatmul.f32.gmra.mxu0 %v454
      %v518 = vpop.f32.mrf.mxu0
      %v519 = vadd.f32 %v417, %v518
      %520 = vmatmul.f32.gmra.mxu0 %v457
      %v521 = vpop.f32.mrf.mxu0
      %v522 = vadd.f32 %v417, %v521
      %523 = vmatmul.f32.gmra.mxu0 %v460
      %v524 = vpop.f32.mrf.mxu0
      %v525 = vadd.f32 %v417, %v524
      %526 = vmatmul.f32.gmra.mxu0 %v463
      %v527 = vpop.f32.mrf.mxu0
      %v528 = vadd.f32 %v417, %v527
      %529 = vmatmul.f32.gmra.mxu0 %v466
      %v530 = vpop.f32.mrf.mxu0
      %v531 = vadd.f32 %v417, %v530
      %532 = vmatmul.f32.gmra.mxu0 %v469
      %v533 = vpop.f32.mrf.mxu0
      %v534 = vadd.f32 %v417, %v533
      %535 = vmatmul.f32.gmra.mxu0 %v472
      %v536 = vpop.f32.mrf.mxu0
      %v537 = vadd.f32 %v417, %v536
      %538 = vdwg.mxu0
      %539 = vmatpush.msra.mxu0 0.0
      %540 = vmatpush.msra.mxu0 0.0
      %541 = vmatpush.msra.mxu0 0.0
      %542 = vmatpush.msra.mxu0 0.0
      %543 = vmatpush.msra.mxu0 0.0
      %544 = vmatpush.msra.mxu0 0.0
      %545 = vmatpush.msra.mxu0 0.0
      %546 = vmatpush.msra.mxu0 0.0
      %547 = vmatpush.msra.mxu0 0.0
      %548 = vmatpush.msra.mxu0 0.0
      %549 = vmatpush.msra.mxu0 0.0
      %550 = vmatpush.msra.mxu0 0.0
      %551 = vmatpush.msra.mxu0 0.0
      %552 = vmatpush.msra.mxu0 0.0
      %553 = vmatpush.msra.mxu0 %v344
      %554 = vmatpush.msra.mxu0 %v340
      %555 = vmatmul.f32.gmra.mxu0 %v427
      %v556 = vpop.f32.mrf.mxu0
      %v557 = vadd.f32 %v418, %v556
      %558 = vmatmul.f32.gmra.mxu0 %v430
      %v559 = vpop.f32.mrf.mxu0
      %v560 = vadd.f32 %v418, %v559
      %561 = vmatmul.f32.gmra.mxu0 %v433
      %v562 = vpop.f32.mrf.mxu0
      %v563 = vadd.f32 %v418, %v562
      %564 = vmatmul.f32.gmra.mxu0 %v436
      %v565 = vpop.f32.mrf.mxu0
      %v566 = vadd.f32 %v418, %v565
      %567 = vmatmul.f32.gmra.mxu0 %v439
      %v568 = vpop.f32.mrf.mxu0
      %v569 = vadd.f32 %v418, %v568
      %570 = vmatmul.f32.gmra.mxu0 %v442
      %v571 = vpop.f32.mrf.mxu0
      %v572 = vadd.f32 %v418, %v571
      %573 = vmatmul.f32.gmra.mxu0 %v445
      %v574 = vpop.f32.mrf.mxu0
      %v575 = vadd.f32 %v418, %v574
      %576 = vmatmul.f32.gmra.mxu0 %v448
      %v577 = vpop.f32.mrf.mxu0
      %v578 = vadd.f32 %v418, %v577
      %579 = vmatmul.f32.gmra.mxu0 %v451
      %v580 = vpop.f32.mrf.mxu0
      %v581 = vadd.f32 %v418, %v580
      %582 = vmatmul.f32.gmra.mxu0 %v454
      %v583 = vpop.f32.mrf.mxu0
      %v584 = vadd.f32 %v418, %v583
      %585 = vmatmul.f32.gmra.mxu0 %v457
      %v586 = vpop.f32.mrf.mxu0
      %v587 = vadd.f32 %v418, %v586
      %588 = vmatmul.f32.gmra.mxu0 %v460
      %v589 = vpop.f32.mrf.mxu0
      %v590 = vadd.f32 %v418, %v589
      %591 = vmatmul.f32.gmra.mxu0 %v463
      %v592 = vpop.f32.mrf.mxu0
      %v593 = vadd.f32 %v418, %v592
      %594 = vmatmul.f32.gmra.mxu0 %v466
      %v595 = vpop.f32.mrf.mxu0
      %v596 = vadd.f32 %v418, %v595
      %597 = vmatmul.f32.gmra.mxu0 %v469
      %v598 = vpop.f32.mrf.mxu0
      %v599 = vadd.f32 %v418, %v598
      %600 = vmatmul.f32.gmra.mxu0 %v472
      %v601 = vpop.f32.mrf.mxu0
      %v602 = vadd.f32 %v418, %v601
      %603 = vdwg.mxu0
      %604 = vmatpush.msra.mxu0 0.0
      %605 = vmatpush.msra.mxu0 0.0
      %606 = vmatpush.msra.mxu0 0.0
      %607 = vmatpush.msra.mxu0 0.0
      %608 = vmatpush.msra.mxu0 0.0
      %609 = vmatpush.msra.mxu0 0.0
      %610 = vmatpush.msra.mxu0 0.0
      %611 = vmatpush.msra.mxu0 0.0
      %612 = vmatpush.msra.mxu0 0.0
      %613 = vmatpush.msra.mxu0 0.0
      %614 = vmatpush.msra.mxu0 0.0
      %615 = vmatpush.msra.mxu0 0.0
      %616 = vmatpush.msra.mxu0 0.0
      %617 = vmatpush.msra.mxu0 0.0
      %618 = vmatpush.msra.mxu0 %v345
      %619 = vmatpush.msra.mxu0 %v341
      %620 = vmatmul.f32.gmra.mxu0 %v427
      %v621 = vpop.f32.mrf.mxu0
      %v622 = vadd.f32 %v419, %v621
      %623 = vmatmul.f32.gmra.mxu0 %v430
      %v624 = vpop.f32.mrf.mxu0
      %v625 = vadd.f32 %v419, %v624
      %626 = vmatmul.f32.gmra.mxu0 %v433
      %v627 = vpop.f32.mrf.mxu0
      %v628 = vadd.f32 %v419, %v627
      %629 = vmatmul.f32.gmra.mxu0 %v436
      %v630 = vpop.f32.mrf.mxu0
      %v631 = vadd.f32 %v419, %v630
      %632 = vmatmul.f32.gmra.mxu0 %v439
      %v633 = vpop.f32.mrf.mxu0
      %v634 = vadd.f32 %v419, %v633
      %635 = vmatmul.f32.gmra.mxu0 %v442
      %v636 = vpop.f32.mrf.mxu0
      %v637 = vadd.f32 %v419, %v636
      %638 = vmatmul.f32.gmra.mxu0 %v445
      %v639 = vpop.f32.mrf.mxu0
      %v640 = vadd.f32 %v419, %v639
      %641 = vmatmul.f32.gmra.mxu0 %v448
      %v642 = vpop.f32.mrf.mxu0
      %v643 = vadd.f32 %v419, %v642
      %644 = vmatmul.f32.gmra.mxu0 %v451
      %v645 = vpop.f32.mrf.mxu0
      %v646 = vadd.f32 %v419, %v645
      %647 = vmatmul.f32.gmra.mxu0 %v454
      %v648 = vpop.f32.mrf.mxu0
      %v649 = vadd.f32 %v419, %v648
      %650 = vmatmul.f32.gmra.mxu0 %v457
      %v651 = vpop.f32.mrf.mxu0
      %v652 = vadd.f32 %v419, %v651
      %653 = vmatmul.f32.gmra.mxu0 %v460
      %v654 = vpop.f32.mrf.mxu0
      %v655 = vadd.f32 %v419, %v654
      %656 = vmatmul.f32.gmra.mxu0 %v463
      %v657 = vpop.f32.mrf.mxu0
      %v658 = vadd.f32 %v419, %v657
      %659 = vmatmul.f32.gmra.mxu0 %v466
      %v660 = vpop.f32.mrf.mxu0
      %v661 = vadd.f32 %v419, %v660
      %662 = vmatmul.f32.gmra.mxu0 %v469
      %v663 = vpop.f32.mrf.mxu0
      %v664 = vadd.f32 %v419, %v663
      %665 = vmatmul.f32.gmra.mxu0 %v472
      %v666 = vpop.f32.mrf.mxu0
      %v667 = vadd.f32 %v419, %v666
      %668 = vdwg.mxu0
      %669 = vmatpush.msra.mxu0 0.0
      %670 = vmatpush.msra.mxu0 0.0
      %671 = vmatpush.msra.mxu0 0.0
      %672 = vmatpush.msra.mxu0 0.0
      %673 = vmatpush.msra.mxu0 0.0
      %674 = vmatpush.msra.mxu0 0.0
      %675 = vmatpush.msra.mxu0 0.0
      %676 = vmatpush.msra.mxu0 0.0
      %677 = vmatpush.msra.mxu0 0.0
      %678 = vmatpush.msra.mxu0 0.0
      %679 = vmatpush.msra.mxu0 0.0
      %680 = vmatpush.msra.mxu0 0.0
      %681 = vmatpush.msra.mxu0 0.0
      %682 = vmatpush.msra.mxu0 0.0
      %683 = vmatpush.msra.mxu0 %v346
      %684 = vmatpush.msra.mxu0 %v342
      %685 = vmatmul.f32.gmra.mxu0 %v427
      %v686 = vpop.f32.mrf.mxu0
      %v687 = vadd.f32 %v420, %v686
      %688 = vmatmul.f32.gmra.mxu0 %v430
      %v689 = vpop.f32.mrf.mxu0
      %v690 = vadd.f32 %v420, %v689
      %691 = vmatmul.f32.gmra.mxu0 %v433
      %v692 = vpop.f32.mrf.mxu0
      %v693 = vadd.f32 %v420, %v692
      %694 = vmatmul.f32.gmra.mxu0 %v436
      %v695 = vpop.f32.mrf.mxu0
      %v696 = vadd.f32 %v420, %v695
      %697 = vmatmul.f32.gmra.mxu0 %v439
      %v698 = vpop.f32.mrf.mxu0
      %v699 = vadd.f32 %v420, %v698
      %700 = vmatmul.f32.gmra.mxu0 %v442
      %v701 = vpop.f32.mrf.mxu0
      %v702 = vadd.f32 %v420, %v701
      %703 = vmatmul.f32.gmra.mxu0 %v445
      %v704 = vpop.f32.mrf.mxu0
      %v705 = vadd.f32 %v420, %v704
      %706 = vmatmul.f32.gmra.mxu0 %v448
      %v707 = vpop.f32.mrf.mxu0
      %v708 = vadd.f32 %v420, %v707
      %709 = vmatmul.f32.gmra.mxu0 %v451
      %v710 = vpop.f32.mrf.mxu0
      %v711 = vadd.f32 %v420, %v710
      %712 = vmatmul.f32.gmra.mxu0 %v454
      %v713 = vpop.f32.mrf.mxu0
      %v714 = vadd.f32 %v420, %v713
      %715 = vmatmul.f32.gmra.mxu0 %v457
      %v716 = vpop.f32.mrf.mxu0
      %v717 = vadd.f32 %v420, %v716
      %718 = vmatmul.f32.gmra.mxu0 %v460
      %v719 = vpop.f32.mrf.mxu0
      %v720 = vadd.f32 %v420, %v719
      %721 = vmatmul.f32.gmra.mxu0 %v463
      %v722 = vpop.f32.mrf.mxu0
      %v723 = vadd.f32 %v420, %v722
      %724 = vmatmul.f32.gmra.mxu0 %v466
      %v725 = vpop.f32.mrf.mxu0
      %v726 = vadd.f32 %v420, %v725
      %727 = vmatmul.f32.gmra.mxu0 %v469
      %v728 = vpop.f32.mrf.mxu0
      %v729 = vadd.f32 %v420, %v728
      %730 = vmatmul.f32.gmra.mxu0 %v472
      %v731 = vpop.f32.mrf.mxu0
      %v732 = vadd.f32 %v420, %v731
      %733 = vdwg.mxu0
      %v734 = vmax.f32 %v492, 0.0
      %v735 = vmax.f32 %v557, 0.0
      %v736 = vmax.f32 %v622, 0.0
      %v737 = vmax.f32 %v687, 0.0
      %v738 = vmax.f32 %v495, 0.0
      %v739 = vmax.f32 %v560, 0.0
      %v740 = vmax.f32 %v625, 0.0
      %v741 = vmax.f32 %v690, 0.0
      %v742 = vmax.f32 %v498, 0.0
      %v743 = vmax.f32 %v563, 0.0
      %v744 = vmax.f32 %v628, 0.0
      %v745 = vmax.f32 %v693, 0.0
      %v746 = vmax.f32 %v501, 0.0
      %v747 = vmax.f32 %v566, 0.0
      %v748 = vmax.f32 %v631, 0.0
      %v749 = vmax.f32 %v696, 0.0
      %v750 = vmax.f32 %v504, 0.0
      %v751 = vmax.f32 %v569, 0.0
      %v752 = vmax.f32 %v634, 0.0
      %v753 = vmax.f32 %v699, 0.0
      %v754 = vmax.f32 %v507, 0.0
      %v755 = vmax.f32 %v572, 0.0
      %v756 = vmax.f32 %v637, 0.0
      %v757 = vmax.f32 %v702, 0.0
      %v758 = vmax.f32 %v510, 0.0
      %v759 = vmax.f32 %v575, 0.0
      %v760 = vmax.f32 %v640, 0.0
      %v761 = vmax.f32 %v705, 0.0
      %v762 = vmax.f32 %v513, 0.0
      %v763 = vmax.f32 %v578, 0.0
      %v764 = vmax.f32 %v643, 0.0
      %v765 = vmax.f32 %v708, 0.0
      %v766 = vmax.f32 %v516, 0.0
      %v767 = vmax.f32 %v581, 0.0
      %v768 = vmax.f32 %v646, 0.0
      %v769 = vmax.f32 %v711, 0.0
      %v770 = vmax.f32 %v519, 0.0
      %v771 = vmax.f32 %v584, 0.0
      %v772 = vmax.f32 %v649, 0.0
      %v773 = vmax.f32 %v714, 0.0
      %v774 = vmax.f32 %v522, 0.0
      %v775 = vmax.f32 %v587, 0.0
      %v776 = vmax.f32 %v652, 0.0
      %v777 = vmax.f32 %v717, 0.0
      %v778 = vmax.f32 %v525, 0.0
      %v779 = vmax.f32 %v590, 0.0
      %v780 = vmax.f32 %v655, 0.0
      %v781 = vmax.f32 %v720, 0.0
      %v782 = vmax.f32 %v528, 0.0
      %v783 = vmax.f32 %v593, 0.0
      %v784 = vmax.f32 %v658, 0.0
      %v785 = vmax.f32 %v723, 0.0
      %v786 = vmax.f32 %v531, 0.0
      %v787 = vmax.f32 %v596, 0.0
      %v788 = vmax.f32 %v661, 0.0
      %v789 = vmax.f32 %v726, 0.0
      %v790 = vmax.f32 %v534, 0.0
      %v791 = vmax.f32 %v599, 0.0
      %v792 = vmax.f32 %v664, 0.0
      %v793 = vmax.f32 %v729, 0.0
      %v794 = vmax.f32 %v537, 0.0
      %v795 = vmax.f32 %v602, 0.0
      %v796 = vmax.f32 %v667, 0.0
      %v797 = vmax.f32 %v732, 0.0
      %v798 = vld [vmem:[%s4] sm:$0x1]
      %v800 = vperm.slane %v798, 0
      %802 = vmatpush.msra.mxu0 %v362
      %803 = vmatpush.msra.mxu0 %v361
      %804 = vmatpush.msra.mxu0 %v360
      %805 = vmatpush.msra.mxu0 %v359
      %806 = vmatpush.msra.mxu0 %v358
      %807 = vmatpush.msra.mxu0 %v357
      %808 = vmatpush.msra.mxu0 %v356
      %809 = vmatpush.msra.mxu0 %v355
      %810 = vmatpush.msra.mxu0 %v354
      %811 = vmatpush.msra.mxu0 %v353
      %812 = vmatpush.msra.mxu0 %v352
      %813 = vmatpush.msra.mxu0 %v351
      %814 = vmatpush.msra.mxu0 %v350
      %815 = vmatpush.msra.mxu0 %v349
      %816 = vmatpush.msra.mxu0 %v348
      %817 = vmatpush.msra.mxu0 %v347
      %818 = vmatmul.f32.gmra.mxu0 %v734
      %v819 = vpop.f32.mrf.mxu0
      %v820 = vadd.f32 %v800, %v819
      %821 = vmatmul.f32.gmra.mxu0 %v738
      %v822 = vpop.f32.mrf.mxu0
      %v823 = vadd.f32 %v800, %v822
      %824 = vmatmul.f32.gmra.mxu0 %v742
      %v825 = vpop.f32.mrf.mxu0
      %v826 = vadd.f32 %v800, %v825
      %827 = vmatmul.f32.gmra.mxu0 %v746
      %v828 = vpop.f32.mrf.mxu0
      %v829 = vadd.f32 %v800, %v828
      %830 = vmatmul.f32.gmra.mxu0 %v750
      %v831 = vpop.f32.mrf.mxu0
      %v832 = vadd.f32 %v800, %v831
      %833 = vmatmul.f32.gmra.mxu0 %v754
      %v834 = vpop.f32.mrf.mxu0
      %v835 = vadd.f32 %v800, %v834
      %836 = vmatmul.f32.gmra.mxu0 %v758
      %v837 = vpop.f32.mrf.mxu0
      %v838 = vadd.f32 %v800, %v837
      %839 = vmatmul.f32.gmra.mxu0 %v762
      %v840 = vpop.f32.mrf.mxu0
      %v841 = vadd.f32 %v800, %v840
      %842 = vmatmul.f32.gmra.mxu0 %v766
      %v843 = vpop.f32.mrf.mxu0
      %v844 = vadd.f32 %v800, %v843
      %845 = vmatmul.f32.gmra.mxu0 %v770
      %v846 = vpop.f32.mrf.mxu0
      %v847 = vadd.f32 %v800, %v846
      %848 = vmatmul.f32.gmra.mxu0 %v774
      %v849 = vpop.f32.mrf.mxu0
      %v850 = vadd.f32 %v800, %v849
      %851 = vmatmul.f32.gmra.mxu0 %v778
      %v852 = vpop.f32.mrf.mxu0
      %v853 = vadd.f32 %v800, %v852
      %854 = vmatmul.f32.gmra.mxu0 %v782
      %v855 = vpop.f32.mrf.mxu0
      %v856 = vadd.f32 %v800, %v855
      %857 = vmatmul.f32.gmra.mxu0 %v786
      %v858 = vpop.f32.mrf.mxu0
      %v859 = vadd.f32 %v800, %v858
      %860 = vmatmul.f32.gmra.mxu0 %v790
      %v861 = vpop.f32.mrf.mxu0
      %v862 = vadd.f32 %v800, %v861
      %863 = vmatmul.f32.gmra.mxu0 %v794
      %v864 = vpop.f32.mrf.mxu0
      %v865 = vadd.f32 %v800, %v864
      %866 = vdwg.mxu0
      %867 = vmatpush.msra.mxu0 %v378
      %868 = vmatpush.msra.mxu0 %v377
      %869 = vmatpush.msra.mxu0 %v376
      %870 = vmatpush.msra.mxu0 %v375
      %871 = vmatpush.msra.mxu0 %v374
      %872 = vmatpush.msra.mxu0 %v373
      %873 = vmatpush.msra.mxu0 %v372
      %874 = vmatpush.msra.mxu0 %v371
      %875 = vmatpush.msra.mxu0 %v370
      %876 = vmatpush.msra.mxu0 %v369
      %877 = vmatpush.msra.mxu0 %v368
      %878 = vmatpush.msra.mxu0 %v367
      %879 = vmatpush.msra.mxu0 %v366
      %880 = vmatpush.msra.mxu0 %v365
      %881 = vmatpush.msra.mxu0 %v364
      %882 = vmatpush.msra.mxu0 %v363
      %883 = vmatmul.f32.gmra.mxu0 %v735
      %v884 = vpop.f32.mrf.mxu0
      %v885 = vadd.f32 %v820, %v884
      %886 = vmatmul.f32.gmra.mxu0 %v739
      %v887 = vpop.f32.mrf.mxu0
      %v888 = vadd.f32 %v823, %v887
      %889 = vmatmul.f32.gmra.mxu0 %v743
      %v890 = vpop.f32.mrf.mxu0
      %v891 = vadd.f32 %v826, %v890
      %892 = vmatmul.f32.gmra.mxu0 %v747
      %v893 = vpop.f32.mrf.mxu0
      %v894 = vadd.f32 %v829, %v893
      %895 = vmatmul.f32.gmra.mxu0 %v751
      %v896 = vpop.f32.mrf.mxu0
      %v897 = vadd.f32 %v832, %v896
      %898 = vmatmul.f32.gmra.mxu0 %v755
      %v899 = vpop.f32.mrf.mxu0
      %v900 = vadd.f32 %v835, %v899
      %901 = vmatmul.f32.gmra.mxu0 %v759
      %v902 = vpop.f32.mrf.mxu0
      %v903 = vadd.f32 %v838, %v902
      %904 = vmatmul.f32.gmra.mxu0 %v763
      %v905 = vpop.f32.mrf.mxu0
      %v906 = vadd.f32 %v841, %v905
      %907 = vmatmul.f32.gmra.mxu0 %v767
      %v908 = vpop.f32.mrf.mxu0
      %v909 = vadd.f32 %v844, %v908
      %910 = vmatmul.f32.gmra.mxu0 %v771
      %v911 = vpop.f32.mrf.mxu0
      %v912 = vadd.f32 %v847, %v911
      %913 = vmatmul.f32.gmra.mxu0 %v775
      %v914 = vpop.f32.mrf.mxu0
      %v915 = vadd.f32 %v850, %v914
      %916 = vmatmul.f32.gmra.mxu0 %v779
      %v917 = vpop.f32.mrf.mxu0
      %v918 = vadd.f32 %v853, %v917
      %919 = vmatmul.f32.gmra.mxu0 %v783
      %v920 = vpop.f32.mrf.mxu0
      %v921 = vadd.f32 %v856, %v920
      %922 = vmatmul.f32.gmra.mxu0 %v787
      %v923 = vpop.f32.mrf.mxu0
      %v924 = vadd.f32 %v859, %v923
      %925 = vmatmul.f32.gmra.mxu0 %v791
      %v926 = vpop.f32.mrf.mxu0
      %v927 = vadd.f32 %v862, %v926
      %928 = vmatmul.f32.gmra.mxu0 %v795
      %v929 = vpop.f32.mrf.mxu0
      %v930 = vadd.f32 %v865, %v929
      %931 = vdwg.mxu0
      %932 = vmatpush.msra.mxu0 %v394
      %933 = vmatpush.msra.mxu0 %v393
      %934 = vmatpush.msra.mxu0 %v392
      %935 = vmatpush.msra.mxu0 %v391
      %936 = vmatpush.msra.mxu0 %v390
      %937 = vmatpush.msra.mxu0 %v389
      %938 = vmatpush.msra.mxu0 %v388
      %939 = vmatpush.msra.mxu0 %v387
      %940 = vmatpush.msra.mxu0 %v386
      %941 = vmatpush.msra.mxu0 %v385
      %942 = vmatpush.msra.mxu0 %v384
      %943 = vmatpush.msra.mxu0 %v383
      %944 = vmatpush.msra.mxu0 %v382
      %945 = vmatpush.msra.mxu0 %v381
      %946 = vmatpush.msra.mxu0 %v380
      %947 = vmatpush.msra.mxu0 %v379
      %948 = vmatmul.f32.gmra.mxu0 %v736
      %v949 = vpop.f32.mrf.mxu0
      %v950 = vadd.f32 %v885, %v949
      %951 = vmatmul.f32.gmra.mxu0 %v740
      %v952 = vpop.f32.mrf.mxu0
      %v953 = vadd.f32 %v888, %v952
      %954 = vmatmul.f32.gmra.mxu0 %v744
      %v955 = vpop.f32.mrf.mxu0
      %v956 = vadd.f32 %v891, %v955
      %957 = vmatmul.f32.gmra.mxu0 %v748
      %v958 = vpop.f32.mrf.mxu0
      %v959 = vadd.f32 %v894, %v958
      %960 = vmatmul.f32.gmra.mxu0 %v752
      %v961 = vpop.f32.mrf.mxu0
      %v962 = vadd.f32 %v897, %v961
      %963 = vmatmul.f32.gmra.mxu0 %v756
      %v964 = vpop.f32.mrf.mxu0
      %v965 = vadd.f32 %v900, %v964
      %966 = vmatmul.f32.gmra.mxu0 %v760
      %v967 = vpop.f32.mrf.mxu0
      %v968 = vadd.f32 %v903, %v967
      %969 = vmatmul.f32.gmra.mxu0 %v764
      %v970 = vpop.f32.mrf.mxu0
      %v971 = vadd.f32 %v906, %v970
      %972 = vmatmul.f32.gmra.mxu0 %v768
      %v973 = vpop.f32.mrf.mxu0
      %v974 = vadd.f32 %v909, %v973
      %975 = vmatmul.f32.gmra.mxu0 %v772
      %v976 = vpop.f32.mrf.mxu0
      %v977 = vadd.f32 %v912, %v976
      %978 = vmatmul.f32.gmra.mxu0 %v776
      %v979 = vpop.f32.mrf.mxu0
      %v980 = vadd.f32 %v915, %v979
      %981 = vmatmul.f32.gmra.mxu0 %v780
      %v982 = vpop.f32.mrf.mxu0
      %v983 = vadd.f32 %v918, %v982
      %984 = vmatmul.f32.gmra.mxu0 %v784
      %v985 = vpop.f32.mrf.mxu0
      %v986 = vadd.f32 %v921, %v985
      %987 = vmatmul.f32.gmra.mxu0 %v788
      %v988 = vpop.f32.mrf.mxu0
      %v989 = vadd.f32 %v924, %v988
      %990 = vmatmul.f32.gmra.mxu0 %v792
      %v991 = vpop.f32.mrf.mxu0
      %v992 = vadd.f32 %v927, %v991
      %993 = vmatmul.f32.gmra.mxu0 %v796
      %v994 = vpop.f32.mrf.mxu0
      %v995 = vadd.f32 %v930, %v994
      %996 = vdwg.mxu0
      %997 = vmatpush.msra.mxu0 %v410
      %998 = vmatpush.msra.mxu0 %v409
      %999 = vmatpush.msra.mxu0 %v408
      %1000 = vmatpush.msra.mxu0 %v407
      %1001 = vmatpush.msra.mxu0 %v406
      %1002 = vmatpush.msra.mxu0 %v405
      %1003 = vmatpush.msra.mxu0 %v404
      %1004 = vmatpush.msra.mxu0 %v403
      %1005 = vmatpush.msra.mxu0 %v402
      %1006 = vmatpush.msra.mxu0 %v401
      %1007 = vmatpush.msra.mxu0 %v400
      %1008 = vmatpush.msra.mxu0 %v399
      %1009 = vmatpush.msra.mxu0 %v398
      %1010 = vmatpush.msra.mxu0 %v397
      %1011 = vmatpush.msra.mxu0 %v396
      %1012 = vmatpush.msra.mxu0 %v395
      %1013 = vmatmul.f32.gmra.mxu0 %v737
      %v1014 = vpop.f32.mrf.mxu0
      %v1015 = vadd.f32 %v950, %v1014
      %1016 = vmatmul.f32.gmra.mxu0 %v741
      %v1017 = vpop.f32.mrf.mxu0
      %v1018 = vadd.f32 %v953, %v1017
      %1019 = vmatmul.f32.gmra.mxu0 %v745
      %v1020 = vpop.f32.mrf.mxu0
      %v1021 = vadd.f32 %v956, %v1020
      %1022 = vmatmul.f32.gmra.mxu0 %v749
      %v1023 = vpop.f32.mrf.mxu0
      %v1024 = vadd.f32 %v959, %v1023
      %1025 = vmatmul.f32.gmra.mxu0 %v753
      %v1026 = vpop.f32.mrf.mxu0
      %v1027 = vadd.f32 %v962, %v1026
      %1028 = vmatmul.f32.gmra.mxu0 %v757
      %v1029 = vpop.f32.mrf.mxu0
      %v1030 = vadd.f32 %v965, %v1029
      %1031 = vmatmul.f32.gmra.mxu0 %v761
      %v1032 = vpop.f32.mrf.mxu0
      %v1033 = vadd.f32 %v968, %v1032
      %1034 = vmatmul.f32.gmra.mxu0 %v765
      %v1035 = vpop.f32.mrf.mxu0
      %v1036 = vadd.f32 %v971, %v1035
      %1037 = vmatmul.f32.gmra.mxu0 %v769
      %v1038 = vpop.f32.mrf.mxu0
      %v1039 = vadd.f32 %v974, %v1038
      %1040 = vmatmul.f32.gmra.mxu0 %v773
      %v1041 = vpop.f32.mrf.mxu0
      %v1042 = vadd.f32 %v977, %v1041
      %1043 = vmatmul.f32.gmra.mxu0 %v777
      %v1044 = vpop.f32.mrf.mxu0
      %v1045 = vadd.f32 %v980, %v1044
      %1046 = vmatmul.f32.gmra.mxu0 %v781
      %v1047 = vpop.f32.mrf.mxu0
      %v1048 = vadd.f32 %v983, %v1047
      %1049 = vmatmul.f32.gmra.mxu0 %v785
      %v1050 = vpop.f32.mrf.mxu0
      %v1051 = vadd.f32 %v986, %v1050
      %1052 = vmatmul.f32.gmra.mxu0 %v789
      %v1053 = vpop.f32.mrf.mxu0
      %v1054 = vadd.f32 %v989, %v1053
      %1055 = vmatmul.f32.gmra.mxu0 %v793
      %v1056 = vpop.f32.mrf.mxu0
      %v1057 = vadd.f32 %v992, %v1056
      %1058 = vmatmul.f32.gmra.mxu0 %v797
      %v1059 = vpop.f32.mrf.mxu0
      %v1060 = vadd.f32 %v995, %v1059
      %1061 = vdwg.mxu0
      %v1062 = vtanh.pop %v1015
      %v1063 = vtanh.pop %v1018
      %v1064 = vtanh.pop %v1021
      %v1065 = vtanh.pop %v1024
      %v1066 = vtanh.pop %v1027
      %v1067 = vtanh.pop %v1030
      %v1068 = vtanh.pop %v1033
      %v1069 = vtanh.pop %v1036
      %v1070 = vtanh.pop %v1039
      %v1071 = vtanh.pop %v1042
      %v1072 = vtanh.pop %v1045
      %v1073 = vtanh.pop %v1048
      %v1074 = vtanh.pop %v1051
      %v1075 = vtanh.pop %v1054
      %v1076 = vtanh.pop %v1057
      %v1077 = vtanh.pop %v1060
      %v1078 = vmul.f32 %v1062, 2.0
      %v1079 = vmul.f32 %v1063, 2.0
      %v1080 = vmul.f32 %v1064, 2.0
      %v1081 = vmul.f32 %v1065, 2.0
      %v1082 = vmul.f32 %v1066, 2.0
      %v1083 = vmul.f32 %v1067, 2.0
      %v1084 = vmul.f32 %v1068, 2.0
      %v1085 = vmul.f32 %v1069, 2.0
      %v1086 = vmul.f32 %v1070, 2.0
      %v1087 = vmul.f32 %v1071, 2.0
      %v1088 = vmul.f32 %v1072, 2.0
      %v1089 = vmul.f32 %v1073, 2.0
      %v1090 = vmul.f32 %v1074, 2.0
      %v1091 = vmul.f32 %v1075, 2.0
      %v1092 = vmul.f32 %v1076, 2.0
      %v1093 = vmul.f32 %v1077, 2.0
      %v1094 = vmul.f32 %v1078, 1.442695
      %v1095 = vpow.pop %v1094
      %v1096 = vmul.f32 %v1079, 1.442695
      %v1097 = vpow.pop %v1096
      %v1098 = vmul.f32 %v1080, 1.442695
      %v1099 = vpow.pop %v1098
      %v1100 = vmul.f32 %v1081, 1.442695
      %v1101 = vpow.pop %v1100
      %v1102 = vmul.f32 %v1082, 1.442695
      %v1103 = vpow.pop %v1102
      %v1104 = vmul.f32 %v1083, 1.442695
      %v1105 = vpow.pop %v1104
      %v1106 = vmul.f32 %v1084, 1.442695
      %v1107 = vpow.pop %v1106
      %v1108 = vmul.f32 %v1085, 1.442695
      %v1109 = vpow.pop %v1108
      %v1110 = vmul.f32 %v1086, 1.442695
      %v1111 = vpow.pop %v1110
      %v1112 = vmul.f32 %v1087, 1.442695
      %v1113 = vpow.pop %v1112
      %v1114 = vmul.f32 %v1088, 1.442695
      %v1115 = vpow.pop %v1114
      %v1116 = vmul.f32 %v1089, 1.442695
      %v1117 = vpow.pop %v1116
      %v1118 = vmul.f32 %v1090, 1.442695
      %v1119 = vpow.pop %v1118
      %v1120 = vmul.f32 %v1091, 1.442695
      %v1121 = vpow.pop %v1120
      %v1122 = vmul.f32 %v1092, 1.442695
      %v1123 = vpow.pop %v1122
      %v1124 = vmul.f32 %v1093, 1.442695
      %v1125 = vpow.pop %v1124
      %1142 = vrot.lane.b32.xlu0 %v1095, 16
      %v1143 = vpop.permute.xlu0 %1142
      %1144 = vrot.lane.b32.xlu0 %v1097, 16
      %v1145 = vpop.permute.xlu0 %1144
      %1146 = vrot.lane.b32.xlu0 %v1099, 16
      %v1147 = vpop.permute.xlu0 %1146
      %1148 = vrot.lane.b32.xlu0 %v1101, 16
      %v1149 = vpop.permute.xlu0 %1148
      %1150 = vrot.lane.b32.xlu0 %v1103, 16
      %v1151 = vpop.permute.xlu0 %1150
      %1152 = vrot.lane.b32.xlu0 %v1105, 16
      %v1153 = vpop.permute.xlu0 %1152
      %1154 = vrot.lane.b32.xlu0 %v1107, 16
      %v1155 = vpop.permute.xlu0 %1154
      %1156 = vrot.lane.b32.xlu0 %v1109, 16
      %v1157 = vpop.permute.xlu0 %1156
      %1158 = vrot.lane.b32.xlu0 %v1111, 16
      %v1159 = vpop.permute.xlu0 %1158
      %1160 = vrot.lane.b32.xlu0 %v1113, 16
      %v1161 = vpop.permute.xlu0 %1160
      %1162 = vrot.lane.b32.xlu0 %v1115, 16
      %v1163 = vpop.permute.xlu0 %1162
      %1164 = vrot.lane.b32.xlu0 %v1117, 16
      %v1165 = vpop.permute.xlu0 %1164
      %1166 = vrot.lane.b32.xlu0 %v1119, 16
      %v1167 = vpop.permute.xlu0 %1166
      %1168 = vrot.lane.b32.xlu0 %v1121, 16
      %v1169 = vpop.permute.xlu0 %1168
      %1170 = vrot.lane.b32.xlu0 %v1123, 16
      %v1171 = vpop.permute.xlu0 %1170
      %1172 = vrot.lane.b32.xlu0 %v1125, 16
      %v1173 = vpop.permute.xlu0 %1172
      %v1190 = vmul.f32 %v323, %v1143
      %v1191 = vmul.f32 %v324, %v1145
      %v1192 = vmul.f32 %v325, %v1147
      %v1193 = vmul.f32 %v326, %v1149
      %v1194 = vmul.f32 %v327, %v1151
      %v1195 = vmul.f32 %v328, %v1153
      %v1196 = vmul.f32 %v329, %v1155
      %v1197 = vmul.f32 %v330, %v1157
      %v1198 = vmul.f32 %v331, %v1159
      %v1199 = vmul.f32 %v332, %v1161
      %v1200 = vmul.f32 %v333, %v1163
      %v1201 = vmul.f32 %v334, %v1165
      %v1202 = vmul.f32 %v335, %v1167
      %v1203 = vmul.f32 %v336, %v1169
      %v1204 = vmul.f32 %v337, %v1171
      %v1205 = vmul.f32 %v338, %v1173
      %v1206 = vadd.f32 %v1190, %v1015
      %v1207 = vadd.f32 %v1191, %v1018
      %v1208 = vadd.f32 %v1192, %v1021
      %v1209 = vadd.f32 %v1193, %v1024
      %v1210 = vadd.f32 %v1194, %v1027
      %v1211 = vadd.f32 %v1195, %v1030
      %v1212 = vadd.f32 %v1196, %v1033
      %v1213 = vadd.f32 %v1197, %v1036
      %v1214 = vadd.f32 %v1198, %v1039
      %v1215 = vadd.f32 %v1199, %v1042
      %v1216 = vadd.f32 %v1200, %v1045
      %v1217 = vadd.f32 %v1201, %v1048
      %v1218 = vadd.f32 %v1202, %v1051
      %v1219 = vadd.f32 %v1203, %v1054
      %v1220 = vadd.f32 %v1204, %v1057
      %v1221 = vadd.f32 %v1205, %v1060
      %v1222 = vsel %vm425, %v1078, 0.0
      %1223 = vadd.xlane.f32.xlu0 %v1222
      %v1224 = vpop.xlane.xlu0 %1223
      %v1225 = vsel %vm425, %v1079, 0.0
      %1226 = vadd.xlane.f32.xlu0 %v1225
      %v1227 = vpop.xlane.xlu0 %1226
      %v1228 = vsel %vm425, %v1080, 0.0
      %1229 = vadd.xlane.f32.xlu0 %v1228
      %v1230 = vpop.xlane.xlu0 %1229
      %v1231 = vsel %vm425, %v1081, 0.0
      %1232 = vadd.xlane.f32.xlu0 %v1231
      %v1233 = vpop.xlane.xlu0 %1232
      %v1234 = vsel %vm425, %v1082, 0.0
      %1235 = vadd.xlane.f32.xlu0 %v1234
      %v1236 = vpop.xlane.xlu0 %1235
      %v1237 = vsel %vm425, %v1083, 0.0
      %1238 = vadd.xlane.f32.xlu0 %v1237
      %v1239 = vpop.xlane.xlu0 %1238
      %v1240 = vsel %vm425, %v1084, 0.0
      %1241 = vadd.xlane.f32.xlu0 %v1240
      %v1242 = vpop.xlane.xlu0 %1241
      %v1243 = vsel %vm425, %v1085, 0.0
      %1244 = vadd.xlane.f32.xlu0 %v1243
      %v1245 = vpop.xlane.xlu0 %1244
      %v1246 = vsel %vm425, %v1086, 0.0
      %1247 = vadd.xlane.f32.xlu0 %v1246
      %v1248 = vpop.xlane.xlu0 %1247
      %v1249 = vsel %vm425, %v1087, 0.0
      %1250 = vadd.xlane.f32.xlu0 %v1249
      %v1251 = vpop.xlane.xlu0 %1250
      %v1252 = vsel %vm425, %v1088, 0.0
      %1253 = vadd.xlane.f32.xlu0 %v1252
      %v1254 = vpop.xlane.xlu0 %1253
      %v1255 = vsel %vm425, %v1089, 0.0
      %1256 = vadd.xlane.f32.xlu0 %v1255
      %v1257 = vpop.xlane.xlu0 %1256
      %v1258 = vsel %vm425, %v1090, 0.0
      %1259 = vadd.xlane.f32.xlu0 %v1258
      %v1260 = vpop.xlane.xlu0 %1259
      %v1261 = vsel %vm425, %v1091, 0.0
      %1262 = vadd.xlane.f32.xlu0 %v1261
      %v1263 = vpop.xlane.xlu0 %1262
      %v1264 = vsel %vm425, %v1092, 0.0
      %1265 = vadd.xlane.f32.xlu0 %v1264
      %v1266 = vpop.xlane.xlu0 %1265
      %v1267 = vsel %vm425, %v1093, 0.0
      %1268 = vadd.xlane.f32.xlu0 %v1267
      %v1269 = vpop.xlane.xlu0 %1268
      %v1270 = vadd.f32 %v1224, 0.0
      %v1271 = vadd.f32 %v1227, 0.0
      %v1272 = vadd.f32 %v1230, 0.0
      %v1273 = vadd.f32 %v1233, 0.0
      %v1274 = vadd.f32 %v1236, 0.0
      %v1275 = vadd.f32 %v1239, 0.0
      %v1276 = vadd.f32 %v1242, 0.0
      %v1277 = vadd.f32 %v1245, 0.0
      %v1278 = vadd.f32 %v1248, 0.0
      %v1279 = vadd.f32 %v1251, 0.0
      %v1280 = vadd.f32 %v1254, 0.0
      %v1281 = vadd.f32 %v1257, 0.0
      %v1282 = vadd.f32 %v1260, 0.0
      %v1283 = vadd.f32 %v1263, 0.0
      %v1284 = vadd.f32 %v1266, 0.0
      %v1285 = vadd.f32 %v1269, 0.0
      %v1286 = vsel %vm425, %v323, %v1206
      %v1287 = vsel %vm425, %v324, %v1207
      %v1288 = vsel %vm425, %v325, %v1208
      %v1289 = vsel %vm425, %v326, %v1209
      %v1290 = vsel %vm425, %v327, %v1210
      %v1291 = vsel %vm425, %v328, %v1211
      %v1292 = vsel %vm425, %v329, %v1212
      %v1293 = vsel %vm425, %v330, %v1213
      %v1294 = vsel %vm425, %v331, %v1214
      %v1295 = vsel %vm425, %v332, %v1215
      %v1296 = vsel %vm425, %v333, %v1216
      %v1297 = vsel %vm425, %v334, %v1217
      %v1298 = vsel %vm425, %v335, %v1218
      %v1299 = vsel %vm425, %v336, %v1219
      %v1300 = vsel %vm425, %v337, %v1220
      %v1301 = vsel %vm425, %v338, %v1221
      %v1302 = vld [vmem:[%s6] sm:$0x1]
      %v1304 = vperm.slane %v1302, 0
      %vm1306 = vcmask 261120
      %v1308 = vsel %vm1306, %v1286, 0
      %v1311 = vsel %vm1306, %v1287, 0
      %v1314 = vsel %vm1306, %v1288, 0
      %v1317 = vsel %vm1306, %v1289, 0
      %v1320 = vsel %vm1306, %v1290, 0
      %v1323 = vsel %vm1306, %v1291, 0
      %v1326 = vsel %vm1306, %v1292, 0
      %v1329 = vsel %vm1306, %v1293, 0
      %v1332 = vsel %vm1306, %v1294, 0
      %v1335 = vsel %vm1306, %v1295, 0
      %v1338 = vsel %vm1306, %v1296, 0
      %v1341 = vsel %vm1306, %v1297, 0
      %v1344 = vsel %vm1306, %v1298, 0
      %v1347 = vsel %vm1306, %v1299, 0
      %v1350 = vsel %vm1306, %v1300, 0
      %v1353 = vsel %vm1306, %v1301, 0
      %1355 = vmatpush.msra.mxu0 0.0
      %1356 = vmatpush.msra.mxu0 0.0
      %1357 = vmatpush.msra.mxu0 0.0
      %1358 = vmatpush.msra.mxu0 0.0
      %1359 = vmatpush.msra.mxu0 0.0
      %1360 = vmatpush.msra.mxu0 0.0
      %1361 = vmatpush.msra.mxu0 0.0
      %1362 = vmatpush.msra.mxu0 0.0
      %1363 = vmatpush.msra.mxu0 0.0
      %1364 = vmatpush.msra.mxu0 0.0
      %1365 = vmatpush.msra.mxu0 0.0
      %1366 = vmatpush.msra.mxu0 0.0
      %1367 = vmatpush.msra.mxu0 %v414
      %1368 = vmatpush.msra.mxu0 %v413
      %1369 = vmatpush.msra.mxu0 %v412
      %1370 = vmatpush.msra.mxu0 %v411
      %1371 = vmatmul.f32.gmra.mxu0 %v1308
      %v1372 = vpop.f32.mrf.mxu0
      %v1373 = vadd.f32 %v1304, %v1372
      %1374 = vmatmul.f32.gmra.mxu0 %v1311
      %v1375 = vpop.f32.mrf.mxu0
      %v1376 = vadd.f32 %v1304, %v1375
      %1377 = vmatmul.f32.gmra.mxu0 %v1314
      %v1378 = vpop.f32.mrf.mxu0
      %v1379 = vadd.f32 %v1304, %v1378
      %1380 = vmatmul.f32.gmra.mxu0 %v1317
      %v1381 = vpop.f32.mrf.mxu0
      %v1382 = vadd.f32 %v1304, %v1381
      %1383 = vmatmul.f32.gmra.mxu0 %v1320
      %v1384 = vpop.f32.mrf.mxu0
      %v1385 = vadd.f32 %v1304, %v1384
      %1386 = vmatmul.f32.gmra.mxu0 %v1323
      %v1387 = vpop.f32.mrf.mxu0
      %v1388 = vadd.f32 %v1304, %v1387
      %1389 = vmatmul.f32.gmra.mxu0 %v1326
      %v1390 = vpop.f32.mrf.mxu0
      %v1391 = vadd.f32 %v1304, %v1390
      %1392 = vmatmul.f32.gmra.mxu0 %v1329
      %v1393 = vpop.f32.mrf.mxu0
      %v1394 = vadd.f32 %v1304, %v1393
      %1395 = vmatmul.f32.gmra.mxu0 %v1332
      %v1396 = vpop.f32.mrf.mxu0
      %v1397 = vadd.f32 %v1304, %v1396
      %1398 = vmatmul.f32.gmra.mxu0 %v1335
      %v1399 = vpop.f32.mrf.mxu0
      %v1400 = vadd.f32 %v1304, %v1399
      %1401 = vmatmul.f32.gmra.mxu0 %v1338
      %v1402 = vpop.f32.mrf.mxu0
      %v1403 = vadd.f32 %v1304, %v1402
      %1404 = vmatmul.f32.gmra.mxu0 %v1341
      %v1405 = vpop.f32.mrf.mxu0
      %v1406 = vadd.f32 %v1304, %v1405
      %1407 = vmatmul.f32.gmra.mxu0 %v1344
      %v1408 = vpop.f32.mrf.mxu0
      %v1409 = vadd.f32 %v1304, %v1408
      %1410 = vmatmul.f32.gmra.mxu0 %v1347
      %v1411 = vpop.f32.mrf.mxu0
      %v1412 = vadd.f32 %v1304, %v1411
      %1413 = vmatmul.f32.gmra.mxu0 %v1350
      %v1414 = vpop.f32.mrf.mxu0
      %v1415 = vadd.f32 %v1304, %v1414
      %1416 = vmatmul.f32.gmra.mxu0 %v1353
      %v1417 = vpop.f32.mrf.mxu0
      %v1418 = vadd.f32 %v1304, %v1417
      %1419 = vdwg.mxu0
      %s1420 = scalar_lea.vmem %s1, 64
      %v1421 = vld [vmem:[%s1420] sm:$0xff]
      %v1422 = vld [vmem:[%s1420 + $0x8] sm:$0xff]
      %v1423 = vld [vmem:[%s1420 + $0x10] sm:$0xff]
      %v1424 = vld [vmem:[%s1420 + $0x18] sm:$0xff]
      %v1425 = vld [vmem:[%s1420 + $0x20] sm:$0xff]
      %v1426 = vld [vmem:[%s1420 + $0x28] sm:$0xff]
      %v1427 = vld [vmem:[%s1420 + $0x30] sm:$0xff]
      %v1428 = vld [vmem:[%s1420 + $0x38] sm:$0xff]
      %s1429 = scalar_lea.vmem %s3, 512
      %v1430 = vld [vmem:[%s1429] sm:$0xff]
      %v1431 = vld [vmem:[%s1429 + $0x8] sm:$0xff]
      %v1432 = vld [vmem:[%s1429 + $0x10] sm:$0xff]
      %v1433 = vld [vmem:[%s1429 + $0x18] sm:$0xff]
      %v1434 = vld [vmem:[%s1429 + $0x20] sm:$0xff]
      %v1435 = vld [vmem:[%s1429 + $0x28] sm:$0xff]
      %v1436 = vld [vmem:[%s1429 + $0x30] sm:$0xff]
      %v1437 = vld [vmem:[%s1429 + $0x38] sm:$0xff]
      %v1438 = vld [vmem:[%s1429 + $0x40] sm:$0xff]
      %v1439 = vld [vmem:[%s1429 + $0x48] sm:$0xff]
      %v1440 = vld [vmem:[%s1429 + $0x50] sm:$0xff]
      %v1441 = vld [vmem:[%s1429 + $0x58] sm:$0xff]
      %v1442 = vld [vmem:[%s1429 + $0x60] sm:$0xff]
      %v1443 = vld [vmem:[%s1429 + $0x68] sm:$0xff]
      %v1444 = vld [vmem:[%s1429 + $0x70] sm:$0xff]
      %v1445 = vld [vmem:[%s1429 + $0x78] sm:$0xff]
      %v1446 = vld [vmem:[%s1429 + $0x80] sm:$0xff]
      %v1447 = vld [vmem:[%s1429 + $0x88] sm:$0xff]
      %v1448 = vld [vmem:[%s1429 + $0x90] sm:$0xff]
      %v1449 = vld [vmem:[%s1429 + $0x98] sm:$0xff]
      %v1450 = vld [vmem:[%s1429 + $0xa0] sm:$0xff]
      %v1451 = vld [vmem:[%s1429 + $0xa8] sm:$0xff]
      %v1452 = vld [vmem:[%s1429 + $0xb0] sm:$0xff]
      %v1453 = vld [vmem:[%s1429 + $0xb8] sm:$0xff]
      %v1454 = vld [vmem:[%s1429 + $0xc0] sm:$0xff]
      %v1455 = vld [vmem:[%s1429 + $0xc8] sm:$0xff]
      %v1456 = vld [vmem:[%s1429 + $0xd0] sm:$0xff]
      %v1457 = vld [vmem:[%s1429 + $0xd8] sm:$0xff]
      %v1458 = vld [vmem:[%s1429 + $0xe0] sm:$0xff]
      %v1459 = vld [vmem:[%s1429 + $0xe8] sm:$0xff]
      %v1460 = vld [vmem:[%s1429 + $0xf0] sm:$0xff]
      %v1461 = vld [vmem:[%s1429 + $0xf8] sm:$0xff]
      %v1462 = vld [vmem:[%s1429 + $0x100] sm:$0xff]
      %v1463 = vld [vmem:[%s1429 + $0x108] sm:$0xff]
      %v1464 = vld [vmem:[%s1429 + $0x110] sm:$0xff]
      %v1465 = vld [vmem:[%s1429 + $0x118] sm:$0xff]
      %v1466 = vld [vmem:[%s1429 + $0x120] sm:$0xff]
      %v1467 = vld [vmem:[%s1429 + $0x128] sm:$0xff]
      %v1468 = vld [vmem:[%s1429 + $0x130] sm:$0xff]
      %v1469 = vld [vmem:[%s1429 + $0x138] sm:$0xff]
      %v1470 = vld [vmem:[%s1429 + $0x140] sm:$0xff]
      %v1471 = vld [vmem:[%s1429 + $0x148] sm:$0xff]
      %v1472 = vld [vmem:[%s1429 + $0x150] sm:$0xff]
      %v1473 = vld [vmem:[%s1429 + $0x158] sm:$0xff]
      %v1474 = vld [vmem:[%s1429 + $0x160] sm:$0xff]
      %v1475 = vld [vmem:[%s1429 + $0x168] sm:$0xff]
      %v1476 = vld [vmem:[%s1429 + $0x170] sm:$0xff]
      %v1477 = vld [vmem:[%s1429 + $0x178] sm:$0xff]
      %v1478 = vld [vmem:[%s1429 + $0x180] sm:$0xff]
      %v1479 = vld [vmem:[%s1429 + $0x188] sm:$0xff]
      %v1480 = vld [vmem:[%s1429 + $0x190] sm:$0xff]
      %v1481 = vld [vmem:[%s1429 + $0x198] sm:$0xff]
      %v1482 = vld [vmem:[%s1429 + $0x1a0] sm:$0xff]
      %v1483 = vld [vmem:[%s1429 + $0x1a8] sm:$0xff]
      %v1484 = vld [vmem:[%s1429 + $0x1b0] sm:$0xff]
      %v1485 = vld [vmem:[%s1429 + $0x1b8] sm:$0xff]
      %v1486 = vld [vmem:[%s1429 + $0x1c0] sm:$0xff]
      %v1487 = vld [vmem:[%s1429 + $0x1c8] sm:$0xff]
      %v1488 = vld [vmem:[%s1429 + $0x1d0] sm:$0xff]
      %v1489 = vld [vmem:[%s1429 + $0x1d8] sm:$0xff]
      %v1490 = vld [vmem:[%s1429 + $0x1e0] sm:$0xff]
      %v1491 = vld [vmem:[%s1429 + $0x1e8] sm:$0xff]
      %v1492 = vld [vmem:[%s1429 + $0x1f0] sm:$0xff]
      %v1493 = vld [vmem:[%s1429 + $0x1f8] sm:$0xff]
      %s1494 = scalar_lea.vmem %s5, 32
      %v1495 = vld [vmem:[%s1494] sm:$0xff]
      %v1496 = vld [vmem:[%s1494 + $0x8] sm:$0xff]
      %v1497 = vld [vmem:[%s1494 + $0x10] sm:$0xff]
      %v1498 = vld [vmem:[%s1494 + $0x18] sm:$0xff]
      %s1499 = scalar_lea.vmem %s2, 4
      %v1500 = vld [vmem:[%s1499] sm:$0xf]
      %v1502 = vperm.slane %v1500, 0
      %v1503 = vperm.slane %v1500, 1
      %v1504 = vperm.slane %v1500, 2
      %v1505 = vperm.slane %v1500, 3
      %v1511 = vsel %vm425, %v1373, 0
      %v1514 = vsel %vm425, %v1376, 0
      %v1517 = vsel %vm425, %v1379, 0
      %v1520 = vsel %vm425, %v1382, 0
      %v1523 = vsel %vm425, %v1385, 0
      %v1526 = vsel %vm425, %v1388, 0
      %v1529 = vsel %vm425, %v1391, 0
      %v1532 = vsel %vm425, %v1394, 0
      %v1535 = vsel %vm425, %v1397, 0
      %v1538 = vsel %vm425, %v1400, 0
      %v1541 = vsel %vm425, %v1403, 0
      %v1544 = vsel %vm425, %v1406, 0
      %v1547 = vsel %vm425, %v1409, 0
      %v1550 = vsel %vm425, %v1412, 0
      %v1553 = vsel %vm425, %v1415, 0
      %v1556 = vsel %vm425, %v1418, 0
      %1558 = vmatpush.msra.mxu0 0.0
      %1559 = vmatpush.msra.mxu0 0.0
      %1560 = vmatpush.msra.mxu0 0.0
      %1561 = vmatpush.msra.mxu0 0.0
      %1562 = vmatpush.msra.mxu0 0.0
      %1563 = vmatpush.msra.mxu0 0.0
      %1564 = vmatpush.msra.mxu0 0.0
      %1565 = vmatpush.msra.mxu0 0.0
      %1566 = vmatpush.msra.mxu0 0.0
      %1567 = vmatpush.msra.mxu0 0.0
      %1568 = vmatpush.msra.mxu0 0.0
      %1569 = vmatpush.msra.mxu0 0.0
      %1570 = vmatpush.msra.mxu0 0.0
      %1571 = vmatpush.msra.mxu0 0.0
      %1572 = vmatpush.msra.mxu0 %v1425
      %1573 = vmatpush.msra.mxu0 %v1421
      %1574 = vmatmul.f32.gmra.mxu0 %v1511
      %v1575 = vpop.f32.mrf.mxu0
      %v1576 = vadd.f32 %v1502, %v1575
      %1577 = vmatmul.f32.gmra.mxu0 %v1514
      %v1578 = vpop.f32.mrf.mxu0
      %v1579 = vadd.f32 %v1502, %v1578
      %1580 = vmatmul.f32.gmra.mxu0 %v1517
      %v1581 = vpop.f32.mrf.mxu0
      %v1582 = vadd.f32 %v1502, %v1581
      %1583 = vmatmul.f32.gmra.mxu0 %v1520
      %v1584 = vpop.f32.mrf.mxu0
      %v1585 = vadd.f32 %v1502, %v1584
      %1586 = vmatmul.f32.gmra.mxu0 %v1523
      %v1587 = vpop.f32.mrf.mxu0
      %v1588 = vadd.f32 %v1502, %v1587
      %1589 = vmatmul.f32.gmra.mxu0 %v1526
      %v1590 = vpop.f32.mrf.mxu0
      %v1591 = vadd.f32 %v1502, %v1590
      %1592 = vmatmul.f32.gmra.mxu0 %v1529
      %v1593 = vpop.f32.mrf.mxu0
      %v1594 = vadd.f32 %v1502, %v1593
      %1595 = vmatmul.f32.gmra.mxu0 %v1532
      %v1596 = vpop.f32.mrf.mxu0
      %v1597 = vadd.f32 %v1502, %v1596
      %1598 = vmatmul.f32.gmra.mxu0 %v1535
      %v1599 = vpop.f32.mrf.mxu0
      %v1600 = vadd.f32 %v1502, %v1599
      %1601 = vmatmul.f32.gmra.mxu0 %v1538
      %v1602 = vpop.f32.mrf.mxu0
      %v1603 = vadd.f32 %v1502, %v1602
      %1604 = vmatmul.f32.gmra.mxu0 %v1541
      %v1605 = vpop.f32.mrf.mxu0
      %v1606 = vadd.f32 %v1502, %v1605
      %1607 = vmatmul.f32.gmra.mxu0 %v1544
      %v1608 = vpop.f32.mrf.mxu0
      %v1609 = vadd.f32 %v1502, %v1608
      %1610 = vmatmul.f32.gmra.mxu0 %v1547
      %v1611 = vpop.f32.mrf.mxu0
      %v1612 = vadd.f32 %v1502, %v1611
      %1613 = vmatmul.f32.gmra.mxu0 %v1550
      %v1614 = vpop.f32.mrf.mxu0
      %v1615 = vadd.f32 %v1502, %v1614
      %1616 = vmatmul.f32.gmra.mxu0 %v1553
      %v1617 = vpop.f32.mrf.mxu0
      %v1618 = vadd.f32 %v1502, %v1617
      %1619 = vmatmul.f32.gmra.mxu0 %v1556
      %v1620 = vpop.f32.mrf.mxu0
      %v1621 = vadd.f32 %v1502, %v1620
      %1622 = vdwg.mxu0
      %1623 = vmatpush.msra.mxu0 0.0
      %1624 = vmatpush.msra.mxu0 0.0
      %1625 = vmatpush.msra.mxu0 0.0
      %1626 = vmatpush.msra.mxu0 0.0
      %1627 = vmatpush.msra.mxu0 0.0
      %1628 = vmatpush.msra.mxu0 0.0
      %1629 = vmatpush.msra.mxu0 0.0
      %1630 = vmatpush.msra.mxu0 0.0
      %1631 = vmatpush.msra.mxu0 0.0
      %1632 = vmatpush.msra.mxu0 0.0
      %1633 = vmatpush.msra.mxu0 0.0
      %1634 = vmatpush.msra.mxu0 0.0
      %1635 = vmatpush.msra.mxu0 0.0
      %1636 = vmatpush.msra.mxu0 0.0
      %1637 = vmatpush.msra.mxu0 %v1426
      %1638 = vmatpush.msra.mxu0 %v1422
      %1639 = vmatmul.f32.gmra.mxu0 %v1511
      %v1640 = vpop.f32.mrf.mxu0
      %v1641 = vadd.f32 %v1503, %v1640
      %1642 = vmatmul.f32.gmra.mxu0 %v1514
      %v1643 = vpop.f32.mrf.mxu0
      %v1644 = vadd.f32 %v1503, %v1643
      %1645 = vmatmul.f32.gmra.mxu0 %v1517
      %v1646 = vpop.f32.mrf.mxu0
      %v1647 = vadd.f32 %v1503, %v1646
      %1648 = vmatmul.f32.gmra.mxu0 %v1520
      %v1649 = vpop.f32.mrf.mxu0
      %v1650 = vadd.f32 %v1503, %v1649
      %1651 = vmatmul.f32.gmra.mxu0 %v1523
      %v1652 = vpop.f32.mrf.mxu0
      %v1653 = vadd.f32 %v1503, %v1652
      %1654 = vmatmul.f32.gmra.mxu0 %v1526
      %v1655 = vpop.f32.mrf.mxu0
      %v1656 = vadd.f32 %v1503, %v1655
      %1657 = vmatmul.f32.gmra.mxu0 %v1529
      %v1658 = vpop.f32.mrf.mxu0
      %v1659 = vadd.f32 %v1503, %v1658
      %1660 = vmatmul.f32.gmra.mxu0 %v1532
      %v1661 = vpop.f32.mrf.mxu0
      %v1662 = vadd.f32 %v1503, %v1661
      %1663 = vmatmul.f32.gmra.mxu0 %v1535
      %v1664 = vpop.f32.mrf.mxu0
      %v1665 = vadd.f32 %v1503, %v1664
      %1666 = vmatmul.f32.gmra.mxu0 %v1538
      %v1667 = vpop.f32.mrf.mxu0
      %v1668 = vadd.f32 %v1503, %v1667
      %1669 = vmatmul.f32.gmra.mxu0 %v1541
      %v1670 = vpop.f32.mrf.mxu0
      %v1671 = vadd.f32 %v1503, %v1670
      %1672 = vmatmul.f32.gmra.mxu0 %v1544
      %v1673 = vpop.f32.mrf.mxu0
      %v1674 = vadd.f32 %v1503, %v1673
      %1675 = vmatmul.f32.gmra.mxu0 %v1547
      %v1676 = vpop.f32.mrf.mxu0
      %v1677 = vadd.f32 %v1503, %v1676
      %1678 = vmatmul.f32.gmra.mxu0 %v1550
      %v1679 = vpop.f32.mrf.mxu0
      %v1680 = vadd.f32 %v1503, %v1679
      %1681 = vmatmul.f32.gmra.mxu0 %v1553
      %v1682 = vpop.f32.mrf.mxu0
      %v1683 = vadd.f32 %v1503, %v1682
      %1684 = vmatmul.f32.gmra.mxu0 %v1556
      %v1685 = vpop.f32.mrf.mxu0
      %v1686 = vadd.f32 %v1503, %v1685
      %1687 = vdwg.mxu0
      %1688 = vmatpush.msra.mxu0 0.0
      %1689 = vmatpush.msra.mxu0 0.0
      %1690 = vmatpush.msra.mxu0 0.0
      %1691 = vmatpush.msra.mxu0 0.0
      %1692 = vmatpush.msra.mxu0 0.0
      %1693 = vmatpush.msra.mxu0 0.0
      %1694 = vmatpush.msra.mxu0 0.0
      %1695 = vmatpush.msra.mxu0 0.0
      %1696 = vmatpush.msra.mxu0 0.0
      %1697 = vmatpush.msra.mxu0 0.0
      %1698 = vmatpush.msra.mxu0 0.0
      %1699 = vmatpush.msra.mxu0 0.0
      %1700 = vmatpush.msra.mxu0 0.0
      %1701 = vmatpush.msra.mxu0 0.0
      %1702 = vmatpush.msra.mxu0 %v1427
      %1703 = vmatpush.msra.mxu0 %v1423
      %1704 = vmatmul.f32.gmra.mxu0 %v1511
      %v1705 = vpop.f32.mrf.mxu0
      %v1706 = vadd.f32 %v1504, %v1705
      %1707 = vmatmul.f32.gmra.mxu0 %v1514
      %v1708 = vpop.f32.mrf.mxu0
      %v1709 = vadd.f32 %v1504, %v1708
      %1710 = vmatmul.f32.gmra.mxu0 %v1517
      %v1711 = vpop.f32.mrf.mxu0
      %v1712 = vadd.f32 %v1504, %v1711
      %1713 = vmatmul.f32.gmra.mxu0 %v1520
      %v1714 = vpop.f32.mrf.mxu0
      %v1715 = vadd.f32 %v1504, %v1714
      %1716 = vmatmul.f32.gmra.mxu0 %v1523
      %v1717 = vpop.f32.mrf.mxu0
      %v1718 = vadd.f32 %v1504, %v1717
      %1719 = vmatmul.f32.gmra.mxu0 %v1526
      %v1720 = vpop.f32.mrf.mxu0
      %v1721 = vadd.f32 %v1504, %v1720
      %1722 = vmatmul.f32.gmra.mxu0 %v1529
      %v1723 = vpop.f32.mrf.mxu0
      %v1724 = vadd.f32 %v1504, %v1723
      %1725 = vmatmul.f32.gmra.mxu0 %v1532
      %v1726 = vpop.f32.mrf.mxu0
      %v1727 = vadd.f32 %v1504, %v1726
      %1728 = vmatmul.f32.gmra.mxu0 %v1535
      %v1729 = vpop.f32.mrf.mxu0
      %v1730 = vadd.f32 %v1504, %v1729
      %1731 = vmatmul.f32.gmra.mxu0 %v1538
      %v1732 = vpop.f32.mrf.mxu0
      %v1733 = vadd.f32 %v1504, %v1732
      %1734 = vmatmul.f32.gmra.mxu0 %v1541
      %v1735 = vpop.f32.mrf.mxu0
      %v1736 = vadd.f32 %v1504, %v1735
      %1737 = vmatmul.f32.gmra.mxu0 %v1544
      %v1738 = vpop.f32.mrf.mxu0
      %v1739 = vadd.f32 %v1504, %v1738
      %1740 = vmatmul.f32.gmra.mxu0 %v1547
      %v1741 = vpop.f32.mrf.mxu0
      %v1742 = vadd.f32 %v1504, %v1741
      %1743 = vmatmul.f32.gmra.mxu0 %v1550
      %v1744 = vpop.f32.mrf.mxu0
      %v1745 = vadd.f32 %v1504, %v1744
      %1746 = vmatmul.f32.gmra.mxu0 %v1553
      %v1747 = vpop.f32.mrf.mxu0
      %v1748 = vadd.f32 %v1504, %v1747
      %1749 = vmatmul.f32.gmra.mxu0 %v1556
      %v1750 = vpop.f32.mrf.mxu0
      %v1751 = vadd.f32 %v1504, %v1750
      %1752 = vdwg.mxu0
      %1753 = vmatpush.msra.mxu0 0.0
      %1754 = vmatpush.msra.mxu0 0.0
      %1755 = vmatpush.msra.mxu0 0.0
      %1756 = vmatpush.msra.mxu0 0.0
      %1757 = vmatpush.msra.mxu0 0.0
      %1758 = vmatpush.msra.mxu0 0.0
      %1759 = vmatpush.msra.mxu0 0.0
      %1760 = vmatpush.msra.mxu0 0.0
      %1761 = vmatpush.msra.mxu0 0.0
      %1762 = vmatpush.msra.mxu0 0.0
      %1763 = vmatpush.msra.mxu0 0.0
      %1764 = vmatpush.msra.mxu0 0.0
      %1765 = vmatpush.msra.mxu0 0.0
      %1766 = vmatpush.msra.mxu0 0.0
      %1767 = vmatpush.msra.mxu0 %v1428
      %1768 = vmatpush.msra.mxu0 %v1424
      %1769 = vmatmul.f32.gmra.mxu0 %v1511
      %v1770 = vpop.f32.mrf.mxu0
      %v1771 = vadd.f32 %v1505, %v1770
      %1772 = vmatmul.f32.gmra.mxu0 %v1514
      %v1773 = vpop.f32.mrf.mxu0
      %v1774 = vadd.f32 %v1505, %v1773
      %1775 = vmatmul.f32.gmra.mxu0 %v1517
      %v1776 = vpop.f32.mrf.mxu0
      %v1777 = vadd.f32 %v1505, %v1776
      %1778 = vmatmul.f32.gmra.mxu0 %v1520
      %v1779 = vpop.f32.mrf.mxu0
      %v1780 = vadd.f32 %v1505, %v1779
      %1781 = vmatmul.f32.gmra.mxu0 %v1523
      %v1782 = vpop.f32.mrf.mxu0
      %v1783 = vadd.f32 %v1505, %v1782
      %1784 = vmatmul.f32.gmra.mxu0 %v1526
      %v1785 = vpop.f32.mrf.mxu0
      %v1786 = vadd.f32 %v1505, %v1785
      %1787 = vmatmul.f32.gmra.mxu0 %v1529
      %v1788 = vpop.f32.mrf.mxu0
      %v1789 = vadd.f32 %v1505, %v1788
      %1790 = vmatmul.f32.gmra.mxu0 %v1532
      %v1791 = vpop.f32.mrf.mxu0
      %v1792 = vadd.f32 %v1505, %v1791
      %1793 = vmatmul.f32.gmra.mxu0 %v1535
      %v1794 = vpop.f32.mrf.mxu0
      %v1795 = vadd.f32 %v1505, %v1794
      %1796 = vmatmul.f32.gmra.mxu0 %v1538
      %v1797 = vpop.f32.mrf.mxu0
      %v1798 = vadd.f32 %v1505, %v1797
      %1799 = vmatmul.f32.gmra.mxu0 %v1541
      %v1800 = vpop.f32.mrf.mxu0
      %v1801 = vadd.f32 %v1505, %v1800
      %1802 = vmatmul.f32.gmra.mxu0 %v1544
      %v1803 = vpop.f32.mrf.mxu0
      %v1804 = vadd.f32 %v1505, %v1803
      %1805 = vmatmul.f32.gmra.mxu0 %v1547
      %v1806 = vpop.f32.mrf.mxu0
      %v1807 = vadd.f32 %v1505, %v1806
      %1808 = vmatmul.f32.gmra.mxu0 %v1550
      %v1809 = vpop.f32.mrf.mxu0
      %v1810 = vadd.f32 %v1505, %v1809
      %1811 = vmatmul.f32.gmra.mxu0 %v1553
      %v1812 = vpop.f32.mrf.mxu0
      %v1813 = vadd.f32 %v1505, %v1812
      %1814 = vmatmul.f32.gmra.mxu0 %v1556
      %v1815 = vpop.f32.mrf.mxu0
      %v1816 = vadd.f32 %v1505, %v1815
      %1817 = vdwg.mxu0
      %v1818 = vmax.f32 %v1576, 0.0
      %v1819 = vmax.f32 %v1641, 0.0
      %v1820 = vmax.f32 %v1706, 0.0
      %v1821 = vmax.f32 %v1771, 0.0
      %v1822 = vmax.f32 %v1579, 0.0
      %v1823 = vmax.f32 %v1644, 0.0
      %v1824 = vmax.f32 %v1709, 0.0
      %v1825 = vmax.f32 %v1774, 0.0
      %v1826 = vmax.f32 %v1582, 0.0
      %v1827 = vmax.f32 %v1647, 0.0
      %v1828 = vmax.f32 %v1712, 0.0
      %v1829 = vmax.f32 %v1777, 0.0
      %v1830 = vmax.f32 %v1585, 0.0
      %v1831 = vmax.f32 %v1650, 0.0
      %v1832 = vmax.f32 %v1715, 0.0
      %v1833 = vmax.f32 %v1780, 0.0
      %v1834 = vmax.f32 %v1588, 0.0
      %v1835 = vmax.f32 %v1653, 0.0
      %v1836 = vmax.f32 %v1718, 0.0
      %v1837 = vmax.f32 %v1783, 0.0
      %v1838 = vmax.f32 %v1591, 0.0
      %v1839 = vmax.f32 %v1656, 0.0
      %v1840 = vmax.f32 %v1721, 0.0
      %v1841 = vmax.f32 %v1786, 0.0
      %v1842 = vmax.f32 %v1594, 0.0
      %v1843 = vmax.f32 %v1659, 0.0
      %v1844 = vmax.f32 %v1724, 0.0
      %v1845 = vmax.f32 %v1789, 0.0
      %v1846 = vmax.f32 %v1597, 0.0
      %v1847 = vmax.f32 %v1662, 0.0
      %v1848 = vmax.f32 %v1727, 0.0
      %v1849 = vmax.f32 %v1792, 0.0
      %v1850 = vmax.f32 %v1600, 0.0
      %v1851 = vmax.f32 %v1665, 0.0
      %v1852 = vmax.f32 %v1730, 0.0
      %v1853 = vmax.f32 %v1795, 0.0
      %v1854 = vmax.f32 %v1603, 0.0
      %v1855 = vmax.f32 %v1668, 0.0
      %v1856 = vmax.f32 %v1733, 0.0
      %v1857 = vmax.f32 %v1798, 0.0
      %v1858 = vmax.f32 %v1606, 0.0
      %v1859 = vmax.f32 %v1671, 0.0
      %v1860 = vmax.f32 %v1736, 0.0
      %v1861 = vmax.f32 %v1801, 0.0
      %v1862 = vmax.f32 %v1609, 0.0
      %v1863 = vmax.f32 %v1674, 0.0
      %v1864 = vmax.f32 %v1739, 0.0
      %v1865 = vmax.f32 %v1804, 0.0
      %v1866 = vmax.f32 %v1612, 0.0
      %v1867 = vmax.f32 %v1677, 0.0
      %v1868 = vmax.f32 %v1742, 0.0
      %v1869 = vmax.f32 %v1807, 0.0
      %v1870 = vmax.f32 %v1615, 0.0
      %v1871 = vmax.f32 %v1680, 0.0
      %v1872 = vmax.f32 %v1745, 0.0
      %v1873 = vmax.f32 %v1810, 0.0
      %v1874 = vmax.f32 %v1618, 0.0
      %v1875 = vmax.f32 %v1683, 0.0
      %v1876 = vmax.f32 %v1748, 0.0
      %v1877 = vmax.f32 %v1813, 0.0
      %v1878 = vmax.f32 %v1621, 0.0
      %v1879 = vmax.f32 %v1686, 0.0
      %v1880 = vmax.f32 %v1751, 0.0
      %v1881 = vmax.f32 %v1816, 0.0
      %s1882 = scalar_lea.vmem %s4, 1
      %v1883 = vld [vmem:[%s1882] sm:$0x1]
      %v1885 = vperm.slane %v1883, 0
      %1887 = vmatpush.msra.mxu0 %v1445
      %1888 = vmatpush.msra.mxu0 %v1444
      %1889 = vmatpush.msra.mxu0 %v1443
      %1890 = vmatpush.msra.mxu0 %v1442
      %1891 = vmatpush.msra.mxu0 %v1441
      %1892 = vmatpush.msra.mxu0 %v1440
      %1893 = vmatpush.msra.mxu0 %v1439
      %1894 = vmatpush.msra.mxu0 %v1438
      %1895 = vmatpush.msra.mxu0 %v1437
      %1896 = vmatpush.msra.mxu0 %v1436
      %1897 = vmatpush.msra.mxu0 %v1435
      %1898 = vmatpush.msra.mxu0 %v1434
      %1899 = vmatpush.msra.mxu0 %v1433
      %1900 = vmatpush.msra.mxu0 %v1432
      %1901 = vmatpush.msra.mxu0 %v1431
      %1902 = vmatpush.msra.mxu0 %v1430
      %1903 = vmatmul.f32.gmra.mxu0 %v1818
      %v1904 = vpop.f32.mrf.mxu0
      %v1905 = vadd.f32 %v1885, %v1904
      %1906 = vmatmul.f32.gmra.mxu0 %v1822
      %v1907 = vpop.f32.mrf.mxu0
      %v1908 = vadd.f32 %v1885, %v1907
      %1909 = vmatmul.f32.gmra.mxu0 %v1826
      %v1910 = vpop.f32.mrf.mxu0
      %v1911 = vadd.f32 %v1885, %v1910
      %1912 = vmatmul.f32.gmra.mxu0 %v1830
      %v1913 = vpop.f32.mrf.mxu0
      %v1914 = vadd.f32 %v1885, %v1913
      %1915 = vmatmul.f32.gmra.mxu0 %v1834
      %v1916 = vpop.f32.mrf.mxu0
      %v1917 = vadd.f32 %v1885, %v1916
      %1918 = vmatmul.f32.gmra.mxu0 %v1838
      %v1919 = vpop.f32.mrf.mxu0
      %v1920 = vadd.f32 %v1885, %v1919
      %1921 = vmatmul.f32.gmra.mxu0 %v1842
      %v1922 = vpop.f32.mrf.mxu0
      %v1923 = vadd.f32 %v1885, %v1922
      %1924 = vmatmul.f32.gmra.mxu0 %v1846
      %v1925 = vpop.f32.mrf.mxu0
      %v1926 = vadd.f32 %v1885, %v1925
      %1927 = vmatmul.f32.gmra.mxu0 %v1850
      %v1928 = vpop.f32.mrf.mxu0
      %v1929 = vadd.f32 %v1885, %v1928
      %1930 = vmatmul.f32.gmra.mxu0 %v1854
      %v1931 = vpop.f32.mrf.mxu0
      %v1932 = vadd.f32 %v1885, %v1931
      %1933 = vmatmul.f32.gmra.mxu0 %v1858
      %v1934 = vpop.f32.mrf.mxu0
      %v1935 = vadd.f32 %v1885, %v1934
      %1936 = vmatmul.f32.gmra.mxu0 %v1862
      %v1937 = vpop.f32.mrf.mxu0
      %v1938 = vadd.f32 %v1885, %v1937
      %1939 = vmatmul.f32.gmra.mxu0 %v1866
      %v1940 = vpop.f32.mrf.mxu0
      %v1941 = vadd.f32 %v1885, %v1940
      %1942 = vmatmul.f32.gmra.mxu0 %v1870
      %v1943 = vpop.f32.mrf.mxu0
      %v1944 = vadd.f32 %v1885, %v1943
      %1945 = vmatmul.f32.gmra.mxu0 %v1874
      %v1946 = vpop.f32.mrf.mxu0
      %v1947 = vadd.f32 %v1885, %v1946
      %1948 = vmatmul.f32.gmra.mxu0 %v1878
      %v1949 = vpop.f32.mrf.mxu0
      %v1950 = vadd.f32 %v1885, %v1949
      %1951 = vdwg.mxu0
      %1952 = vmatpush.msra.mxu0 %v1461
      %1953 = vmatpush.msra.mxu0 %v1460
      %1954 = vmatpush.msra.mxu0 %v1459
      %1955 = vmatpush.msra.mxu0 %v1458
      %1956 = vmatpush.msra.mxu0 %v1457
      %1957 = vmatpush.msra.mxu0 %v1456
      %1958 = vmatpush.msra.mxu0 %v1455
      %1959 = vmatpush.msra.mxu0 %v1454
      %1960 = vmatpush.msra.mxu0 %v1453
      %1961 = vmatpush.msra.mxu0 %v1452
      %1962 = vmatpush.msra.mxu0 %v1451
      %1963 = vmatpush.msra.mxu0 %v1450
      %1964 = vmatpush.msra.mxu0 %v1449
      %1965 = vmatpush.msra.mxu0 %v1448
      %1966 = vmatpush.msra.mxu0 %v1447
      %1967 = vmatpush.msra.mxu0 %v1446
      %1968 = vmatmul.f32.gmra.mxu0 %v1819
      %v1969 = vpop.f32.mrf.mxu0
      %v1970 = vadd.f32 %v1905, %v1969
      %1971 = vmatmul.f32.gmra.mxu0 %v1823
      %v1972 = vpop.f32.mrf.mxu0
      %v1973 = vadd.f32 %v1908, %v1972
      %1974 = vmatmul.f32.gmra.mxu0 %v1827
      %v1975 = vpop.f32.mrf.mxu0
      %v1976 = vadd.f32 %v1911, %v1975
      %1977 = vmatmul.f32.gmra.mxu0 %v1831
      %v1978 = vpop.f32.mrf.mxu0
      %v1979 = vadd.f32 %v1914, %v1978
      %1980 = vmatmul.f32.gmra.mxu0 %v1835
      %v1981 = vpop.f32.mrf.mxu0
      %v1982 = vadd.f32 %v1917, %v1981
      %1983 = vmatmul.f32.gmra.mxu0 %v1839
      %v1984 = vpop.f32.mrf.mxu0
      %v1985 = vadd.f32 %v1920, %v1984
      %1986 = vmatmul.f32.gmra.mxu0 %v1843
      %v1987 = vpop.f32.mrf.mxu0
      %v1988 = vadd.f32 %v1923, %v1987
      %1989 = vmatmul.f32.gmra.mxu0 %v1847
      %v1990 = vpop.f32.mrf.mxu0
      %v1991 = vadd.f32 %v1926, %v1990
      %1992 = vmatmul.f32.gmra.mxu0 %v1851
      %v1993 = vpop.f32.mrf.mxu0
      %v1994 = vadd.f32 %v1929, %v1993
      %1995 = vmatmul.f32.gmra.mxu0 %v1855
      %v1996 = vpop.f32.mrf.mxu0
      %v1997 = vadd.f32 %v1932, %v1996
      %1998 = vmatmul.f32.gmra.mxu0 %v1859
      %v1999 = vpop.f32.mrf.mxu0
      %v2000 = vadd.f32 %v1935, %v1999
      %2001 = vmatmul.f32.gmra.mxu0 %v1863
      %v2002 = vpop.f32.mrf.mxu0
      %v2003 = vadd.f32 %v1938, %v2002
      %2004 = vmatmul.f32.gmra.mxu0 %v1867
      %v2005 = vpop.f32.mrf.mxu0
      %v2006 = vadd.f32 %v1941, %v2005
      %2007 = vmatmul.f32.gmra.mxu0 %v1871
      %v2008 = vpop.f32.mrf.mxu0
      %v2009 = vadd.f32 %v1944, %v2008
      %2010 = vmatmul.f32.gmra.mxu0 %v1875
      %v2011 = vpop.f32.mrf.mxu0
      %v2012 = vadd.f32 %v1947, %v2011
      %2013 = vmatmul.f32.gmra.mxu0 %v1879
      %v2014 = vpop.f32.mrf.mxu0
      %v2015 = vadd.f32 %v1950, %v2014
      %2016 = vdwg.mxu0
      %2017 = vmatpush.msra.mxu0 %v1477
      %2018 = vmatpush.msra.mxu0 %v1476
      %2019 = vmatpush.msra.mxu0 %v1475
      %2020 = vmatpush.msra.mxu0 %v1474
      %2021 = vmatpush.msra.mxu0 %v1473
      %2022 = vmatpush.msra.mxu0 %v1472
      %2023 = vmatpush.msra.mxu0 %v1471
      %2024 = vmatpush.msra.mxu0 %v1470
      %2025 = vmatpush.msra.mxu0 %v1469
      %2026 = vmatpush.msra.mxu0 %v1468
      %2027 = vmatpush.msra.mxu0 %v1467
      %2028 = vmatpush.msra.mxu0 %v1466
      %2029 = vmatpush.msra.mxu0 %v1465
      %2030 = vmatpush.msra.mxu0 %v1464
      %2031 = vmatpush.msra.mxu0 %v1463
      %2032 = vmatpush.msra.mxu0 %v1462
      %2033 = vmatmul.f32.gmra.mxu0 %v1820
      %v2034 = vpop.f32.mrf.mxu0
      %v2035 = vadd.f32 %v1970, %v2034
      %2036 = vmatmul.f32.gmra.mxu0 %v1824
      %v2037 = vpop.f32.mrf.mxu0
      %v2038 = vadd.f32 %v1973, %v2037
      %2039 = vmatmul.f32.gmra.mxu0 %v1828
      %v2040 = vpop.f32.mrf.mxu0
      %v2041 = vadd.f32 %v1976, %v2040
      %2042 = vmatmul.f32.gmra.mxu0 %v1832
      %v2043 = vpop.f32.mrf.mxu0
      %v2044 = vadd.f32 %v1979, %v2043
      %2045 = vmatmul.f32.gmra.mxu0 %v1836
      %v2046 = vpop.f32.mrf.mxu0
      %v2047 = vadd.f32 %v1982, %v2046
      %2048 = vmatmul.f32.gmra.mxu0 %v1840
      %v2049 = vpop.f32.mrf.mxu0
      %v2050 = vadd.f32 %v1985, %v2049
      %2051 = vmatmul.f32.gmra.mxu0 %v1844
      %v2052 = vpop.f32.mrf.mxu0
      %v2053 = vadd.f32 %v1988, %v2052
      %2054 = vmatmul.f32.gmra.mxu0 %v1848
      %v2055 = vpop.f32.mrf.mxu0
      %v2056 = vadd.f32 %v1991, %v2055
      %2057 = vmatmul.f32.gmra.mxu0 %v1852
      %v2058 = vpop.f32.mrf.mxu0
      %v2059 = vadd.f32 %v1994, %v2058
      %2060 = vmatmul.f32.gmra.mxu0 %v1856
      %v2061 = vpop.f32.mrf.mxu0
      %v2062 = vadd.f32 %v1997, %v2061
      %2063 = vmatmul.f32.gmra.mxu0 %v1860
      %v2064 = vpop.f32.mrf.mxu0
      %v2065 = vadd.f32 %v2000, %v2064
      %2066 = vmatmul.f32.gmra.mxu0 %v1864
      %v2067 = vpop.f32.mrf.mxu0
      %v2068 = vadd.f32 %v2003, %v2067
      %2069 = vmatmul.f32.gmra.mxu0 %v1868
      %v2070 = vpop.f32.mrf.mxu0
      %v2071 = vadd.f32 %v2006, %v2070
      %2072 = vmatmul.f32.gmra.mxu0 %v1872
      %v2073 = vpop.f32.mrf.mxu0
      %v2074 = vadd.f32 %v2009, %v2073
      %2075 = vmatmul.f32.gmra.mxu0 %v1876
      %v2076 = vpop.f32.mrf.mxu0
      %v2077 = vadd.f32 %v2012, %v2076
      %2078 = vmatmul.f32.gmra.mxu0 %v1880
      %v2079 = vpop.f32.mrf.mxu0
      %v2080 = vadd.f32 %v2015, %v2079
      %2081 = vdwg.mxu0
      %2082 = vmatpush.msra.mxu0 %v1493
      %2083 = vmatpush.msra.mxu0 %v1492
      %2084 = vmatpush.msra.mxu0 %v1491
      %2085 = vmatpush.msra.mxu0 %v1490
      %2086 = vmatpush.msra.mxu0 %v1489
      %2087 = vmatpush.msra.mxu0 %v1488
      %2088 = vmatpush.msra.mxu0 %v1487
      %2089 = vmatpush.msra.mxu0 %v1486
      %2090 = vmatpush.msra.mxu0 %v1485
      %2091 = vmatpush.msra.mxu0 %v1484
      %2092 = vmatpush.msra.mxu0 %v1483
      %2093 = vmatpush.msra.mxu0 %v1482
      %2094 = vmatpush.msra.mxu0 %v1481
      %2095 = vmatpush.msra.mxu0 %v1480
      %2096 = vmatpush.msra.mxu0 %v1479
      %2097 = vmatpush.msra.mxu0 %v1478
      %2098 = vmatmul.f32.gmra.mxu0 %v1821
      %v2099 = vpop.f32.mrf.mxu0
      %v2100 = vadd.f32 %v2035, %v2099
      %2101 = vmatmul.f32.gmra.mxu0 %v1825
      %v2102 = vpop.f32.mrf.mxu0
      %v2103 = vadd.f32 %v2038, %v2102
      %2104 = vmatmul.f32.gmra.mxu0 %v1829
      %v2105 = vpop.f32.mrf.mxu0
      %v2106 = vadd.f32 %v2041, %v2105
      %2107 = vmatmul.f32.gmra.mxu0 %v1833
      %v2108 = vpop.f32.mrf.mxu0
      %v2109 = vadd.f32 %v2044, %v2108
      %2110 = vmatmul.f32.gmra.mxu0 %v1837
      %v2111 = vpop.f32.mrf.mxu0
      %v2112 = vadd.f32 %v2047, %v2111
      %2113 = vmatmul.f32.gmra.mxu0 %v1841
      %v2114 = vpop.f32.mrf.mxu0
      %v2115 = vadd.f32 %v2050, %v2114
      %2116 = vmatmul.f32.gmra.mxu0 %v1845
      %v2117 = vpop.f32.mrf.mxu0
      %v2118 = vadd.f32 %v2053, %v2117
      %2119 = vmatmul.f32.gmra.mxu0 %v1849
      %v2120 = vpop.f32.mrf.mxu0
      %v2121 = vadd.f32 %v2056, %v2120
      %2122 = vmatmul.f32.gmra.mxu0 %v1853
      %v2123 = vpop.f32.mrf.mxu0
      %v2124 = vadd.f32 %v2059, %v2123
      %2125 = vmatmul.f32.gmra.mxu0 %v1857
      %v2126 = vpop.f32.mrf.mxu0
      %v2127 = vadd.f32 %v2062, %v2126
      %2128 = vmatmul.f32.gmra.mxu0 %v1861
      %v2129 = vpop.f32.mrf.mxu0
      %v2130 = vadd.f32 %v2065, %v2129
      %2131 = vmatmul.f32.gmra.mxu0 %v1865
      %v2132 = vpop.f32.mrf.mxu0
      %v2133 = vadd.f32 %v2068, %v2132
      %2134 = vmatmul.f32.gmra.mxu0 %v1869
      %v2135 = vpop.f32.mrf.mxu0
      %v2136 = vadd.f32 %v2071, %v2135
      %2137 = vmatmul.f32.gmra.mxu0 %v1873
      %v2138 = vpop.f32.mrf.mxu0
      %v2139 = vadd.f32 %v2074, %v2138
      %2140 = vmatmul.f32.gmra.mxu0 %v1877
      %v2141 = vpop.f32.mrf.mxu0
      %v2142 = vadd.f32 %v2077, %v2141
      %2143 = vmatmul.f32.gmra.mxu0 %v1881
      %v2144 = vpop.f32.mrf.mxu0
      %v2145 = vadd.f32 %v2080, %v2144
      %2146 = vdwg.mxu0
      %v2147 = vtanh.pop %v2100
      %v2148 = vtanh.pop %v2103
      %v2149 = vtanh.pop %v2106
      %v2150 = vtanh.pop %v2109
      %v2151 = vtanh.pop %v2112
      %v2152 = vtanh.pop %v2115
      %v2153 = vtanh.pop %v2118
      %v2154 = vtanh.pop %v2121
      %v2155 = vtanh.pop %v2124
      %v2156 = vtanh.pop %v2127
      %v2157 = vtanh.pop %v2130
      %v2158 = vtanh.pop %v2133
      %v2159 = vtanh.pop %v2136
      %v2160 = vtanh.pop %v2139
      %v2161 = vtanh.pop %v2142
      %v2162 = vtanh.pop %v2145
      %v2163 = vmul.f32 %v2147, 2.0
      %v2164 = vmul.f32 %v2148, 2.0
      %v2165 = vmul.f32 %v2149, 2.0
      %v2166 = vmul.f32 %v2150, 2.0
      %v2167 = vmul.f32 %v2151, 2.0
      %v2168 = vmul.f32 %v2152, 2.0
      %v2169 = vmul.f32 %v2153, 2.0
      %v2170 = vmul.f32 %v2154, 2.0
      %v2171 = vmul.f32 %v2155, 2.0
      %v2172 = vmul.f32 %v2156, 2.0
      %v2173 = vmul.f32 %v2157, 2.0
      %v2174 = vmul.f32 %v2158, 2.0
      %v2175 = vmul.f32 %v2159, 2.0
      %v2176 = vmul.f32 %v2160, 2.0
      %v2177 = vmul.f32 %v2161, 2.0
      %v2178 = vmul.f32 %v2162, 2.0
      %v2179 = vmul.f32 %v2163, 1.442695
      %v2180 = vpow.pop %v2179
      %v2181 = vmul.f32 %v2164, 1.442695
      %v2182 = vpow.pop %v2181
      %v2183 = vmul.f32 %v2165, 1.442695
      %v2184 = vpow.pop %v2183
      %v2185 = vmul.f32 %v2166, 1.442695
      %v2186 = vpow.pop %v2185
      %v2187 = vmul.f32 %v2167, 1.442695
      %v2188 = vpow.pop %v2187
      %v2189 = vmul.f32 %v2168, 1.442695
      %v2190 = vpow.pop %v2189
      %v2191 = vmul.f32 %v2169, 1.442695
      %v2192 = vpow.pop %v2191
      %v2193 = vmul.f32 %v2170, 1.442695
      %v2194 = vpow.pop %v2193
      %v2195 = vmul.f32 %v2171, 1.442695
      %v2196 = vpow.pop %v2195
      %v2197 = vmul.f32 %v2172, 1.442695
      %v2198 = vpow.pop %v2197
      %v2199 = vmul.f32 %v2173, 1.442695
      %v2200 = vpow.pop %v2199
      %v2201 = vmul.f32 %v2174, 1.442695
      %v2202 = vpow.pop %v2201
      %v2203 = vmul.f32 %v2175, 1.442695
      %v2204 = vpow.pop %v2203
      %v2205 = vmul.f32 %v2176, 1.442695
      %v2206 = vpow.pop %v2205
      %v2207 = vmul.f32 %v2177, 1.442695
      %v2208 = vpow.pop %v2207
      %v2209 = vmul.f32 %v2178, 1.442695
      %v2210 = vpow.pop %v2209
      %2227 = vrot.lane.b32.xlu0 %v2180, 16
      %v2228 = vpop.permute.xlu0 %2227
      %2229 = vrot.lane.b32.xlu0 %v2182, 16
      %v2230 = vpop.permute.xlu0 %2229
      %2231 = vrot.lane.b32.xlu0 %v2184, 16
      %v2232 = vpop.permute.xlu0 %2231
      %2233 = vrot.lane.b32.xlu0 %v2186, 16
      %v2234 = vpop.permute.xlu0 %2233
      %2235 = vrot.lane.b32.xlu0 %v2188, 16
      %v2236 = vpop.permute.xlu0 %2235
      %2237 = vrot.lane.b32.xlu0 %v2190, 16
      %v2238 = vpop.permute.xlu0 %2237
      %2239 = vrot.lane.b32.xlu0 %v2192, 16
      %v2240 = vpop.permute.xlu0 %2239
      %2241 = vrot.lane.b32.xlu0 %v2194, 16
      %v2242 = vpop.permute.xlu0 %2241
      %2243 = vrot.lane.b32.xlu0 %v2196, 16
      %v2244 = vpop.permute.xlu0 %2243
      %2245 = vrot.lane.b32.xlu0 %v2198, 16
      %v2246 = vpop.permute.xlu0 %2245
      %2247 = vrot.lane.b32.xlu0 %v2200, 16
      %v2248 = vpop.permute.xlu0 %2247
      %2249 = vrot.lane.b32.xlu0 %v2202, 16
      %v2250 = vpop.permute.xlu0 %2249
      %2251 = vrot.lane.b32.xlu0 %v2204, 16
      %v2252 = vpop.permute.xlu0 %2251
      %2253 = vrot.lane.b32.xlu0 %v2206, 16
      %v2254 = vpop.permute.xlu0 %2253
      %2255 = vrot.lane.b32.xlu0 %v2208, 16
      %v2256 = vpop.permute.xlu0 %2255
      %2257 = vrot.lane.b32.xlu0 %v2210, 16
      %v2258 = vpop.permute.xlu0 %2257
      %v2275 = vmul.f32 %v1373, %v2228
      %v2276 = vmul.f32 %v1376, %v2230
      %v2277 = vmul.f32 %v1379, %v2232
      %v2278 = vmul.f32 %v1382, %v2234
      %v2279 = vmul.f32 %v1385, %v2236
      %v2280 = vmul.f32 %v1388, %v2238
      %v2281 = vmul.f32 %v1391, %v2240
      %v2282 = vmul.f32 %v1394, %v2242
      %v2283 = vmul.f32 %v1397, %v2244
      %v2284 = vmul.f32 %v1400, %v2246
      %v2285 = vmul.f32 %v1403, %v2248
      %v2286 = vmul.f32 %v1406, %v2250
      %v2287 = vmul.f32 %v1409, %v2252
      %v2288 = vmul.f32 %v1412, %v2254
      %v2289 = vmul.f32 %v1415, %v2256
      %v2290 = vmul.f32 %v1418, %v2258
      %v2291 = vadd.f32 %v2275, %v2100
      %v2292 = vadd.f32 %v2276, %v2103
      %v2293 = vadd.f32 %v2277, %v2106
      %v2294 = vadd.f32 %v2278, %v2109
      %v2295 = vadd.f32 %v2279, %v2112
      %v2296 = vadd.f32 %v2280, %v2115
      %v2297 = vadd.f32 %v2281, %v2118
      %v2298 = vadd.f32 %v2282, %v2121
      %v2299 = vadd.f32 %v2283, %v2124
      %v2300 = vadd.f32 %v2284, %v2127
      %v2301 = vadd.f32 %v2285, %v2130
      %v2302 = vadd.f32 %v2286, %v2133
      %v2303 = vadd.f32 %v2287, %v2136
      %v2304 = vadd.f32 %v2288, %v2139
      %v2305 = vadd.f32 %v2289, %v2142
      %v2306 = vadd.f32 %v2290, %v2145
      %v2307 = vsel %vm425, %v2163, 0.0
      %2308 = vadd.xlane.f32.xlu0 %v2307
      %v2309 = vpop.xlane.xlu0 %2308
      %v2310 = vsel %vm425, %v2164, 0.0
      %2311 = vadd.xlane.f32.xlu0 %v2310
      %v2312 = vpop.xlane.xlu0 %2311
      %v2313 = vsel %vm425, %v2165, 0.0
      %2314 = vadd.xlane.f32.xlu0 %v2313
      %v2315 = vpop.xlane.xlu0 %2314
      %v2316 = vsel %vm425, %v2166, 0.0
      %2317 = vadd.xlane.f32.xlu0 %v2316
      %v2318 = vpop.xlane.xlu0 %2317
      %v2319 = vsel %vm425, %v2167, 0.0
      %2320 = vadd.xlane.f32.xlu0 %v2319
      %v2321 = vpop.xlane.xlu0 %2320
      %v2322 = vsel %vm425, %v2168, 0.0
      %2323 = vadd.xlane.f32.xlu0 %v2322
      %v2324 = vpop.xlane.xlu0 %2323
      %v2325 = vsel %vm425, %v2169, 0.0
      %2326 = vadd.xlane.f32.xlu0 %v2325
      %v2327 = vpop.xlane.xlu0 %2326
      %v2328 = vsel %vm425, %v2170, 0.0
      %2329 = vadd.xlane.f32.xlu0 %v2328
      %v2330 = vpop.xlane.xlu0 %2329
      %v2331 = vsel %vm425, %v2171, 0.0
      %2332 = vadd.xlane.f32.xlu0 %v2331
      %v2333 = vpop.xlane.xlu0 %2332
      %v2334 = vsel %vm425, %v2172, 0.0
      %2335 = vadd.xlane.f32.xlu0 %v2334
      %v2336 = vpop.xlane.xlu0 %2335
      %v2337 = vsel %vm425, %v2173, 0.0
      %2338 = vadd.xlane.f32.xlu0 %v2337
      %v2339 = vpop.xlane.xlu0 %2338
      %v2340 = vsel %vm425, %v2174, 0.0
      %2341 = vadd.xlane.f32.xlu0 %v2340
      %v2342 = vpop.xlane.xlu0 %2341
      %v2343 = vsel %vm425, %v2175, 0.0
      %2344 = vadd.xlane.f32.xlu0 %v2343
      %v2345 = vpop.xlane.xlu0 %2344
      %v2346 = vsel %vm425, %v2176, 0.0
      %2347 = vadd.xlane.f32.xlu0 %v2346
      %v2348 = vpop.xlane.xlu0 %2347
      %v2349 = vsel %vm425, %v2177, 0.0
      %2350 = vadd.xlane.f32.xlu0 %v2349
      %v2351 = vpop.xlane.xlu0 %2350
      %v2352 = vsel %vm425, %v2178, 0.0
      %2353 = vadd.xlane.f32.xlu0 %v2352
      %v2354 = vpop.xlane.xlu0 %2353
      %v2355 = vadd.f32 %v1270, %v2309
      %v2356 = vadd.f32 %v1271, %v2312
      %v2357 = vadd.f32 %v1272, %v2315
      %v2358 = vadd.f32 %v1273, %v2318
      %v2359 = vadd.f32 %v1274, %v2321
      %v2360 = vadd.f32 %v1275, %v2324
      %v2361 = vadd.f32 %v1276, %v2327
      %v2362 = vadd.f32 %v1277, %v2330
      %v2363 = vadd.f32 %v1278, %v2333
      %v2364 = vadd.f32 %v1279, %v2336
      %v2365 = vadd.f32 %v1280, %v2339
      %v2366 = vadd.f32 %v1281, %v2342
      %v2367 = vadd.f32 %v1282, %v2345
      %v2368 = vadd.f32 %v1283, %v2348
      %v2369 = vadd.f32 %v1284, %v2351
      %v2370 = vadd.f32 %v1285, %v2354
      %v2371 = vsel %vm425, %v1373, %v2291
      %v2372 = vsel %vm425, %v1376, %v2292
      %v2373 = vsel %vm425, %v1379, %v2293
      %v2374 = vsel %vm425, %v1382, %v2294
      %v2375 = vsel %vm425, %v1385, %v2295
      %v2376 = vsel %vm425, %v1388, %v2296
      %v2377 = vsel %vm425, %v1391, %v2297
      %v2378 = vsel %vm425, %v1394, %v2298
      %v2379 = vsel %vm425, %v1397, %v2299
      %v2380 = vsel %vm425, %v1400, %v2300
      %v2381 = vsel %vm425, %v1403, %v2301
      %v2382 = vsel %vm425, %v1406, %v2302
      %v2383 = vsel %vm425, %v1409, %v2303
      %v2384 = vsel %vm425, %v1412, %v2304
      %v2385 = vsel %vm425, %v1415, %v2305
      %v2386 = vsel %vm425, %v1418, %v2306
      %s2387 = scalar_lea.vmem %s6, 1
      %v2388 = vld [vmem:[%s2387] sm:$0x1]
      %v2390 = vperm.slane %v2388, 0
      %v2393 = vsel %vm1306, %v2371, 0
      %v2396 = vsel %vm1306, %v2372, 0
      %v2399 = vsel %vm1306, %v2373, 0
      %v2402 = vsel %vm1306, %v2374, 0
      %v2405 = vsel %vm1306, %v2375, 0
      %v2408 = vsel %vm1306, %v2376, 0
      %v2411 = vsel %vm1306, %v2377, 0
      %v2414 = vsel %vm1306, %v2378, 0
      %v2417 = vsel %vm1306, %v2379, 0
      %v2420 = vsel %vm1306, %v2380, 0
      %v2423 = vsel %vm1306, %v2381, 0
      %v2426 = vsel %vm1306, %v2382, 0
      %v2429 = vsel %vm1306, %v2383, 0
      %v2432 = vsel %vm1306, %v2384, 0
      %v2435 = vsel %vm1306, %v2385, 0
      %v2438 = vsel %vm1306, %v2386, 0
      %2440 = vmatpush.msra.mxu0 0.0
      %2441 = vmatpush.msra.mxu0 0.0
      %2442 = vmatpush.msra.mxu0 0.0
      %2443 = vmatpush.msra.mxu0 0.0
      %2444 = vmatpush.msra.mxu0 0.0
      %2445 = vmatpush.msra.mxu0 0.0
      %2446 = vmatpush.msra.mxu0 0.0
      %2447 = vmatpush.msra.mxu0 0.0
      %2448 = vmatpush.msra.mxu0 0.0
      %2449 = vmatpush.msra.mxu0 0.0
      %2450 = vmatpush.msra.mxu0 0.0
      %2451 = vmatpush.msra.mxu0 0.0
      %2452 = vmatpush.msra.mxu0 %v1498
      %2453 = vmatpush.msra.mxu0 %v1497
      %2454 = vmatpush.msra.mxu0 %v1496
      %2455 = vmatpush.msra.mxu0 %v1495
      %2456 = vmatmul.f32.gmra.mxu0 %v2393
      %v2457 = vpop.f32.mrf.mxu0
      %v2458 = vadd.f32 %v2390, %v2457
      %2459 = vmatmul.f32.gmra.mxu0 %v2396
      %v2460 = vpop.f32.mrf.mxu0
      %v2461 = vadd.f32 %v2390, %v2460
      %2462 = vmatmul.f32.gmra.mxu0 %v2399
      %v2463 = vpop.f32.mrf.mxu0
      %v2464 = vadd.f32 %v2390, %v2463
      %2465 = vmatmul.f32.gmra.mxu0 %v2402
      %v2466 = vpop.f32.mrf.mxu0
      %v2467 = vadd.f32 %v2390, %v2466
      %2468 = vmatmul.f32.gmra.mxu0 %v2405
      %v2469 = vpop.f32.mrf.mxu0
      %v2470 = vadd.f32 %v2390, %v2469
      %2471 = vmatmul.f32.gmra.mxu0 %v2408
      %v2472 = vpop.f32.mrf.mxu0
      %v2473 = vadd.f32 %v2390, %v2472
      %2474 = vmatmul.f32.gmra.mxu0 %v2411
      %v2475 = vpop.f32.mrf.mxu0
      %v2476 = vadd.f32 %v2390, %v2475
      %2477 = vmatmul.f32.gmra.mxu0 %v2414
      %v2478 = vpop.f32.mrf.mxu0
      %v2479 = vadd.f32 %v2390, %v2478
      %2480 = vmatmul.f32.gmra.mxu0 %v2417
      %v2481 = vpop.f32.mrf.mxu0
      %v2482 = vadd.f32 %v2390, %v2481
      %2483 = vmatmul.f32.gmra.mxu0 %v2420
      %v2484 = vpop.f32.mrf.mxu0
      %v2485 = vadd.f32 %v2390, %v2484
      %2486 = vmatmul.f32.gmra.mxu0 %v2423
      %v2487 = vpop.f32.mrf.mxu0
      %v2488 = vadd.f32 %v2390, %v2487
      %2489 = vmatmul.f32.gmra.mxu0 %v2426
      %v2490 = vpop.f32.mrf.mxu0
      %v2491 = vadd.f32 %v2390, %v2490
      %2492 = vmatmul.f32.gmra.mxu0 %v2429
      %v2493 = vpop.f32.mrf.mxu0
      %v2494 = vadd.f32 %v2390, %v2493
      %2495 = vmatmul.f32.gmra.mxu0 %v2432
      %v2496 = vpop.f32.mrf.mxu0
      %v2497 = vadd.f32 %v2390, %v2496
      %2498 = vmatmul.f32.gmra.mxu0 %v2435
      %v2499 = vpop.f32.mrf.mxu0
      %v2500 = vadd.f32 %v2390, %v2499
      %2501 = vmatmul.f32.gmra.mxu0 %v2438
      %v2502 = vpop.f32.mrf.mxu0
      %v2503 = vadd.f32 %v2390, %v2502
      %2504 = vdwg.mxu0
      %s2505 = scalar_lea.vmem %s1, 128
      %v2506 = vld [vmem:[%s2505] sm:$0xff]
      %v2507 = vld [vmem:[%s2505 + $0x8] sm:$0xff]
      %v2508 = vld [vmem:[%s2505 + $0x10] sm:$0xff]
      %v2509 = vld [vmem:[%s2505 + $0x18] sm:$0xff]
      %v2510 = vld [vmem:[%s2505 + $0x20] sm:$0xff]
      %v2511 = vld [vmem:[%s2505 + $0x28] sm:$0xff]
      %v2512 = vld [vmem:[%s2505 + $0x30] sm:$0xff]
      %v2513 = vld [vmem:[%s2505 + $0x38] sm:$0xff]
      %s2514 = scalar_lea.vmem %s3, 1024
      %v2515 = vld [vmem:[%s2514] sm:$0xff]
      %v2516 = vld [vmem:[%s2514 + $0x8] sm:$0xff]
      %v2517 = vld [vmem:[%s2514 + $0x10] sm:$0xff]
      %v2518 = vld [vmem:[%s2514 + $0x18] sm:$0xff]
      %v2519 = vld [vmem:[%s2514 + $0x20] sm:$0xff]
      %v2520 = vld [vmem:[%s2514 + $0x28] sm:$0xff]
      %v2521 = vld [vmem:[%s2514 + $0x30] sm:$0xff]
      %v2522 = vld [vmem:[%s2514 + $0x38] sm:$0xff]
      %v2523 = vld [vmem:[%s2514 + $0x40] sm:$0xff]
      %v2524 = vld [vmem:[%s2514 + $0x48] sm:$0xff]
      %v2525 = vld [vmem:[%s2514 + $0x50] sm:$0xff]
      %v2526 = vld [vmem:[%s2514 + $0x58] sm:$0xff]
      %v2527 = vld [vmem:[%s2514 + $0x60] sm:$0xff]
      %v2528 = vld [vmem:[%s2514 + $0x68] sm:$0xff]
      %v2529 = vld [vmem:[%s2514 + $0x70] sm:$0xff]
      %v2530 = vld [vmem:[%s2514 + $0x78] sm:$0xff]
      %v2531 = vld [vmem:[%s2514 + $0x80] sm:$0xff]
      %v2532 = vld [vmem:[%s2514 + $0x88] sm:$0xff]
      %v2533 = vld [vmem:[%s2514 + $0x90] sm:$0xff]
      %v2534 = vld [vmem:[%s2514 + $0x98] sm:$0xff]
      %v2535 = vld [vmem:[%s2514 + $0xa0] sm:$0xff]
      %v2536 = vld [vmem:[%s2514 + $0xa8] sm:$0xff]
      %v2537 = vld [vmem:[%s2514 + $0xb0] sm:$0xff]
      %v2538 = vld [vmem:[%s2514 + $0xb8] sm:$0xff]
      %v2539 = vld [vmem:[%s2514 + $0xc0] sm:$0xff]
      %v2540 = vld [vmem:[%s2514 + $0xc8] sm:$0xff]
      %v2541 = vld [vmem:[%s2514 + $0xd0] sm:$0xff]
      %v2542 = vld [vmem:[%s2514 + $0xd8] sm:$0xff]
      %v2543 = vld [vmem:[%s2514 + $0xe0] sm:$0xff]
      %v2544 = vld [vmem:[%s2514 + $0xe8] sm:$0xff]
      %v2545 = vld [vmem:[%s2514 + $0xf0] sm:$0xff]
      %v2546 = vld [vmem:[%s2514 + $0xf8] sm:$0xff]
      %v2547 = vld [vmem:[%s2514 + $0x100] sm:$0xff]
      %v2548 = vld [vmem:[%s2514 + $0x108] sm:$0xff]
      %v2549 = vld [vmem:[%s2514 + $0x110] sm:$0xff]
      %v2550 = vld [vmem:[%s2514 + $0x118] sm:$0xff]
      %v2551 = vld [vmem:[%s2514 + $0x120] sm:$0xff]
      %v2552 = vld [vmem:[%s2514 + $0x128] sm:$0xff]
      %v2553 = vld [vmem:[%s2514 + $0x130] sm:$0xff]
      %v2554 = vld [vmem:[%s2514 + $0x138] sm:$0xff]
      %v2555 = vld [vmem:[%s2514 + $0x140] sm:$0xff]
      %v2556 = vld [vmem:[%s2514 + $0x148] sm:$0xff]
      %v2557 = vld [vmem:[%s2514 + $0x150] sm:$0xff]
      %v2558 = vld [vmem:[%s2514 + $0x158] sm:$0xff]
      %v2559 = vld [vmem:[%s2514 + $0x160] sm:$0xff]
      %v2560 = vld [vmem:[%s2514 + $0x168] sm:$0xff]
      %v2561 = vld [vmem:[%s2514 + $0x170] sm:$0xff]
      %v2562 = vld [vmem:[%s2514 + $0x178] sm:$0xff]
      %v2563 = vld [vmem:[%s2514 + $0x180] sm:$0xff]
      %v2564 = vld [vmem:[%s2514 + $0x188] sm:$0xff]
      %v2565 = vld [vmem:[%s2514 + $0x190] sm:$0xff]
      %v2566 = vld [vmem:[%s2514 + $0x198] sm:$0xff]
      %v2567 = vld [vmem:[%s2514 + $0x1a0] sm:$0xff]
      %v2568 = vld [vmem:[%s2514 + $0x1a8] sm:$0xff]
      %v2569 = vld [vmem:[%s2514 + $0x1b0] sm:$0xff]
      %v2570 = vld [vmem:[%s2514 + $0x1b8] sm:$0xff]
      %v2571 = vld [vmem:[%s2514 + $0x1c0] sm:$0xff]
      %v2572 = vld [vmem:[%s2514 + $0x1c8] sm:$0xff]
      %v2573 = vld [vmem:[%s2514 + $0x1d0] sm:$0xff]
      %v2574 = vld [vmem:[%s2514 + $0x1d8] sm:$0xff]
      %v2575 = vld [vmem:[%s2514 + $0x1e0] sm:$0xff]
      %v2576 = vld [vmem:[%s2514 + $0x1e8] sm:$0xff]
      %v2577 = vld [vmem:[%s2514 + $0x1f0] sm:$0xff]
      %v2578 = vld [vmem:[%s2514 + $0x1f8] sm:$0xff]
      %s2579 = scalar_lea.vmem %s5, 64
      %v2580 = vld [vmem:[%s2579] sm:$0xff]
      %v2581 = vld [vmem:[%s2579 + $0x8] sm:$0xff]
      %v2582 = vld [vmem:[%s2579 + $0x10] sm:$0xff]
      %v2583 = vld [vmem:[%s2579 + $0x18] sm:$0xff]
      %s2584 = scalar_lea.vmem %s2, 8
      %v2585 = vld [vmem:[%s2584] sm:$0xf]
      %v2587 = vperm.slane %v2585, 0
      %v2588 = vperm.slane %v2585, 1
      %v2589 = vperm.slane %v2585, 2
      %v2590 = vperm.slane %v2585, 3
      %v2596 = vsel %vm425, %v2458, 0
      %v2599 = vsel %vm425, %v2461, 0
      %v2602 = vsel %vm425, %v2464, 0
      %v2605 = vsel %vm425, %v2467, 0
      %v2608 = vsel %vm425, %v2470, 0
      %v2611 = vsel %vm425, %v2473, 0
      %v2614 = vsel %vm425, %v2476, 0
      %v2617 = vsel %vm425, %v2479, 0
      %v2620 = vsel %vm425, %v2482, 0
      %v2623 = vsel %vm425, %v2485, 0
      %v2626 = vsel %vm425, %v2488, 0
      %v2629 = vsel %vm425, %v2491, 0
      %v2632 = vsel %vm425, %v2494, 0
      %v2635 = vsel %vm425, %v2497, 0
      %v2638 = vsel %vm425, %v2500, 0
      %v2641 = vsel %vm425, %v2503, 0
      %2643 = vmatpush.msra.mxu0 0.0
      %2644 = vmatpush.msra.mxu0 0.0
      %2645 = vmatpush.msra.mxu0 0.0
      %2646 = vmatpush.msra.mxu0 0.0
      %2647 = vmatpush.msra.mxu0 0.0
      %2648 = vmatpush.msra.mxu0 0.0
      %2649 = vmatpush.msra.mxu0 0.0
      %2650 = vmatpush.msra.mxu0 0.0
      %2651 = vmatpush.msra.mxu0 0.0
      %2652 = vmatpush.msra.mxu0 0.0
      %2653 = vmatpush.msra.mxu0 0.0
      %2654 = vmatpush.msra.mxu0 0.0
      %2655 = vmatpush.msra.mxu0 0.0
      %2656 = vmatpush.msra.mxu0 0.0
      %2657 = vmatpush.msra.mxu0 %v2510
      %2658 = vmatpush.msra.mxu0 %v2506
      %2659 = vmatmul.f32.gmra.mxu0 %v2596
      %v2660 = vpop.f32.mrf.mxu0
      %v2661 = vadd.f32 %v2587, %v2660
      %2662 = vmatmul.f32.gmra.mxu0 %v2599
      %v2663 = vpop.f32.mrf.mxu0
      %v2664 = vadd.f32 %v2587, %v2663
      %2665 = vmatmul.f32.gmra.mxu0 %v2602
      %v2666 = vpop.f32.mrf.mxu0
      %v2667 = vadd.f32 %v2587, %v2666
      %2668 = vmatmul.f32.gmra.mxu0 %v2605
      %v2669 = vpop.f32.mrf.mxu0
      %v2670 = vadd.f32 %v2587, %v2669
      %2671 = vmatmul.f32.gmra.mxu0 %v2608
      %v2672 = vpop.f32.mrf.mxu0
      %v2673 = vadd.f32 %v2587, %v2672
      %2674 = vmatmul.f32.gmra.mxu0 %v2611
      %v2675 = vpop.f32.mrf.mxu0
      %v2676 = vadd.f32 %v2587, %v2675
      %2677 = vmatmul.f32.gmra.mxu0 %v2614
      %v2678 = vpop.f32.mrf.mxu0
      %v2679 = vadd.f32 %v2587, %v2678
      %2680 = vmatmul.f32.gmra.mxu0 %v2617
      %v2681 = vpop.f32.mrf.mxu0
      %v2682 = vadd.f32 %v2587, %v2681
      %2683 = vmatmul.f32.gmra.mxu0 %v2620
      %v2684 = vpop.f32.mrf.mxu0
      %v2685 = vadd.f32 %v2587, %v2684
      %2686 = vmatmul.f32.gmra.mxu0 %v2623
      %v2687 = vpop.f32.mrf.mxu0
      %v2688 = vadd.f32 %v2587, %v2687
      %2689 = vmatmul.f32.gmra.mxu0 %v2626
      %v2690 = vpop.f32.mrf.mxu0
      %v2691 = vadd.f32 %v2587, %v2690
      %2692 = vmatmul.f32.gmra.mxu0 %v2629
      %v2693 = vpop.f32.mrf.mxu0
      %v2694 = vadd.f32 %v2587, %v2693
      %2695 = vmatmul.f32.gmra.mxu0 %v2632
      %v2696 = vpop.f32.mrf.mxu0
      %v2697 = vadd.f32 %v2587, %v2696
      %2698 = vmatmul.f32.gmra.mxu0 %v2635
      %v2699 = vpop.f32.mrf.mxu0
      %v2700 = vadd.f32 %v2587, %v2699
      %2701 = vmatmul.f32.gmra.mxu0 %v2638
      %v2702 = vpop.f32.mrf.mxu0
      %v2703 = vadd.f32 %v2587, %v2702
      %2704 = vmatmul.f32.gmra.mxu0 %v2641
      %v2705 = vpop.f32.mrf.mxu0
      %v2706 = vadd.f32 %v2587, %v2705
      %2707 = vdwg.mxu0
      %2708 = vmatpush.msra.mxu0 0.0
      %2709 = vmatpush.msra.mxu0 0.0
      %2710 = vmatpush.msra.mxu0 0.0
      %2711 = vmatpush.msra.mxu0 0.0
      %2712 = vmatpush.msra.mxu0 0.0
      %2713 = vmatpush.msra.mxu0 0.0
      %2714 = vmatpush.msra.mxu0 0.0
      %2715 = vmatpush.msra.mxu0 0.0
      %2716 = vmatpush.msra.mxu0 0.0
      %2717 = vmatpush.msra.mxu0 0.0
      %2718 = vmatpush.msra.mxu0 0.0
      %2719 = vmatpush.msra.mxu0 0.0
      %2720 = vmatpush.msra.mxu0 0.0
      %2721 = vmatpush.msra.mxu0 0.0
      %2722 = vmatpush.msra.mxu0 %v2511
      %2723 = vmatpush.msra.mxu0 %v2507
      %2724 = vmatmul.f32.gmra.mxu0 %v2596
      %v2725 = vpop.f32.mrf.mxu0
      %v2726 = vadd.f32 %v2588, %v2725
      %2727 = vmatmul.f32.gmra.mxu0 %v2599
      %v2728 = vpop.f32.mrf.mxu0
      %v2729 = vadd.f32 %v2588, %v2728
      %2730 = vmatmul.f32.gmra.mxu0 %v2602
      %v2731 = vpop.f32.mrf.mxu0
      %v2732 = vadd.f32 %v2588, %v2731
      %2733 = vmatmul.f32.gmra.mxu0 %v2605
      %v2734 = vpop.f32.mrf.mxu0
      %v2735 = vadd.f32 %v2588, %v2734
      %2736 = vmatmul.f32.gmra.mxu0 %v2608
      %v2737 = vpop.f32.mrf.mxu0
      %v2738 = vadd.f32 %v2588, %v2737
      %2739 = vmatmul.f32.gmra.mxu0 %v2611
      %v2740 = vpop.f32.mrf.mxu0
      %v2741 = vadd.f32 %v2588, %v2740
      %2742 = vmatmul.f32.gmra.mxu0 %v2614
      %v2743 = vpop.f32.mrf.mxu0
      %v2744 = vadd.f32 %v2588, %v2743
      %2745 = vmatmul.f32.gmra.mxu0 %v2617
      %v2746 = vpop.f32.mrf.mxu0
      %v2747 = vadd.f32 %v2588, %v2746
      %2748 = vmatmul.f32.gmra.mxu0 %v2620
      %v2749 = vpop.f32.mrf.mxu0
      %v2750 = vadd.f32 %v2588, %v2749
      %2751 = vmatmul.f32.gmra.mxu0 %v2623
      %v2752 = vpop.f32.mrf.mxu0
      %v2753 = vadd.f32 %v2588, %v2752
      %2754 = vmatmul.f32.gmra.mxu0 %v2626
      %v2755 = vpop.f32.mrf.mxu0
      %v2756 = vadd.f32 %v2588, %v2755
      %2757 = vmatmul.f32.gmra.mxu0 %v2629
      %v2758 = vpop.f32.mrf.mxu0
      %v2759 = vadd.f32 %v2588, %v2758
      %2760 = vmatmul.f32.gmra.mxu0 %v2632
      %v2761 = vpop.f32.mrf.mxu0
      %v2762 = vadd.f32 %v2588, %v2761
      %2763 = vmatmul.f32.gmra.mxu0 %v2635
      %v2764 = vpop.f32.mrf.mxu0
      %v2765 = vadd.f32 %v2588, %v2764
      %2766 = vmatmul.f32.gmra.mxu0 %v2638
      %v2767 = vpop.f32.mrf.mxu0
      %v2768 = vadd.f32 %v2588, %v2767
      %2769 = vmatmul.f32.gmra.mxu0 %v2641
      %v2770 = vpop.f32.mrf.mxu0
      %v2771 = vadd.f32 %v2588, %v2770
      %2772 = vdwg.mxu0
      %2773 = vmatpush.msra.mxu0 0.0
      %2774 = vmatpush.msra.mxu0 0.0
      %2775 = vmatpush.msra.mxu0 0.0
      %2776 = vmatpush.msra.mxu0 0.0
      %2777 = vmatpush.msra.mxu0 0.0
      %2778 = vmatpush.msra.mxu0 0.0
      %2779 = vmatpush.msra.mxu0 0.0
      %2780 = vmatpush.msra.mxu0 0.0
      %2781 = vmatpush.msra.mxu0 0.0
      %2782 = vmatpush.msra.mxu0 0.0
      %2783 = vmatpush.msra.mxu0 0.0
      %2784 = vmatpush.msra.mxu0 0.0
      %2785 = vmatpush.msra.mxu0 0.0
      %2786 = vmatpush.msra.mxu0 0.0
      %2787 = vmatpush.msra.mxu0 %v2512
      %2788 = vmatpush.msra.mxu0 %v2508
      %2789 = vmatmul.f32.gmra.mxu0 %v2596
      %v2790 = vpop.f32.mrf.mxu0
      %v2791 = vadd.f32 %v2589, %v2790
      %2792 = vmatmul.f32.gmra.mxu0 %v2599
      %v2793 = vpop.f32.mrf.mxu0
      %v2794 = vadd.f32 %v2589, %v2793
      %2795 = vmatmul.f32.gmra.mxu0 %v2602
      %v2796 = vpop.f32.mrf.mxu0
      %v2797 = vadd.f32 %v2589, %v2796
      %2798 = vmatmul.f32.gmra.mxu0 %v2605
      %v2799 = vpop.f32.mrf.mxu0
      %v2800 = vadd.f32 %v2589, %v2799
      %2801 = vmatmul.f32.gmra.mxu0 %v2608
      %v2802 = vpop.f32.mrf.mxu0
      %v2803 = vadd.f32 %v2589, %v2802
      %2804 = vmatmul.f32.gmra.mxu0 %v2611
      %v2805 = vpop.f32.mrf.mxu0
      %v2806 = vadd.f32 %v2589, %v2805
      %2807 = vmatmul.f32.gmra.mxu0 %v2614
      %v2808 = vpop.f32.mrf.mxu0
      %v2809 = vadd.f32 %v2589, %v2808
      %2810 = vmatmul.f32.gmra.mxu0 %v2617
      %v2811 = vpop.f32.mrf.mxu0
      %v2812 = vadd.f32 %v2589, %v2811
      %2813 = vmatmul.f32.gmra.mxu0 %v2620
      %v2814 = vpop.f32.mrf.mxu0
      %v2815 = vadd.f32 %v2589, %v2814
      %2816 = vmatmul.f32.gmra.mxu0 %v2623
      %v2817 = vpop.f32.mrf.mxu0
      %v2818 = vadd.f32 %v2589, %v2817
      %2819 = vmatmul.f32.gmra.mxu0 %v2626
      %v2820 = vpop.f32.mrf.mxu0
      %v2821 = vadd.f32 %v2589, %v2820
      %2822 = vmatmul.f32.gmra.mxu0 %v2629
      %v2823 = vpop.f32.mrf.mxu0
      %v2824 = vadd.f32 %v2589, %v2823
      %2825 = vmatmul.f32.gmra.mxu0 %v2632
      %v2826 = vpop.f32.mrf.mxu0
      %v2827 = vadd.f32 %v2589, %v2826
      %2828 = vmatmul.f32.gmra.mxu0 %v2635
      %v2829 = vpop.f32.mrf.mxu0
      %v2830 = vadd.f32 %v2589, %v2829
      %2831 = vmatmul.f32.gmra.mxu0 %v2638
      %v2832 = vpop.f32.mrf.mxu0
      %v2833 = vadd.f32 %v2589, %v2832
      %2834 = vmatmul.f32.gmra.mxu0 %v2641
      %v2835 = vpop.f32.mrf.mxu0
      %v2836 = vadd.f32 %v2589, %v2835
      %2837 = vdwg.mxu0
      %2838 = vmatpush.msra.mxu0 0.0
      %2839 = vmatpush.msra.mxu0 0.0
      %2840 = vmatpush.msra.mxu0 0.0
      %2841 = vmatpush.msra.mxu0 0.0
      %2842 = vmatpush.msra.mxu0 0.0
      %2843 = vmatpush.msra.mxu0 0.0
      %2844 = vmatpush.msra.mxu0 0.0
      %2845 = vmatpush.msra.mxu0 0.0
      %2846 = vmatpush.msra.mxu0 0.0
      %2847 = vmatpush.msra.mxu0 0.0
      %2848 = vmatpush.msra.mxu0 0.0
      %2849 = vmatpush.msra.mxu0 0.0
      %2850 = vmatpush.msra.mxu0 0.0
      %2851 = vmatpush.msra.mxu0 0.0
      %2852 = vmatpush.msra.mxu0 %v2513
      %2853 = vmatpush.msra.mxu0 %v2509
      %2854 = vmatmul.f32.gmra.mxu0 %v2596
      %v2855 = vpop.f32.mrf.mxu0
      %v2856 = vadd.f32 %v2590, %v2855
      %2857 = vmatmul.f32.gmra.mxu0 %v2599
      %v2858 = vpop.f32.mrf.mxu0
      %v2859 = vadd.f32 %v2590, %v2858
      %2860 = vmatmul.f32.gmra.mxu0 %v2602
      %v2861 = vpop.f32.mrf.mxu0
      %v2862 = vadd.f32 %v2590, %v2861
      %2863 = vmatmul.f32.gmra.mxu0 %v2605
      %v2864 = vpop.f32.mrf.mxu0
      %v2865 = vadd.f32 %v2590, %v2864
      %2866 = vmatmul.f32.gmra.mxu0 %v2608
      %v2867 = vpop.f32.mrf.mxu0
      %v2868 = vadd.f32 %v2590, %v2867
      %2869 = vmatmul.f32.gmra.mxu0 %v2611
      %v2870 = vpop.f32.mrf.mxu0
      %v2871 = vadd.f32 %v2590, %v2870
      %2872 = vmatmul.f32.gmra.mxu0 %v2614
      %v2873 = vpop.f32.mrf.mxu0
      %v2874 = vadd.f32 %v2590, %v2873
      %2875 = vmatmul.f32.gmra.mxu0 %v2617
      %v2876 = vpop.f32.mrf.mxu0
      %v2877 = vadd.f32 %v2590, %v2876
      %2878 = vmatmul.f32.gmra.mxu0 %v2620
      %v2879 = vpop.f32.mrf.mxu0
      %v2880 = vadd.f32 %v2590, %v2879
      %2881 = vmatmul.f32.gmra.mxu0 %v2623
      %v2882 = vpop.f32.mrf.mxu0
      %v2883 = vadd.f32 %v2590, %v2882
      %2884 = vmatmul.f32.gmra.mxu0 %v2626
      %v2885 = vpop.f32.mrf.mxu0
      %v2886 = vadd.f32 %v2590, %v2885
      %2887 = vmatmul.f32.gmra.mxu0 %v2629
      %v2888 = vpop.f32.mrf.mxu0
      %v2889 = vadd.f32 %v2590, %v2888
      %2890 = vmatmul.f32.gmra.mxu0 %v2632
      %v2891 = vpop.f32.mrf.mxu0
      %v2892 = vadd.f32 %v2590, %v2891
      %2893 = vmatmul.f32.gmra.mxu0 %v2635
      %v2894 = vpop.f32.mrf.mxu0
      %v2895 = vadd.f32 %v2590, %v2894
      %2896 = vmatmul.f32.gmra.mxu0 %v2638
      %v2897 = vpop.f32.mrf.mxu0
      %v2898 = vadd.f32 %v2590, %v2897
      %2899 = vmatmul.f32.gmra.mxu0 %v2641
      %v2900 = vpop.f32.mrf.mxu0
      %v2901 = vadd.f32 %v2590, %v2900
      %2902 = vdwg.mxu0
      %v2903 = vmax.f32 %v2661, 0.0
      %v2904 = vmax.f32 %v2726, 0.0
      %v2905 = vmax.f32 %v2791, 0.0
      %v2906 = vmax.f32 %v2856, 0.0
      %v2907 = vmax.f32 %v2664, 0.0
      %v2908 = vmax.f32 %v2729, 0.0
      %v2909 = vmax.f32 %v2794, 0.0
      %v2910 = vmax.f32 %v2859, 0.0
      %v2911 = vmax.f32 %v2667, 0.0
      %v2912 = vmax.f32 %v2732, 0.0
      %v2913 = vmax.f32 %v2797, 0.0
      %v2914 = vmax.f32 %v2862, 0.0
      %v2915 = vmax.f32 %v2670, 0.0
      %v2916 = vmax.f32 %v2735, 0.0
      %v2917 = vmax.f32 %v2800, 0.0
      %v2918 = vmax.f32 %v2865, 0.0
      %v2919 = vmax.f32 %v2673, 0.0
      %v2920 = vmax.f32 %v2738, 0.0
      %v2921 = vmax.f32 %v2803, 0.0
      %v2922 = vmax.f32 %v2868, 0.0
      %v2923 = vmax.f32 %v2676, 0.0
      %v2924 = vmax.f32 %v2741, 0.0
      %v2925 = vmax.f32 %v2806, 0.0
      %v2926 = vmax.f32 %v2871, 0.0
      %v2927 = vmax.f32 %v2679, 0.0
      %v2928 = vmax.f32 %v2744, 0.0
      %v2929 = vmax.f32 %v2809, 0.0
      %v2930 = vmax.f32 %v2874, 0.0
      %v2931 = vmax.f32 %v2682, 0.0
      %v2932 = vmax.f32 %v2747, 0.0
      %v2933 = vmax.f32 %v2812, 0.0
      %v2934 = vmax.f32 %v2877, 0.0
      %v2935 = vmax.f32 %v2685, 0.0
      %v2936 = vmax.f32 %v2750, 0.0
      %v2937 = vmax.f32 %v2815, 0.0
      %v2938 = vmax.f32 %v2880, 0.0
      %v2939 = vmax.f32 %v2688, 0.0
      %v2940 = vmax.f32 %v2753, 0.0
      %v2941 = vmax.f32 %v2818, 0.0
      %v2942 = vmax.f32 %v2883, 0.0
      %v2943 = vmax.f32 %v2691, 0.0
      %v2944 = vmax.f32 %v2756, 0.0
      %v2945 = vmax.f32 %v2821, 0.0
      %v2946 = vmax.f32 %v2886, 0.0
      %v2947 = vmax.f32 %v2694, 0.0
      %v2948 = vmax.f32 %v2759, 0.0
      %v2949 = vmax.f32 %v2824, 0.0
      %v2950 = vmax.f32 %v2889, 0.0
      %v2951 = vmax.f32 %v2697, 0.0
      %v2952 = vmax.f32 %v2762, 0.0
      %v2953 = vmax.f32 %v2827, 0.0
      %v2954 = vmax.f32 %v2892, 0.0
      %v2955 = vmax.f32 %v2700, 0.0
      %v2956 = vmax.f32 %v2765, 0.0
      %v2957 = vmax.f32 %v2830, 0.0
      %v2958 = vmax.f32 %v2895, 0.0
      %v2959 = vmax.f32 %v2703, 0.0
      %v2960 = vmax.f32 %v2768, 0.0
      %v2961 = vmax.f32 %v2833, 0.0
      %v2962 = vmax.f32 %v2898, 0.0
      %v2963 = vmax.f32 %v2706, 0.0
      %v2964 = vmax.f32 %v2771, 0.0
      %v2965 = vmax.f32 %v2836, 0.0
      %v2966 = vmax.f32 %v2901, 0.0
      %s2967 = scalar_lea.vmem %s4, 2
      %v2968 = vld [vmem:[%s2967] sm:$0x1]
      %v2970 = vperm.slane %v2968, 0
      %2972 = vmatpush.msra.mxu0 %v2530
      %2973 = vmatpush.msra.mxu0 %v2529
      %2974 = vmatpush.msra.mxu0 %v2528
      %2975 = vmatpush.msra.mxu0 %v2527
      %2976 = vmatpush.msra.mxu0 %v2526
      %2977 = vmatpush.msra.mxu0 %v2525
      %2978 = vmatpush.msra.mxu0 %v2524
      %2979 = vmatpush.msra.mxu0 %v2523
      %2980 = vmatpush.msra.mxu0 %v2522
      %2981 = vmatpush.msra.mxu0 %v2521
      %2982 = vmatpush.msra.mxu0 %v2520
      %2983 = vmatpush.msra.mxu0 %v2519
      %2984 = vmatpush.msra.mxu0 %v2518
      %2985 = vmatpush.msra.mxu0 %v2517
      %2986 = vmatpush.msra.mxu0 %v2516
      %2987 = vmatpush.msra.mxu0 %v2515
      %2988 = vmatmul.f32.gmra.mxu0 %v2903
      %v2989 = vpop.f32.mrf.mxu0
      %v2990 = vadd.f32 %v2970, %v2989
      %2991 = vmatmul.f32.gmra.mxu0 %v2907
      %v2992 = vpop.f32.mrf.mxu0
      %v2993 = vadd.f32 %v2970, %v2992
      %2994 = vmatmul.f32.gmra.mxu0 %v2911
      %v2995 = vpop.f32.mrf.mxu0
      %v2996 = vadd.f32 %v2970, %v2995
      %2997 = vmatmul.f32.gmra.mxu0 %v2915
      %v2998 = vpop.f32.mrf.mxu0
      %v2999 = vadd.f32 %v2970, %v2998
      %3000 = vmatmul.f32.gmra.mxu0 %v2919
      %v3001 = vpop.f32.mrf.mxu0
      %v3002 = vadd.f32 %v2970, %v3001
      %3003 = vmatmul.f32.gmra.mxu0 %v2923
      %v3004 = vpop.f32.mrf.mxu0
      %v3005 = vadd.f32 %v2970, %v3004
      %3006 = vmatmul.f32.gmra.mxu0 %v2927
      %v3007 = vpop.f32.mrf.mxu0
      %v3008 = vadd.f32 %v2970, %v3007
      %3009 = vmatmul.f32.gmra.mxu0 %v2931
      %v3010 = vpop.f32.mrf.mxu0
      %v3011 = vadd.f32 %v2970, %v3010
      %3012 = vmatmul.f32.gmra.mxu0 %v2935
      %v3013 = vpop.f32.mrf.mxu0
      %v3014 = vadd.f32 %v2970, %v3013
      %3015 = vmatmul.f32.gmra.mxu0 %v2939
      %v3016 = vpop.f32.mrf.mxu0
      %v3017 = vadd.f32 %v2970, %v3016
      %3018 = vmatmul.f32.gmra.mxu0 %v2943
      %v3019 = vpop.f32.mrf.mxu0
      %v3020 = vadd.f32 %v2970, %v3019
      %3021 = vmatmul.f32.gmra.mxu0 %v2947
      %v3022 = vpop.f32.mrf.mxu0
      %v3023 = vadd.f32 %v2970, %v3022
      %3024 = vmatmul.f32.gmra.mxu0 %v2951
      %v3025 = vpop.f32.mrf.mxu0
      %v3026 = vadd.f32 %v2970, %v3025
      %3027 = vmatmul.f32.gmra.mxu0 %v2955
      %v3028 = vpop.f32.mrf.mxu0
      %v3029 = vadd.f32 %v2970, %v3028
      %3030 = vmatmul.f32.gmra.mxu0 %v2959
      %v3031 = vpop.f32.mrf.mxu0
      %v3032 = vadd.f32 %v2970, %v3031
      %3033 = vmatmul.f32.gmra.mxu0 %v2963
      %v3034 = vpop.f32.mrf.mxu0
      %v3035 = vadd.f32 %v2970, %v3034
      %3036 = vdwg.mxu0
      %3037 = vmatpush.msra.mxu0 %v2546
      %3038 = vmatpush.msra.mxu0 %v2545
      %3039 = vmatpush.msra.mxu0 %v2544
      %3040 = vmatpush.msra.mxu0 %v2543
      %3041 = vmatpush.msra.mxu0 %v2542
      %3042 = vmatpush.msra.mxu0 %v2541
      %3043 = vmatpush.msra.mxu0 %v2540
      %3044 = vmatpush.msra.mxu0 %v2539
      %3045 = vmatpush.msra.mxu0 %v2538
      %3046 = vmatpush.msra.mxu0 %v2537
      %3047 = vmatpush.msra.mxu0 %v2536
      %3048 = vmatpush.msra.mxu0 %v2535
      %3049 = vmatpush.msra.mxu0 %v2534
      %3050 = vmatpush.msra.mxu0 %v2533
      %3051 = vmatpush.msra.mxu0 %v2532
      %3052 = vmatpush.msra.mxu0 %v2531
      %3053 = vmatmul.f32.gmra.mxu0 %v2904
      %v3054 = vpop.f32.mrf.mxu0
      %v3055 = vadd.f32 %v2990, %v3054
      %3056 = vmatmul.f32.gmra.mxu0 %v2908
      %v3057 = vpop.f32.mrf.mxu0
      %v3058 = vadd.f32 %v2993, %v3057
      %3059 = vmatmul.f32.gmra.mxu0 %v2912
      %v3060 = vpop.f32.mrf.mxu0
      %v3061 = vadd.f32 %v2996, %v3060
      %3062 = vmatmul.f32.gmra.mxu0 %v2916
      %v3063 = vpop.f32.mrf.mxu0
      %v3064 = vadd.f32 %v2999, %v3063
      %3065 = vmatmul.f32.gmra.mxu0 %v2920
      %v3066 = vpop.f32.mrf.mxu0
      %v3067 = vadd.f32 %v3002, %v3066
      %3068 = vmatmul.f32.gmra.mxu0 %v2924
      %v3069 = vpop.f32.mrf.mxu0
      %v3070 = vadd.f32 %v3005, %v3069
      %3071 = vmatmul.f32.gmra.mxu0 %v2928
      %v3072 = vpop.f32.mrf.mxu0
      %v3073 = vadd.f32 %v3008, %v3072
      %3074 = vmatmul.f32.gmra.mxu0 %v2932
      %v3075 = vpop.f32.mrf.mxu0
      %v3076 = vadd.f32 %v3011, %v3075
      %3077 = vmatmul.f32.gmra.mxu0 %v2936
      %v3078 = vpop.f32.mrf.mxu0
      %v3079 = vadd.f32 %v3014, %v3078
      %3080 = vmatmul.f32.gmra.mxu0 %v2940
      %v3081 = vpop.f32.mrf.mxu0
      %v3082 = vadd.f32 %v3017, %v3081
      %3083 = vmatmul.f32.gmra.mxu0 %v2944
      %v3084 = vpop.f32.mrf.mxu0
      %v3085 = vadd.f32 %v3020, %v3084
      %3086 = vmatmul.f32.gmra.mxu0 %v2948
      %v3087 = vpop.f32.mrf.mxu0
      %v3088 = vadd.f32 %v3023, %v3087
      %3089 = vmatmul.f32.gmra.mxu0 %v2952
      %v3090 = vpop.f32.mrf.mxu0
      %v3091 = vadd.f32 %v3026, %v3090
      %3092 = vmatmul.f32.gmra.mxu0 %v2956
      %v3093 = vpop.f32.mrf.mxu0
      %v3094 = vadd.f32 %v3029, %v3093
      %3095 = vmatmul.f32.gmra.mxu0 %v2960
      %v3096 = vpop.f32.mrf.mxu0
      %v3097 = vadd.f32 %v3032, %v3096
      %3098 = vmatmul.f32.gmra.mxu0 %v2964
      %v3099 = vpop.f32.mrf.mxu0
      %v3100 = vadd.f32 %v3035, %v3099
      %3101 = vdwg.mxu0
      %3102 = vmatpush.msra.mxu0 %v2562
      %3103 = vmatpush.msra.mxu0 %v2561
      %3104 = vmatpush.msra.mxu0 %v2560
      %3105 = vmatpush.msra.mxu0 %v2559
      %3106 = vmatpush.msra.mxu0 %v2558
      %3107 = vmatpush.msra.mxu0 %v2557
      %3108 = vmatpush.msra.mxu0 %v2556
      %3109 = vmatpush.msra.mxu0 %v2555
      %3110 = vmatpush.msra.mxu0 %v2554
      %3111 = vmatpush.msra.mxu0 %v2553
      %3112 = vmatpush.msra.mxu0 %v2552
      %3113 = vmatpush.msra.mxu0 %v2551
      %3114 = vmatpush.msra.mxu0 %v2550
      %3115 = vmatpush.msra.mxu0 %v2549
      %3116 = vmatpush.msra.mxu0 %v2548
      %3117 = vmatpush.msra.mxu0 %v2547
      %3118 = vmatmul.f32.gmra.mxu0 %v2905
      %v3119 = vpop.f32.mrf.mxu0
      %v3120 = vadd.f32 %v3055, %v3119
      %3121 = vmatmul.f32.gmra.mxu0 %v2909
      %v3122 = vpop.f32.mrf.mxu0
      %v3123 = vadd.f32 %v3058, %v3122
      %3124 = vmatmul.f32.gmra.mxu0 %v2913
      %v3125 = vpop.f32.mrf.mxu0
      %v3126 = vadd.f32 %v3061, %v3125
      %3127 = vmatmul.f32.gmra.mxu0 %v2917
      %v3128 = vpop.f32.mrf.mxu0
      %v3129 = vadd.f32 %v3064, %v3128
      %3130 = vmatmul.f32.gmra.mxu0 %v2921
      %v3131 = vpop.f32.mrf.mxu0
      %v3132 = vadd.f32 %v3067, %v3131
      %3133 = vmatmul.f32.gmra.mxu0 %v2925
      %v3134 = vpop.f32.mrf.mxu0
      %v3135 = vadd.f32 %v3070, %v3134
      %3136 = vmatmul.f32.gmra.mxu0 %v2929
      %v3137 = vpop.f32.mrf.mxu0
      %v3138 = vadd.f32 %v3073, %v3137
      %3139 = vmatmul.f32.gmra.mxu0 %v2933
      %v3140 = vpop.f32.mrf.mxu0
      %v3141 = vadd.f32 %v3076, %v3140
      %3142 = vmatmul.f32.gmra.mxu0 %v2937
      %v3143 = vpop.f32.mrf.mxu0
      %v3144 = vadd.f32 %v3079, %v3143
      %3145 = vmatmul.f32.gmra.mxu0 %v2941
      %v3146 = vpop.f32.mrf.mxu0
      %v3147 = vadd.f32 %v3082, %v3146
      %3148 = vmatmul.f32.gmra.mxu0 %v2945
      %v3149 = vpop.f32.mrf.mxu0
      %v3150 = vadd.f32 %v3085, %v3149
      %3151 = vmatmul.f32.gmra.mxu0 %v2949
      %v3152 = vpop.f32.mrf.mxu0
      %v3153 = vadd.f32 %v3088, %v3152
      %3154 = vmatmul.f32.gmra.mxu0 %v2953
      %v3155 = vpop.f32.mrf.mxu0
      %v3156 = vadd.f32 %v3091, %v3155
      %3157 = vmatmul.f32.gmra.mxu0 %v2957
      %v3158 = vpop.f32.mrf.mxu0
      %v3159 = vadd.f32 %v3094, %v3158
      %3160 = vmatmul.f32.gmra.mxu0 %v2961
      %v3161 = vpop.f32.mrf.mxu0
      %v3162 = vadd.f32 %v3097, %v3161
      %3163 = vmatmul.f32.gmra.mxu0 %v2965
      %v3164 = vpop.f32.mrf.mxu0
      %v3165 = vadd.f32 %v3100, %v3164
      %3166 = vdwg.mxu0
      %3167 = vmatpush.msra.mxu0 %v2578
      %3168 = vmatpush.msra.mxu0 %v2577
      %3169 = vmatpush.msra.mxu0 %v2576
      %3170 = vmatpush.msra.mxu0 %v2575
      %3171 = vmatpush.msra.mxu0 %v2574
      %3172 = vmatpush.msra.mxu0 %v2573
      %3173 = vmatpush.msra.mxu0 %v2572
      %3174 = vmatpush.msra.mxu0 %v2571
      %3175 = vmatpush.msra.mxu0 %v2570
      %3176 = vmatpush.msra.mxu0 %v2569
      %3177 = vmatpush.msra.mxu0 %v2568
      %3178 = vmatpush.msra.mxu0 %v2567
      %3179 = vmatpush.msra.mxu0 %v2566
      %3180 = vmatpush.msra.mxu0 %v2565
      %3181 = vmatpush.msra.mxu0 %v2564
      %3182 = vmatpush.msra.mxu0 %v2563
      %3183 = vmatmul.f32.gmra.mxu0 %v2906
      %v3184 = vpop.f32.mrf.mxu0
      %v3185 = vadd.f32 %v3120, %v3184
      %3186 = vmatmul.f32.gmra.mxu0 %v2910
      %v3187 = vpop.f32.mrf.mxu0
      %v3188 = vadd.f32 %v3123, %v3187
      %3189 = vmatmul.f32.gmra.mxu0 %v2914
      %v3190 = vpop.f32.mrf.mxu0
      %v3191 = vadd.f32 %v3126, %v3190
      %3192 = vmatmul.f32.gmra.mxu0 %v2918
      %v3193 = vpop.f32.mrf.mxu0
      %v3194 = vadd.f32 %v3129, %v3193
      %3195 = vmatmul.f32.gmra.mxu0 %v2922
      %v3196 = vpop.f32.mrf.mxu0
      %v3197 = vadd.f32 %v3132, %v3196
      %3198 = vmatmul.f32.gmra.mxu0 %v2926
      %v3199 = vpop.f32.mrf.mxu0
      %v3200 = vadd.f32 %v3135, %v3199
      %3201 = vmatmul.f32.gmra.mxu0 %v2930
      %v3202 = vpop.f32.mrf.mxu0
      %v3203 = vadd.f32 %v3138, %v3202
      %3204 = vmatmul.f32.gmra.mxu0 %v2934
      %v3205 = vpop.f32.mrf.mxu0
      %v3206 = vadd.f32 %v3141, %v3205
      %3207 = vmatmul.f32.gmra.mxu0 %v2938
      %v3208 = vpop.f32.mrf.mxu0
      %v3209 = vadd.f32 %v3144, %v3208
      %3210 = vmatmul.f32.gmra.mxu0 %v2942
      %v3211 = vpop.f32.mrf.mxu0
      %v3212 = vadd.f32 %v3147, %v3211
      %3213 = vmatmul.f32.gmra.mxu0 %v2946
      %v3214 = vpop.f32.mrf.mxu0
      %v3215 = vadd.f32 %v3150, %v3214
      %3216 = vmatmul.f32.gmra.mxu0 %v2950
      %v3217 = vpop.f32.mrf.mxu0
      %v3218 = vadd.f32 %v3153, %v3217
      %3219 = vmatmul.f32.gmra.mxu0 %v2954
      %v3220 = vpop.f32.mrf.mxu0
      %v3221 = vadd.f32 %v3156, %v3220
      %3222 = vmatmul.f32.gmra.mxu0 %v2958
      %v3223 = vpop.f32.mrf.mxu0
      %v3224 = vadd.f32 %v3159, %v3223
      %3225 = vmatmul.f32.gmra.mxu0 %v2962
      %v3226 = vpop.f32.mrf.mxu0
      %v3227 = vadd.f32 %v3162, %v3226
      %3228 = vmatmul.f32.gmra.mxu0 %v2966
      %v3229 = vpop.f32.mrf.mxu0
      %v3230 = vadd.f32 %v3165, %v3229
      %3231 = vdwg.mxu0
      %v3232 = vtanh.pop %v3185
      %v3233 = vtanh.pop %v3188
      %v3234 = vtanh.pop %v3191
      %v3235 = vtanh.pop %v3194
      %v3236 = vtanh.pop %v3197
      %v3237 = vtanh.pop %v3200
      %v3238 = vtanh.pop %v3203
      %v3239 = vtanh.pop %v3206
      %v3240 = vtanh.pop %v3209
      %v3241 = vtanh.pop %v3212
      %v3242 = vtanh.pop %v3215
      %v3243 = vtanh.pop %v3218
      %v3244 = vtanh.pop %v3221
      %v3245 = vtanh.pop %v3224
      %v3246 = vtanh.pop %v3227
      %v3247 = vtanh.pop %v3230
      %v3248 = vmul.f32 %v3232, 2.0
      %v3249 = vmul.f32 %v3233, 2.0
      %v3250 = vmul.f32 %v3234, 2.0
      %v3251 = vmul.f32 %v3235, 2.0
      %v3252 = vmul.f32 %v3236, 2.0
      %v3253 = vmul.f32 %v3237, 2.0
      %v3254 = vmul.f32 %v3238, 2.0
      %v3255 = vmul.f32 %v3239, 2.0
      %v3256 = vmul.f32 %v3240, 2.0
      %v3257 = vmul.f32 %v3241, 2.0
      %v3258 = vmul.f32 %v3242, 2.0
      %v3259 = vmul.f32 %v3243, 2.0
      %v3260 = vmul.f32 %v3244, 2.0
      %v3261 = vmul.f32 %v3245, 2.0
      %v3262 = vmul.f32 %v3246, 2.0
      %v3263 = vmul.f32 %v3247, 2.0
      %v3264 = vmul.f32 %v3248, 1.442695
      %v3265 = vpow.pop %v3264
      %v3266 = vmul.f32 %v3249, 1.442695
      %v3267 = vpow.pop %v3266
      %v3268 = vmul.f32 %v3250, 1.442695
      %v3269 = vpow.pop %v3268
      %v3270 = vmul.f32 %v3251, 1.442695
      %v3271 = vpow.pop %v3270
      %v3272 = vmul.f32 %v3252, 1.442695
      %v3273 = vpow.pop %v3272
      %v3274 = vmul.f32 %v3253, 1.442695
      %v3275 = vpow.pop %v3274
      %v3276 = vmul.f32 %v3254, 1.442695
      %v3277 = vpow.pop %v3276
      %v3278 = vmul.f32 %v3255, 1.442695
      %v3279 = vpow.pop %v3278
      %v3280 = vmul.f32 %v3256, 1.442695
      %v3281 = vpow.pop %v3280
      %v3282 = vmul.f32 %v3257, 1.442695
      %v3283 = vpow.pop %v3282
      %v3284 = vmul.f32 %v3258, 1.442695
      %v3285 = vpow.pop %v3284
      %v3286 = vmul.f32 %v3259, 1.442695
      %v3287 = vpow.pop %v3286
      %v3288 = vmul.f32 %v3260, 1.442695
      %v3289 = vpow.pop %v3288
      %v3290 = vmul.f32 %v3261, 1.442695
      %v3291 = vpow.pop %v3290
      %v3292 = vmul.f32 %v3262, 1.442695
      %v3293 = vpow.pop %v3292
      %v3294 = vmul.f32 %v3263, 1.442695
      %v3295 = vpow.pop %v3294
      %3312 = vrot.lane.b32.xlu0 %v3265, 16
      %v3313 = vpop.permute.xlu0 %3312
      %3314 = vrot.lane.b32.xlu0 %v3267, 16
      %v3315 = vpop.permute.xlu0 %3314
      %3316 = vrot.lane.b32.xlu0 %v3269, 16
      %v3317 = vpop.permute.xlu0 %3316
      %3318 = vrot.lane.b32.xlu0 %v3271, 16
      %v3319 = vpop.permute.xlu0 %3318
      %3320 = vrot.lane.b32.xlu0 %v3273, 16
      %v3321 = vpop.permute.xlu0 %3320
      %3322 = vrot.lane.b32.xlu0 %v3275, 16
      %v3323 = vpop.permute.xlu0 %3322
      %3324 = vrot.lane.b32.xlu0 %v3277, 16
      %v3325 = vpop.permute.xlu0 %3324
      %3326 = vrot.lane.b32.xlu0 %v3279, 16
      %v3327 = vpop.permute.xlu0 %3326
      %3328 = vrot.lane.b32.xlu0 %v3281, 16
      %v3329 = vpop.permute.xlu0 %3328
      %3330 = vrot.lane.b32.xlu0 %v3283, 16
      %v3331 = vpop.permute.xlu0 %3330
      %3332 = vrot.lane.b32.xlu0 %v3285, 16
      %v3333 = vpop.permute.xlu0 %3332
      %3334 = vrot.lane.b32.xlu0 %v3287, 16
      %v3335 = vpop.permute.xlu0 %3334
      %3336 = vrot.lane.b32.xlu0 %v3289, 16
      %v3337 = vpop.permute.xlu0 %3336
      %3338 = vrot.lane.b32.xlu0 %v3291, 16
      %v3339 = vpop.permute.xlu0 %3338
      %3340 = vrot.lane.b32.xlu0 %v3293, 16
      %v3341 = vpop.permute.xlu0 %3340
      %3342 = vrot.lane.b32.xlu0 %v3295, 16
      %v3343 = vpop.permute.xlu0 %3342
      %v3360 = vmul.f32 %v2458, %v3313
      %v3361 = vmul.f32 %v2461, %v3315
      %v3362 = vmul.f32 %v2464, %v3317
      %v3363 = vmul.f32 %v2467, %v3319
      %v3364 = vmul.f32 %v2470, %v3321
      %v3365 = vmul.f32 %v2473, %v3323
      %v3366 = vmul.f32 %v2476, %v3325
      %v3367 = vmul.f32 %v2479, %v3327
      %v3368 = vmul.f32 %v2482, %v3329
      %v3369 = vmul.f32 %v2485, %v3331
      %v3370 = vmul.f32 %v2488, %v3333
      %v3371 = vmul.f32 %v2491, %v3335
      %v3372 = vmul.f32 %v2494, %v3337
      %v3373 = vmul.f32 %v2497, %v3339
      %v3374 = vmul.f32 %v2500, %v3341
      %v3375 = vmul.f32 %v2503, %v3343
      %v3376 = vadd.f32 %v3360, %v3185
      %v3377 = vadd.f32 %v3361, %v3188
      %v3378 = vadd.f32 %v3362, %v3191
      %v3379 = vadd.f32 %v3363, %v3194
      %v3380 = vadd.f32 %v3364, %v3197
      %v3381 = vadd.f32 %v3365, %v3200
      %v3382 = vadd.f32 %v3366, %v3203
      %v3383 = vadd.f32 %v3367, %v3206
      %v3384 = vadd.f32 %v3368, %v3209
      %v3385 = vadd.f32 %v3369, %v3212
      %v3386 = vadd.f32 %v3370, %v3215
      %v3387 = vadd.f32 %v3371, %v3218
      %v3388 = vadd.f32 %v3372, %v3221
      %v3389 = vadd.f32 %v3373, %v3224
      %v3390 = vadd.f32 %v3374, %v3227
      %v3391 = vadd.f32 %v3375, %v3230
      %v3392 = vsel %vm425, %v3248, 0.0
      %3393 = vadd.xlane.f32.xlu0 %v3392
      %v3394 = vpop.xlane.xlu0 %3393
      %v3395 = vsel %vm425, %v3249, 0.0
      %3396 = vadd.xlane.f32.xlu0 %v3395
      %v3397 = vpop.xlane.xlu0 %3396
      %v3398 = vsel %vm425, %v3250, 0.0
      %3399 = vadd.xlane.f32.xlu0 %v3398
      %v3400 = vpop.xlane.xlu0 %3399
      %v3401 = vsel %vm425, %v3251, 0.0
      %3402 = vadd.xlane.f32.xlu0 %v3401
      %v3403 = vpop.xlane.xlu0 %3402
      %v3404 = vsel %vm425, %v3252, 0.0
      %3405 = vadd.xlane.f32.xlu0 %v3404
      %v3406 = vpop.xlane.xlu0 %3405
      %v3407 = vsel %vm425, %v3253, 0.0
      %3408 = vadd.xlane.f32.xlu0 %v3407
      %v3409 = vpop.xlane.xlu0 %3408
      %v3410 = vsel %vm425, %v3254, 0.0
      %3411 = vadd.xlane.f32.xlu0 %v3410
      %v3412 = vpop.xlane.xlu0 %3411
      %v3413 = vsel %vm425, %v3255, 0.0
      %3414 = vadd.xlane.f32.xlu0 %v3413
      %v3415 = vpop.xlane.xlu0 %3414
      %v3416 = vsel %vm425, %v3256, 0.0
      %3417 = vadd.xlane.f32.xlu0 %v3416
      %v3418 = vpop.xlane.xlu0 %3417
      %v3419 = vsel %vm425, %v3257, 0.0
      %3420 = vadd.xlane.f32.xlu0 %v3419
      %v3421 = vpop.xlane.xlu0 %3420
      %v3422 = vsel %vm425, %v3258, 0.0
      %3423 = vadd.xlane.f32.xlu0 %v3422
      %v3424 = vpop.xlane.xlu0 %3423
      %v3425 = vsel %vm425, %v3259, 0.0
      %3426 = vadd.xlane.f32.xlu0 %v3425
      %v3427 = vpop.xlane.xlu0 %3426
      %v3428 = vsel %vm425, %v3260, 0.0
      %3429 = vadd.xlane.f32.xlu0 %v3428
      %v3430 = vpop.xlane.xlu0 %3429
      %v3431 = vsel %vm425, %v3261, 0.0
      %3432 = vadd.xlane.f32.xlu0 %v3431
      %v3433 = vpop.xlane.xlu0 %3432
      %v3434 = vsel %vm425, %v3262, 0.0
      %3435 = vadd.xlane.f32.xlu0 %v3434
      %v3436 = vpop.xlane.xlu0 %3435
      %v3437 = vsel %vm425, %v3263, 0.0
      %3438 = vadd.xlane.f32.xlu0 %v3437
      %v3439 = vpop.xlane.xlu0 %3438
      %v3440 = vadd.f32 %v2355, %v3394
      %v3441 = vadd.f32 %v2356, %v3397
      %v3442 = vadd.f32 %v2357, %v3400
      %v3443 = vadd.f32 %v2358, %v3403
      %v3444 = vadd.f32 %v2359, %v3406
      %v3445 = vadd.f32 %v2360, %v3409
      %v3446 = vadd.f32 %v2361, %v3412
      %v3447 = vadd.f32 %v2362, %v3415
      %v3448 = vadd.f32 %v2363, %v3418
      %v3449 = vadd.f32 %v2364, %v3421
      %v3450 = vadd.f32 %v2365, %v3424
      %v3451 = vadd.f32 %v2366, %v3427
      %v3452 = vadd.f32 %v2367, %v3430
      %v3453 = vadd.f32 %v2368, %v3433
      %v3454 = vadd.f32 %v2369, %v3436
      %v3455 = vadd.f32 %v2370, %v3439
      %v3456 = vsel %vm425, %v2458, %v3376
      %v3457 = vsel %vm425, %v2461, %v3377
      %v3458 = vsel %vm425, %v2464, %v3378
      %v3459 = vsel %vm425, %v2467, %v3379
      %v3460 = vsel %vm425, %v2470, %v3380
      %v3461 = vsel %vm425, %v2473, %v3381
      %v3462 = vsel %vm425, %v2476, %v3382
      %v3463 = vsel %vm425, %v2479, %v3383
      %v3464 = vsel %vm425, %v2482, %v3384
      %v3465 = vsel %vm425, %v2485, %v3385
      %v3466 = vsel %vm425, %v2488, %v3386
      %v3467 = vsel %vm425, %v2491, %v3387
      %v3468 = vsel %vm425, %v2494, %v3388
      %v3469 = vsel %vm425, %v2497, %v3389
      %v3470 = vsel %vm425, %v2500, %v3390
      %v3471 = vsel %vm425, %v2503, %v3391
      %s3472 = scalar_lea.vmem %s6, 2
      %v3473 = vld [vmem:[%s3472] sm:$0x1]
      %v3475 = vperm.slane %v3473, 0
      %v3478 = vsel %vm1306, %v3456, 0
      %v3481 = vsel %vm1306, %v3457, 0
      %v3484 = vsel %vm1306, %v3458, 0
      %v3487 = vsel %vm1306, %v3459, 0
      %v3490 = vsel %vm1306, %v3460, 0
      %v3493 = vsel %vm1306, %v3461, 0
      %v3496 = vsel %vm1306, %v3462, 0
      %v3499 = vsel %vm1306, %v3463, 0
      %v3502 = vsel %vm1306, %v3464, 0
      %v3505 = vsel %vm1306, %v3465, 0
      %v3508 = vsel %vm1306, %v3466, 0
      %v3511 = vsel %vm1306, %v3467, 0
      %v3514 = vsel %vm1306, %v3468, 0
      %v3517 = vsel %vm1306, %v3469, 0
      %v3520 = vsel %vm1306, %v3470, 0
      %v3523 = vsel %vm1306, %v3471, 0
      %3525 = vmatpush.msra.mxu0 0.0
      %3526 = vmatpush.msra.mxu0 0.0
      %3527 = vmatpush.msra.mxu0 0.0
      %3528 = vmatpush.msra.mxu0 0.0
      %3529 = vmatpush.msra.mxu0 0.0
      %3530 = vmatpush.msra.mxu0 0.0
      %3531 = vmatpush.msra.mxu0 0.0
      %3532 = vmatpush.msra.mxu0 0.0
      %3533 = vmatpush.msra.mxu0 0.0
      %3534 = vmatpush.msra.mxu0 0.0
      %3535 = vmatpush.msra.mxu0 0.0
      %3536 = vmatpush.msra.mxu0 0.0
      %3537 = vmatpush.msra.mxu0 %v2583
      %3538 = vmatpush.msra.mxu0 %v2582
      %3539 = vmatpush.msra.mxu0 %v2581
      %3540 = vmatpush.msra.mxu0 %v2580
      %3541 = vmatmul.f32.gmra.mxu0 %v3478
      %v3542 = vpop.f32.mrf.mxu0
      %v3543 = vadd.f32 %v3475, %v3542
      %3544 = vmatmul.f32.gmra.mxu0 %v3481
      %v3545 = vpop.f32.mrf.mxu0
      %v3546 = vadd.f32 %v3475, %v3545
      %3547 = vmatmul.f32.gmra.mxu0 %v3484
      %v3548 = vpop.f32.mrf.mxu0
      %v3549 = vadd.f32 %v3475, %v3548
      %3550 = vmatmul.f32.gmra.mxu0 %v3487
      %v3551 = vpop.f32.mrf.mxu0
      %v3552 = vadd.f32 %v3475, %v3551
      %3553 = vmatmul.f32.gmra.mxu0 %v3490
      %v3554 = vpop.f32.mrf.mxu0
      %v3555 = vadd.f32 %v3475, %v3554
      %3556 = vmatmul.f32.gmra.mxu0 %v3493
      %v3557 = vpop.f32.mrf.mxu0
      %v3558 = vadd.f32 %v3475, %v3557
      %3559 = vmatmul.f32.gmra.mxu0 %v3496
      %v3560 = vpop.f32.mrf.mxu0
      %v3561 = vadd.f32 %v3475, %v3560
      %3562 = vmatmul.f32.gmra.mxu0 %v3499
      %v3563 = vpop.f32.mrf.mxu0
      %v3564 = vadd.f32 %v3475, %v3563
      %3565 = vmatmul.f32.gmra.mxu0 %v3502
      %v3566 = vpop.f32.mrf.mxu0
      %v3567 = vadd.f32 %v3475, %v3566
      %3568 = vmatmul.f32.gmra.mxu0 %v3505
      %v3569 = vpop.f32.mrf.mxu0
      %v3570 = vadd.f32 %v3475, %v3569
      %3571 = vmatmul.f32.gmra.mxu0 %v3508
      %v3572 = vpop.f32.mrf.mxu0
      %v3573 = vadd.f32 %v3475, %v3572
      %3574 = vmatmul.f32.gmra.mxu0 %v3511
      %v3575 = vpop.f32.mrf.mxu0
      %v3576 = vadd.f32 %v3475, %v3575
      %3577 = vmatmul.f32.gmra.mxu0 %v3514
      %v3578 = vpop.f32.mrf.mxu0
      %v3579 = vadd.f32 %v3475, %v3578
      %3580 = vmatmul.f32.gmra.mxu0 %v3517
      %v3581 = vpop.f32.mrf.mxu0
      %v3582 = vadd.f32 %v3475, %v3581
      %3583 = vmatmul.f32.gmra.mxu0 %v3520
      %v3584 = vpop.f32.mrf.mxu0
      %v3585 = vadd.f32 %v3475, %v3584
      %3586 = vmatmul.f32.gmra.mxu0 %v3523
      %v3587 = vpop.f32.mrf.mxu0
      %v3588 = vadd.f32 %v3475, %v3587
      %3589 = vdwg.mxu0
      %s3590 = scalar_lea.vmem %s1, 192
      %v3591 = vld [vmem:[%s3590] sm:$0xff]
      %v3592 = vld [vmem:[%s3590 + $0x8] sm:$0xff]
      %v3593 = vld [vmem:[%s3590 + $0x10] sm:$0xff]
      %v3594 = vld [vmem:[%s3590 + $0x18] sm:$0xff]
      %v3595 = vld [vmem:[%s3590 + $0x20] sm:$0xff]
      %v3596 = vld [vmem:[%s3590 + $0x28] sm:$0xff]
      %v3597 = vld [vmem:[%s3590 + $0x30] sm:$0xff]
      %v3598 = vld [vmem:[%s3590 + $0x38] sm:$0xff]
      %s3599 = scalar_lea.vmem %s3, 1536
      %v3600 = vld [vmem:[%s3599] sm:$0xff]
      %v3601 = vld [vmem:[%s3599 + $0x8] sm:$0xff]
      %v3602 = vld [vmem:[%s3599 + $0x10] sm:$0xff]
      %v3603 = vld [vmem:[%s3599 + $0x18] sm:$0xff]
      %v3604 = vld [vmem:[%s3599 + $0x20] sm:$0xff]
      %v3605 = vld [vmem:[%s3599 + $0x28] sm:$0xff]
      %v3606 = vld [vmem:[%s3599 + $0x30] sm:$0xff]
      %v3607 = vld [vmem:[%s3599 + $0x38] sm:$0xff]
      %v3608 = vld [vmem:[%s3599 + $0x40] sm:$0xff]
      %v3609 = vld [vmem:[%s3599 + $0x48] sm:$0xff]
      %v3610 = vld [vmem:[%s3599 + $0x50] sm:$0xff]
      %v3611 = vld [vmem:[%s3599 + $0x58] sm:$0xff]
      %v3612 = vld [vmem:[%s3599 + $0x60] sm:$0xff]
      %v3613 = vld [vmem:[%s3599 + $0x68] sm:$0xff]
      %v3614 = vld [vmem:[%s3599 + $0x70] sm:$0xff]
      %v3615 = vld [vmem:[%s3599 + $0x78] sm:$0xff]
      %v3616 = vld [vmem:[%s3599 + $0x80] sm:$0xff]
      %v3617 = vld [vmem:[%s3599 + $0x88] sm:$0xff]
      %v3618 = vld [vmem:[%s3599 + $0x90] sm:$0xff]
      %v3619 = vld [vmem:[%s3599 + $0x98] sm:$0xff]
      %v3620 = vld [vmem:[%s3599 + $0xa0] sm:$0xff]
      %v3621 = vld [vmem:[%s3599 + $0xa8] sm:$0xff]
      %v3622 = vld [vmem:[%s3599 + $0xb0] sm:$0xff]
      %v3623 = vld [vmem:[%s3599 + $0xb8] sm:$0xff]
      %v3624 = vld [vmem:[%s3599 + $0xc0] sm:$0xff]
      %v3625 = vld [vmem:[%s3599 + $0xc8] sm:$0xff]
      %v3626 = vld [vmem:[%s3599 + $0xd0] sm:$0xff]
      %v3627 = vld [vmem:[%s3599 + $0xd8] sm:$0xff]
      %v3628 = vld [vmem:[%s3599 + $0xe0] sm:$0xff]
      %v3629 = vld [vmem:[%s3599 + $0xe8] sm:$0xff]
      %v3630 = vld [vmem:[%s3599 + $0xf0] sm:$0xff]
      %v3631 = vld [vmem:[%s3599 + $0xf8] sm:$0xff]
      %v3632 = vld [vmem:[%s3599 + $0x100] sm:$0xff]
      %v3633 = vld [vmem:[%s3599 + $0x108] sm:$0xff]
      %v3634 = vld [vmem:[%s3599 + $0x110] sm:$0xff]
      %v3635 = vld [vmem:[%s3599 + $0x118] sm:$0xff]
      %v3636 = vld [vmem:[%s3599 + $0x120] sm:$0xff]
      %v3637 = vld [vmem:[%s3599 + $0x128] sm:$0xff]
      %v3638 = vld [vmem:[%s3599 + $0x130] sm:$0xff]
      %v3639 = vld [vmem:[%s3599 + $0x138] sm:$0xff]
      %v3640 = vld [vmem:[%s3599 + $0x140] sm:$0xff]
      %v3641 = vld [vmem:[%s3599 + $0x148] sm:$0xff]
      %v3642 = vld [vmem:[%s3599 + $0x150] sm:$0xff]
      %v3643 = vld [vmem:[%s3599 + $0x158] sm:$0xff]
      %v3644 = vld [vmem:[%s3599 + $0x160] sm:$0xff]
      %v3645 = vld [vmem:[%s3599 + $0x168] sm:$0xff]
      %v3646 = vld [vmem:[%s3599 + $0x170] sm:$0xff]
      %v3647 = vld [vmem:[%s3599 + $0x178] sm:$0xff]
      %v3648 = vld [vmem:[%s3599 + $0x180] sm:$0xff]
      %v3649 = vld [vmem:[%s3599 + $0x188] sm:$0xff]
      %v3650 = vld [vmem:[%s3599 + $0x190] sm:$0xff]
      %v3651 = vld [vmem:[%s3599 + $0x198] sm:$0xff]
      %v3652 = vld [vmem:[%s3599 + $0x1a0] sm:$0xff]
      %v3653 = vld [vmem:[%s3599 + $0x1a8] sm:$0xff]
      %v3654 = vld [vmem:[%s3599 + $0x1b0] sm:$0xff]
      %v3655 = vld [vmem:[%s3599 + $0x1b8] sm:$0xff]
      %v3656 = vld [vmem:[%s3599 + $0x1c0] sm:$0xff]
      %v3657 = vld [vmem:[%s3599 + $0x1c8] sm:$0xff]
      %v3658 = vld [vmem:[%s3599 + $0x1d0] sm:$0xff]
      %v3659 = vld [vmem:[%s3599 + $0x1d8] sm:$0xff]
      %v3660 = vld [vmem:[%s3599 + $0x1e0] sm:$0xff]
      %v3661 = vld [vmem:[%s3599 + $0x1e8] sm:$0xff]
      %v3662 = vld [vmem:[%s3599 + $0x1f0] sm:$0xff]
      %v3663 = vld [vmem:[%s3599 + $0x1f8] sm:$0xff]
      %s3664 = scalar_lea.vmem %s5, 96
      %v3665 = vld [vmem:[%s3664] sm:$0xff]
      %v3666 = vld [vmem:[%s3664 + $0x8] sm:$0xff]
      %v3667 = vld [vmem:[%s3664 + $0x10] sm:$0xff]
      %v3668 = vld [vmem:[%s3664 + $0x18] sm:$0xff]
      %s3669 = scalar_lea.vmem %s2, 12
      %v3670 = vld [vmem:[%s3669] sm:$0xf]
      %v3672 = vperm.slane %v3670, 0
      %v3673 = vperm.slane %v3670, 1
      %v3674 = vperm.slane %v3670, 2
      %v3675 = vperm.slane %v3670, 3
      %v3681 = vsel %vm425, %v3543, 0
      %v3684 = vsel %vm425, %v3546, 0
      %v3687 = vsel %vm425, %v3549, 0
      %v3690 = vsel %vm425, %v3552, 0
      %v3693 = vsel %vm425, %v3555, 0
      %v3696 = vsel %vm425, %v3558, 0
      %v3699 = vsel %vm425, %v3561, 0
      %v3702 = vsel %vm425, %v3564, 0
      %v3705 = vsel %vm425, %v3567, 0
      %v3708 = vsel %vm425, %v3570, 0
      %v3711 = vsel %vm425, %v3573, 0
      %v3714 = vsel %vm425, %v3576, 0
      %v3717 = vsel %vm425, %v3579, 0
      %v3720 = vsel %vm425, %v3582, 0
      %v3723 = vsel %vm425, %v3585, 0
      %v3726 = vsel %vm425, %v3588, 0
      %3728 = vmatpush.msra.mxu0 0.0
      %3729 = vmatpush.msra.mxu0 0.0
      %3730 = vmatpush.msra.mxu0 0.0
      %3731 = vmatpush.msra.mxu0 0.0
      %3732 = vmatpush.msra.mxu0 0.0
      %3733 = vmatpush.msra.mxu0 0.0
      %3734 = vmatpush.msra.mxu0 0.0
      %3735 = vmatpush.msra.mxu0 0.0
      %3736 = vmatpush.msra.mxu0 0.0
      %3737 = vmatpush.msra.mxu0 0.0
      %3738 = vmatpush.msra.mxu0 0.0
      %3739 = vmatpush.msra.mxu0 0.0
      %3740 = vmatpush.msra.mxu0 0.0
      %3741 = vmatpush.msra.mxu0 0.0
      %3742 = vmatpush.msra.mxu0 %v3595
      %3743 = vmatpush.msra.mxu0 %v3591
      %3744 = vmatmul.f32.gmra.mxu0 %v3681
      %v3745 = vpop.f32.mrf.mxu0
      %v3746 = vadd.f32 %v3672, %v3745
      %3747 = vmatmul.f32.gmra.mxu0 %v3684
      %v3748 = vpop.f32.mrf.mxu0
      %v3749 = vadd.f32 %v3672, %v3748
      %3750 = vmatmul.f32.gmra.mxu0 %v3687
      %v3751 = vpop.f32.mrf.mxu0
      %v3752 = vadd.f32 %v3672, %v3751
      %3753 = vmatmul.f32.gmra.mxu0 %v3690
      %v3754 = vpop.f32.mrf.mxu0
      %v3755 = vadd.f32 %v3672, %v3754
      %3756 = vmatmul.f32.gmra.mxu0 %v3693
      %v3757 = vpop.f32.mrf.mxu0
      %v3758 = vadd.f32 %v3672, %v3757
      %3759 = vmatmul.f32.gmra.mxu0 %v3696
      %v3760 = vpop.f32.mrf.mxu0
      %v3761 = vadd.f32 %v3672, %v3760
      %3762 = vmatmul.f32.gmra.mxu0 %v3699
      %v3763 = vpop.f32.mrf.mxu0
      %v3764 = vadd.f32 %v3672, %v3763
      %3765 = vmatmul.f32.gmra.mxu0 %v3702
      %v3766 = vpop.f32.mrf.mxu0
      %v3767 = vadd.f32 %v3672, %v3766
      %3768 = vmatmul.f32.gmra.mxu0 %v3705
      %v3769 = vpop.f32.mrf.mxu0
      %v3770 = vadd.f32 %v3672, %v3769
      %3771 = vmatmul.f32.gmra.mxu0 %v3708
      %v3772 = vpop.f32.mrf.mxu0
      %v3773 = vadd.f32 %v3672, %v3772
      %3774 = vmatmul.f32.gmra.mxu0 %v3711
      %v3775 = vpop.f32.mrf.mxu0
      %v3776 = vadd.f32 %v3672, %v3775
      %3777 = vmatmul.f32.gmra.mxu0 %v3714
      %v3778 = vpop.f32.mrf.mxu0
      %v3779 = vadd.f32 %v3672, %v3778
      %3780 = vmatmul.f32.gmra.mxu0 %v3717
      %v3781 = vpop.f32.mrf.mxu0
      %v3782 = vadd.f32 %v3672, %v3781
      %3783 = vmatmul.f32.gmra.mxu0 %v3720
      %v3784 = vpop.f32.mrf.mxu0
      %v3785 = vadd.f32 %v3672, %v3784
      %3786 = vmatmul.f32.gmra.mxu0 %v3723
      %v3787 = vpop.f32.mrf.mxu0
      %v3788 = vadd.f32 %v3672, %v3787
      %3789 = vmatmul.f32.gmra.mxu0 %v3726
      %v3790 = vpop.f32.mrf.mxu0
      %v3791 = vadd.f32 %v3672, %v3790
      %3792 = vdwg.mxu0
      %3793 = vmatpush.msra.mxu0 0.0
      %3794 = vmatpush.msra.mxu0 0.0
      %3795 = vmatpush.msra.mxu0 0.0
      %3796 = vmatpush.msra.mxu0 0.0
      %3797 = vmatpush.msra.mxu0 0.0
      %3798 = vmatpush.msra.mxu0 0.0
      %3799 = vmatpush.msra.mxu0 0.0
      %3800 = vmatpush.msra.mxu0 0.0
      %3801 = vmatpush.msra.mxu0 0.0
      %3802 = vmatpush.msra.mxu0 0.0
      %3803 = vmatpush.msra.mxu0 0.0
      %3804 = vmatpush.msra.mxu0 0.0
      %3805 = vmatpush.msra.mxu0 0.0
      %3806 = vmatpush.msra.mxu0 0.0
      %3807 = vmatpush.msra.mxu0 %v3596
      %3808 = vmatpush.msra.mxu0 %v3592
      %3809 = vmatmul.f32.gmra.mxu0 %v3681
      %v3810 = vpop.f32.mrf.mxu0
      %v3811 = vadd.f32 %v3673, %v3810
      %3812 = vmatmul.f32.gmra.mxu0 %v3684
      %v3813 = vpop.f32.mrf.mxu0
      %v3814 = vadd.f32 %v3673, %v3813
      %3815 = vmatmul.f32.gmra.mxu0 %v3687
      %v3816 = vpop.f32.mrf.mxu0
      %v3817 = vadd.f32 %v3673, %v3816
      %3818 = vmatmul.f32.gmra.mxu0 %v3690
      %v3819 = vpop.f32.mrf.mxu0
      %v3820 = vadd.f32 %v3673, %v3819
      %3821 = vmatmul.f32.gmra.mxu0 %v3693
      %v3822 = vpop.f32.mrf.mxu0
      %v3823 = vadd.f32 %v3673, %v3822
      %3824 = vmatmul.f32.gmra.mxu0 %v3696
      %v3825 = vpop.f32.mrf.mxu0
      %v3826 = vadd.f32 %v3673, %v3825
      %3827 = vmatmul.f32.gmra.mxu0 %v3699
      %v3828 = vpop.f32.mrf.mxu0
      %v3829 = vadd.f32 %v3673, %v3828
      %3830 = vmatmul.f32.gmra.mxu0 %v3702
      %v3831 = vpop.f32.mrf.mxu0
      %v3832 = vadd.f32 %v3673, %v3831
      %3833 = vmatmul.f32.gmra.mxu0 %v3705
      %v3834 = vpop.f32.mrf.mxu0
      %v3835 = vadd.f32 %v3673, %v3834
      %3836 = vmatmul.f32.gmra.mxu0 %v3708
      %v3837 = vpop.f32.mrf.mxu0
      %v3838 = vadd.f32 %v3673, %v3837
      %3839 = vmatmul.f32.gmra.mxu0 %v3711
      %v3840 = vpop.f32.mrf.mxu0
      %v3841 = vadd.f32 %v3673, %v3840
      %3842 = vmatmul.f32.gmra.mxu0 %v3714
      %v3843 = vpop.f32.mrf.mxu0
      %v3844 = vadd.f32 %v3673, %v3843
      %3845 = vmatmul.f32.gmra.mxu0 %v3717
      %v3846 = vpop.f32.mrf.mxu0
      %v3847 = vadd.f32 %v3673, %v3846
      %3848 = vmatmul.f32.gmra.mxu0 %v3720
      %v3849 = vpop.f32.mrf.mxu0
      %v3850 = vadd.f32 %v3673, %v3849
      %3851 = vmatmul.f32.gmra.mxu0 %v3723
      %v3852 = vpop.f32.mrf.mxu0
      %v3853 = vadd.f32 %v3673, %v3852
      %3854 = vmatmul.f32.gmra.mxu0 %v3726
      %v3855 = vpop.f32.mrf.mxu0
      %v3856 = vadd.f32 %v3673, %v3855
      %3857 = vdwg.mxu0
      %3858 = vmatpush.msra.mxu0 0.0
      %3859 = vmatpush.msra.mxu0 0.0
      %3860 = vmatpush.msra.mxu0 0.0
      %3861 = vmatpush.msra.mxu0 0.0
      %3862 = vmatpush.msra.mxu0 0.0
      %3863 = vmatpush.msra.mxu0 0.0
      %3864 = vmatpush.msra.mxu0 0.0
      %3865 = vmatpush.msra.mxu0 0.0
      %3866 = vmatpush.msra.mxu0 0.0
      %3867 = vmatpush.msra.mxu0 0.0
      %3868 = vmatpush.msra.mxu0 0.0
      %3869 = vmatpush.msra.mxu0 0.0
      %3870 = vmatpush.msra.mxu0 0.0
      %3871 = vmatpush.msra.mxu0 0.0
      %3872 = vmatpush.msra.mxu0 %v3597
      %3873 = vmatpush.msra.mxu0 %v3593
      %3874 = vmatmul.f32.gmra.mxu0 %v3681
      %v3875 = vpop.f32.mrf.mxu0
      %v3876 = vadd.f32 %v3674, %v3875
      %3877 = vmatmul.f32.gmra.mxu0 %v3684
      %v3878 = vpop.f32.mrf.mxu0
      %v3879 = vadd.f32 %v3674, %v3878
      %3880 = vmatmul.f32.gmra.mxu0 %v3687
      %v3881 = vpop.f32.mrf.mxu0
      %v3882 = vadd.f32 %v3674, %v3881
      %3883 = vmatmul.f32.gmra.mxu0 %v3690
      %v3884 = vpop.f32.mrf.mxu0
      %v3885 = vadd.f32 %v3674, %v3884
      %3886 = vmatmul.f32.gmra.mxu0 %v3693
      %v3887 = vpop.f32.mrf.mxu0
      %v3888 = vadd.f32 %v3674, %v3887
      %3889 = vmatmul.f32.gmra.mxu0 %v3696
      %v3890 = vpop.f32.mrf.mxu0
      %v3891 = vadd.f32 %v3674, %v3890
      %3892 = vmatmul.f32.gmra.mxu0 %v3699
      %v3893 = vpop.f32.mrf.mxu0
      %v3894 = vadd.f32 %v3674, %v3893
      %3895 = vmatmul.f32.gmra.mxu0 %v3702
      %v3896 = vpop.f32.mrf.mxu0
      %v3897 = vadd.f32 %v3674, %v3896
      %3898 = vmatmul.f32.gmra.mxu0 %v3705
      %v3899 = vpop.f32.mrf.mxu0
      %v3900 = vadd.f32 %v3674, %v3899
      %3901 = vmatmul.f32.gmra.mxu0 %v3708
      %v3902 = vpop.f32.mrf.mxu0
      %v3903 = vadd.f32 %v3674, %v3902
      %3904 = vmatmul.f32.gmra.mxu0 %v3711
      %v3905 = vpop.f32.mrf.mxu0
      %v3906 = vadd.f32 %v3674, %v3905
      %3907 = vmatmul.f32.gmra.mxu0 %v3714
      %v3908 = vpop.f32.mrf.mxu0
      %v3909 = vadd.f32 %v3674, %v3908
      %3910 = vmatmul.f32.gmra.mxu0 %v3717
      %v3911 = vpop.f32.mrf.mxu0
      %v3912 = vadd.f32 %v3674, %v3911
      %3913 = vmatmul.f32.gmra.mxu0 %v3720
      %v3914 = vpop.f32.mrf.mxu0
      %v3915 = vadd.f32 %v3674, %v3914
      %3916 = vmatmul.f32.gmra.mxu0 %v3723
      %v3917 = vpop.f32.mrf.mxu0
      %v3918 = vadd.f32 %v3674, %v3917
      %3919 = vmatmul.f32.gmra.mxu0 %v3726
      %v3920 = vpop.f32.mrf.mxu0
      %v3921 = vadd.f32 %v3674, %v3920
      %3922 = vdwg.mxu0
      %3923 = vmatpush.msra.mxu0 0.0
      %3924 = vmatpush.msra.mxu0 0.0
      %3925 = vmatpush.msra.mxu0 0.0
      %3926 = vmatpush.msra.mxu0 0.0
      %3927 = vmatpush.msra.mxu0 0.0
      %3928 = vmatpush.msra.mxu0 0.0
      %3929 = vmatpush.msra.mxu0 0.0
      %3930 = vmatpush.msra.mxu0 0.0
      %3931 = vmatpush.msra.mxu0 0.0
      %3932 = vmatpush.msra.mxu0 0.0
      %3933 = vmatpush.msra.mxu0 0.0
      %3934 = vmatpush.msra.mxu0 0.0
      %3935 = vmatpush.msra.mxu0 0.0
      %3936 = vmatpush.msra.mxu0 0.0
      %3937 = vmatpush.msra.mxu0 %v3598
      %3938 = vmatpush.msra.mxu0 %v3594
      %3939 = vmatmul.f32.gmra.mxu0 %v3681
      %v3940 = vpop.f32.mrf.mxu0
      %v3941 = vadd.f32 %v3675, %v3940
      %3942 = vmatmul.f32.gmra.mxu0 %v3684
      %v3943 = vpop.f32.mrf.mxu0
      %v3944 = vadd.f32 %v3675, %v3943
      %3945 = vmatmul.f32.gmra.mxu0 %v3687
      %v3946 = vpop.f32.mrf.mxu0
      %v3947 = vadd.f32 %v3675, %v3946
      %3948 = vmatmul.f32.gmra.mxu0 %v3690
      %v3949 = vpop.f32.mrf.mxu0
      %v3950 = vadd.f32 %v3675, %v3949
      %3951 = vmatmul.f32.gmra.mxu0 %v3693
      %v3952 = vpop.f32.mrf.mxu0
      %v3953 = vadd.f32 %v3675, %v3952
      %3954 = vmatmul.f32.gmra.mxu0 %v3696
      %v3955 = vpop.f32.mrf.mxu0
      %v3956 = vadd.f32 %v3675, %v3955
      %3957 = vmatmul.f32.gmra.mxu0 %v3699
      %v3958 = vpop.f32.mrf.mxu0
      %v3959 = vadd.f32 %v3675, %v3958
      %3960 = vmatmul.f32.gmra.mxu0 %v3702
      %v3961 = vpop.f32.mrf.mxu0
      %v3962 = vadd.f32 %v3675, %v3961
      %3963 = vmatmul.f32.gmra.mxu0 %v3705
      %v3964 = vpop.f32.mrf.mxu0
      %v3965 = vadd.f32 %v3675, %v3964
      %3966 = vmatmul.f32.gmra.mxu0 %v3708
      %v3967 = vpop.f32.mrf.mxu0
      %v3968 = vadd.f32 %v3675, %v3967
      %3969 = vmatmul.f32.gmra.mxu0 %v3711
      %v3970 = vpop.f32.mrf.mxu0
      %v3971 = vadd.f32 %v3675, %v3970
      %3972 = vmatmul.f32.gmra.mxu0 %v3714
      %v3973 = vpop.f32.mrf.mxu0
      %v3974 = vadd.f32 %v3675, %v3973
      %3975 = vmatmul.f32.gmra.mxu0 %v3717
      %v3976 = vpop.f32.mrf.mxu0
      %v3977 = vadd.f32 %v3675, %v3976
      %3978 = vmatmul.f32.gmra.mxu0 %v3720
      %v3979 = vpop.f32.mrf.mxu0
      %v3980 = vadd.f32 %v3675, %v3979
      %3981 = vmatmul.f32.gmra.mxu0 %v3723
      %v3982 = vpop.f32.mrf.mxu0
      %v3983 = vadd.f32 %v3675, %v3982
      %3984 = vmatmul.f32.gmra.mxu0 %v3726
      %v3985 = vpop.f32.mrf.mxu0
      %v3986 = vadd.f32 %v3675, %v3985
      %3987 = vdwg.mxu0
      %v3988 = vmax.f32 %v3746, 0.0
      %v3989 = vmax.f32 %v3811, 0.0
      %v3990 = vmax.f32 %v3876, 0.0
      %v3991 = vmax.f32 %v3941, 0.0
      %v3992 = vmax.f32 %v3749, 0.0
      %v3993 = vmax.f32 %v3814, 0.0
      %v3994 = vmax.f32 %v3879, 0.0
      %v3995 = vmax.f32 %v3944, 0.0
      %v3996 = vmax.f32 %v3752, 0.0
      %v3997 = vmax.f32 %v3817, 0.0
      %v3998 = vmax.f32 %v3882, 0.0
      %v3999 = vmax.f32 %v3947, 0.0
      %v4000 = vmax.f32 %v3755, 0.0
      %v4001 = vmax.f32 %v3820, 0.0
      %v4002 = vmax.f32 %v3885, 0.0
      %v4003 = vmax.f32 %v3950, 0.0
      %v4004 = vmax.f32 %v3758, 0.0
      %v4005 = vmax.f32 %v3823, 0.0
      %v4006 = vmax.f32 %v3888, 0.0
      %v4007 = vmax.f32 %v3953, 0.0
      %v4008 = vmax.f32 %v3761, 0.0
      %v4009 = vmax.f32 %v3826, 0.0
      %v4010 = vmax.f32 %v3891, 0.0
      %v4011 = vmax.f32 %v3956, 0.0
      %v4012 = vmax.f32 %v3764, 0.0
      %v4013 = vmax.f32 %v3829, 0.0
      %v4014 = vmax.f32 %v3894, 0.0
      %v4015 = vmax.f32 %v3959, 0.0
      %v4016 = vmax.f32 %v3767, 0.0
      %v4017 = vmax.f32 %v3832, 0.0
      %v4018 = vmax.f32 %v3897, 0.0
      %v4019 = vmax.f32 %v3962, 0.0
      %v4020 = vmax.f32 %v3770, 0.0
      %v4021 = vmax.f32 %v3835, 0.0
      %v4022 = vmax.f32 %v3900, 0.0
      %v4023 = vmax.f32 %v3965, 0.0
      %v4024 = vmax.f32 %v3773, 0.0
      %v4025 = vmax.f32 %v3838, 0.0
      %v4026 = vmax.f32 %v3903, 0.0
      %v4027 = vmax.f32 %v3968, 0.0
      %v4028 = vmax.f32 %v3776, 0.0
      %v4029 = vmax.f32 %v3841, 0.0
      %v4030 = vmax.f32 %v3906, 0.0
      %v4031 = vmax.f32 %v3971, 0.0
      %v4032 = vmax.f32 %v3779, 0.0
      %v4033 = vmax.f32 %v3844, 0.0
      %v4034 = vmax.f32 %v3909, 0.0
      %v4035 = vmax.f32 %v3974, 0.0
      %v4036 = vmax.f32 %v3782, 0.0
      %v4037 = vmax.f32 %v3847, 0.0
      %v4038 = vmax.f32 %v3912, 0.0
      %v4039 = vmax.f32 %v3977, 0.0
      %v4040 = vmax.f32 %v3785, 0.0
      %v4041 = vmax.f32 %v3850, 0.0
      %v4042 = vmax.f32 %v3915, 0.0
      %v4043 = vmax.f32 %v3980, 0.0
      %v4044 = vmax.f32 %v3788, 0.0
      %v4045 = vmax.f32 %v3853, 0.0
      %v4046 = vmax.f32 %v3918, 0.0
      %v4047 = vmax.f32 %v3983, 0.0
      %v4048 = vmax.f32 %v3791, 0.0
      %v4049 = vmax.f32 %v3856, 0.0
      %v4050 = vmax.f32 %v3921, 0.0
      %v4051 = vmax.f32 %v3986, 0.0
      %s4052 = scalar_lea.vmem %s4, 3
      %v4053 = vld [vmem:[%s4052] sm:$0x1]
      %v4055 = vperm.slane %v4053, 0
      %4057 = vmatpush.msra.mxu0 %v3615
      %4058 = vmatpush.msra.mxu0 %v3614
      %4059 = vmatpush.msra.mxu0 %v3613
      %4060 = vmatpush.msra.mxu0 %v3612
      %4061 = vmatpush.msra.mxu0 %v3611
      %4062 = vmatpush.msra.mxu0 %v3610
      %4063 = vmatpush.msra.mxu0 %v3609
      %4064 = vmatpush.msra.mxu0 %v3608
      %4065 = vmatpush.msra.mxu0 %v3607
      %4066 = vmatpush.msra.mxu0 %v3606
      %4067 = vmatpush.msra.mxu0 %v3605
      %4068 = vmatpush.msra.mxu0 %v3604
      %4069 = vmatpush.msra.mxu0 %v3603
      %4070 = vmatpush.msra.mxu0 %v3602
      %4071 = vmatpush.msra.mxu0 %v3601
      %4072 = vmatpush.msra.mxu0 %v3600
      %4073 = vmatmul.f32.gmra.mxu0 %v3988
      %v4074 = vpop.f32.mrf.mxu0
      %v4075 = vadd.f32 %v4055, %v4074
      %4076 = vmatmul.f32.gmra.mxu0 %v3992
      %v4077 = vpop.f32.mrf.mxu0
      %v4078 = vadd.f32 %v4055, %v4077
      %4079 = vmatmul.f32.gmra.mxu0 %v3996
      %v4080 = vpop.f32.mrf.mxu0
      %v4081 = vadd.f32 %v4055, %v4080
      %4082 = vmatmul.f32.gmra.mxu0 %v4000
      %v4083 = vpop.f32.mrf.mxu0
      %v4084 = vadd.f32 %v4055, %v4083
      %4085 = vmatmul.f32.gmra.mxu0 %v4004
      %v4086 = vpop.f32.mrf.mxu0
      %v4087 = vadd.f32 %v4055, %v4086
      %4088 = vmatmul.f32.gmra.mxu0 %v4008
      %v4089 = vpop.f32.mrf.mxu0
      %v4090 = vadd.f32 %v4055, %v4089
      %4091 = vmatmul.f32.gmra.mxu0 %v4012
      %v4092 = vpop.f32.mrf.mxu0
      %v4093 = vadd.f32 %v4055, %v4092
      %4094 = vmatmul.f32.gmra.mxu0 %v4016
      %v4095 = vpop.f32.mrf.mxu0
      %v4096 = vadd.f32 %v4055, %v4095
      %4097 = vmatmul.f32.gmra.mxu0 %v4020
      %v4098 = vpop.f32.mrf.mxu0
      %v4099 = vadd.f32 %v4055, %v4098
      %4100 = vmatmul.f32.gmra.mxu0 %v4024
      %v4101 = vpop.f32.mrf.mxu0
      %v4102 = vadd.f32 %v4055, %v4101
      %4103 = vmatmul.f32.gmra.mxu0 %v4028
      %v4104 = vpop.f32.mrf.mxu0
      %v4105 = vadd.f32 %v4055, %v4104
      %4106 = vmatmul.f32.gmra.mxu0 %v4032
      %v4107 = vpop.f32.mrf.mxu0
      %v4108 = vadd.f32 %v4055, %v4107
      %4109 = vmatmul.f32.gmra.mxu0 %v4036
      %v4110 = vpop.f32.mrf.mxu0
      %v4111 = vadd.f32 %v4055, %v4110
      %4112 = vmatmul.f32.gmra.mxu0 %v4040
      %v4113 = vpop.f32.mrf.mxu0
      %v4114 = vadd.f32 %v4055, %v4113
      %4115 = vmatmul.f32.gmra.mxu0 %v4044
      %v4116 = vpop.f32.mrf.mxu0
      %v4117 = vadd.f32 %v4055, %v4116
      %4118 = vmatmul.f32.gmra.mxu0 %v4048
      %v4119 = vpop.f32.mrf.mxu0
      %v4120 = vadd.f32 %v4055, %v4119
      %4121 = vdwg.mxu0
      %4122 = vmatpush.msra.mxu0 %v3631
      %4123 = vmatpush.msra.mxu0 %v3630
      %4124 = vmatpush.msra.mxu0 %v3629
      %4125 = vmatpush.msra.mxu0 %v3628
      %4126 = vmatpush.msra.mxu0 %v3627
      %4127 = vmatpush.msra.mxu0 %v3626
      %4128 = vmatpush.msra.mxu0 %v3625
      %4129 = vmatpush.msra.mxu0 %v3624
      %4130 = vmatpush.msra.mxu0 %v3623
      %4131 = vmatpush.msra.mxu0 %v3622
      %4132 = vmatpush.msra.mxu0 %v3621
      %4133 = vmatpush.msra.mxu0 %v3620
      %4134 = vmatpush.msra.mxu0 %v3619
      %4135 = vmatpush.msra.mxu0 %v3618
      %4136 = vmatpush.msra.mxu0 %v3617
      %4137 = vmatpush.msra.mxu0 %v3616
      %4138 = vmatmul.f32.gmra.mxu0 %v3989
      %v4139 = vpop.f32.mrf.mxu0
      %v4140 = vadd.f32 %v4075, %v4139
      %4141 = vmatmul.f32.gmra.mxu0 %v3993
      %v4142 = vpop.f32.mrf.mxu0
      %v4143 = vadd.f32 %v4078, %v4142
      %4144 = vmatmul.f32.gmra.mxu0 %v3997
      %v4145 = vpop.f32.mrf.mxu0
      %v4146 = vadd.f32 %v4081, %v4145
      %4147 = vmatmul.f32.gmra.mxu0 %v4001
      %v4148 = vpop.f32.mrf.mxu0
      %v4149 = vadd.f32 %v4084, %v4148
      %4150 = vmatmul.f32.gmra.mxu0 %v4005
      %v4151 = vpop.f32.mrf.mxu0
      %v4152 = vadd.f32 %v4087, %v4151
      %4153 = vmatmul.f32.gmra.mxu0 %v4009
      %v4154 = vpop.f32.mrf.mxu0
      %v4155 = vadd.f32 %v4090, %v4154
      %4156 = vmatmul.f32.gmra.mxu0 %v4013
      %v4157 = vpop.f32.mrf.mxu0
      %v4158 = vadd.f32 %v4093, %v4157
      %4159 = vmatmul.f32.gmra.mxu0 %v4017
      %v4160 = vpop.f32.mrf.mxu0
      %v4161 = vadd.f32 %v4096, %v4160
      %4162 = vmatmul.f32.gmra.mxu0 %v4021
      %v4163 = vpop.f32.mrf.mxu0
      %v4164 = vadd.f32 %v4099, %v4163
      %4165 = vmatmul.f32.gmra.mxu0 %v4025
      %v4166 = vpop.f32.mrf.mxu0
      %v4167 = vadd.f32 %v4102, %v4166
      %4168 = vmatmul.f32.gmra.mxu0 %v4029
      %v4169 = vpop.f32.mrf.mxu0
      %v4170 = vadd.f32 %v4105, %v4169
      %4171 = vmatmul.f32.gmra.mxu0 %v4033
      %v4172 = vpop.f32.mrf.mxu0
      %v4173 = vadd.f32 %v4108, %v4172
      %4174 = vmatmul.f32.gmra.mxu0 %v4037
      %v4175 = vpop.f32.mrf.mxu0
      %v4176 = vadd.f32 %v4111, %v4175
      %4177 = vmatmul.f32.gmra.mxu0 %v4041
      %v4178 = vpop.f32.mrf.mxu0
      %v4179 = vadd.f32 %v4114, %v4178
      %4180 = vmatmul.f32.gmra.mxu0 %v4045
      %v4181 = vpop.f32.mrf.mxu0
      %v4182 = vadd.f32 %v4117, %v4181
      %4183 = vmatmul.f32.gmra.mxu0 %v4049
      %v4184 = vpop.f32.mrf.mxu0
      %v4185 = vadd.f32 %v4120, %v4184
      %4186 = vdwg.mxu0
      %4187 = vmatpush.msra.mxu0 %v3647
      %4188 = vmatpush.msra.mxu0 %v3646
      %4189 = vmatpush.msra.mxu0 %v3645
      %4190 = vmatpush.msra.mxu0 %v3644
      %4191 = vmatpush.msra.mxu0 %v3643
      %4192 = vmatpush.msra.mxu0 %v3642
      %4193 = vmatpush.msra.mxu0 %v3641
      %4194 = vmatpush.msra.mxu0 %v3640
      %4195 = vmatpush.msra.mxu0 %v3639
      %4196 = vmatpush.msra.mxu0 %v3638
      %4197 = vmatpush.msra.mxu0 %v3637
      %4198 = vmatpush.msra.mxu0 %v3636
      %4199 = vmatpush.msra.mxu0 %v3635
      %4200 = vmatpush.msra.mxu0 %v3634
      %4201 = vmatpush.msra.mxu0 %v3633
      %4202 = vmatpush.msra.mxu0 %v3632
      %4203 = vmatmul.f32.gmra.mxu0 %v3990
      %v4204 = vpop.f32.mrf.mxu0
      %v4205 = vadd.f32 %v4140, %v4204
      %4206 = vmatmul.f32.gmra.mxu0 %v3994
      %v4207 = vpop.f32.mrf.mxu0
      %v4208 = vadd.f32 %v4143, %v4207
      %4209 = vmatmul.f32.gmra.mxu0 %v3998
      %v4210 = vpop.f32.mrf.mxu0
      %v4211 = vadd.f32 %v4146, %v4210
      %4212 = vmatmul.f32.gmra.mxu0 %v4002
      %v4213 = vpop.f32.mrf.mxu0
      %v4214 = vadd.f32 %v4149, %v4213
      %4215 = vmatmul.f32.gmra.mxu0 %v4006
      %v4216 = vpop.f32.mrf.mxu0
      %v4217 = vadd.f32 %v4152, %v4216
      %4218 = vmatmul.f32.gmra.mxu0 %v4010
      %v4219 = vpop.f32.mrf.mxu0
      %v4220 = vadd.f32 %v4155, %v4219
      %4221 = vmatmul.f32.gmra.mxu0 %v4014
      %v4222 = vpop.f32.mrf.mxu0
      %v4223 = vadd.f32 %v4158, %v4222
      %4224 = vmatmul.f32.gmra.mxu0 %v4018
      %v4225 = vpop.f32.mrf.mxu0
      %v4226 = vadd.f32 %v4161, %v4225
      %4227 = vmatmul.f32.gmra.mxu0 %v4022
      %v4228 = vpop.f32.mrf.mxu0
      %v4229 = vadd.f32 %v4164, %v4228
      %4230 = vmatmul.f32.gmra.mxu0 %v4026
      %v4231 = vpop.f32.mrf.mxu0
      %v4232 = vadd.f32 %v4167, %v4231
      %4233 = vmatmul.f32.gmra.mxu0 %v4030
      %v4234 = vpop.f32.mrf.mxu0
      %v4235 = vadd.f32 %v4170, %v4234
      %4236 = vmatmul.f32.gmra.mxu0 %v4034
      %v4237 = vpop.f32.mrf.mxu0
      %v4238 = vadd.f32 %v4173, %v4237
      %4239 = vmatmul.f32.gmra.mxu0 %v4038
      %v4240 = vpop.f32.mrf.mxu0
      %v4241 = vadd.f32 %v4176, %v4240
      %4242 = vmatmul.f32.gmra.mxu0 %v4042
      %v4243 = vpop.f32.mrf.mxu0
      %v4244 = vadd.f32 %v4179, %v4243
      %4245 = vmatmul.f32.gmra.mxu0 %v4046
      %v4246 = vpop.f32.mrf.mxu0
      %v4247 = vadd.f32 %v4182, %v4246
      %4248 = vmatmul.f32.gmra.mxu0 %v4050
      %v4249 = vpop.f32.mrf.mxu0
      %v4250 = vadd.f32 %v4185, %v4249
      %4251 = vdwg.mxu0
      %4252 = vmatpush.msra.mxu0 %v3663
      %4253 = vmatpush.msra.mxu0 %v3662
      %4254 = vmatpush.msra.mxu0 %v3661
      %4255 = vmatpush.msra.mxu0 %v3660
      %4256 = vmatpush.msra.mxu0 %v3659
      %4257 = vmatpush.msra.mxu0 %v3658
      %4258 = vmatpush.msra.mxu0 %v3657
      %4259 = vmatpush.msra.mxu0 %v3656
      %4260 = vmatpush.msra.mxu0 %v3655
      %4261 = vmatpush.msra.mxu0 %v3654
      %4262 = vmatpush.msra.mxu0 %v3653
      %4263 = vmatpush.msra.mxu0 %v3652
      %4264 = vmatpush.msra.mxu0 %v3651
      %4265 = vmatpush.msra.mxu0 %v3650
      %4266 = vmatpush.msra.mxu0 %v3649
      %4267 = vmatpush.msra.mxu0 %v3648
      %4268 = vmatmul.f32.gmra.mxu0 %v3991
      %v4269 = vpop.f32.mrf.mxu0
      %v4270 = vadd.f32 %v4205, %v4269
      %4271 = vmatmul.f32.gmra.mxu0 %v3995
      %v4272 = vpop.f32.mrf.mxu0
      %v4273 = vadd.f32 %v4208, %v4272
      %4274 = vmatmul.f32.gmra.mxu0 %v3999
      %v4275 = vpop.f32.mrf.mxu0
      %v4276 = vadd.f32 %v4211, %v4275
      %4277 = vmatmul.f32.gmra.mxu0 %v4003
      %v4278 = vpop.f32.mrf.mxu0
      %v4279 = vadd.f32 %v4214, %v4278
      %4280 = vmatmul.f32.gmra.mxu0 %v4007
      %v4281 = vpop.f32.mrf.mxu0
      %v4282 = vadd.f32 %v4217, %v4281
      %4283 = vmatmul.f32.gmra.mxu0 %v4011
      %v4284 = vpop.f32.mrf.mxu0
      %v4285 = vadd.f32 %v4220, %v4284
      %4286 = vmatmul.f32.gmra.mxu0 %v4015
      %v4287 = vpop.f32.mrf.mxu0
      %v4288 = vadd.f32 %v4223, %v4287
      %4289 = vmatmul.f32.gmra.mxu0 %v4019
      %v4290 = vpop.f32.mrf.mxu0
      %v4291 = vadd.f32 %v4226, %v4290
      %4292 = vmatmul.f32.gmra.mxu0 %v4023
      %v4293 = vpop.f32.mrf.mxu0
      %v4294 = vadd.f32 %v4229, %v4293
      %4295 = vmatmul.f32.gmra.mxu0 %v4027
      %v4296 = vpop.f32.mrf.mxu0
      %v4297 = vadd.f32 %v4232, %v4296
      %4298 = vmatmul.f32.gmra.mxu0 %v4031
      %v4299 = vpop.f32.mrf.mxu0
      %v4300 = vadd.f32 %v4235, %v4299
      %4301 = vmatmul.f32.gmra.mxu0 %v4035
      %v4302 = vpop.f32.mrf.mxu0
      %v4303 = vadd.f32 %v4238, %v4302
      %4304 = vmatmul.f32.gmra.mxu0 %v4039
      %v4305 = vpop.f32.mrf.mxu0
      %v4306 = vadd.f32 %v4241, %v4305
      %4307 = vmatmul.f32.gmra.mxu0 %v4043
      %v4308 = vpop.f32.mrf.mxu0
      %v4309 = vadd.f32 %v4244, %v4308
      %4310 = vmatmul.f32.gmra.mxu0 %v4047
      %v4311 = vpop.f32.mrf.mxu0
      %v4312 = vadd.f32 %v4247, %v4311
      %4313 = vmatmul.f32.gmra.mxu0 %v4051
      %v4314 = vpop.f32.mrf.mxu0
      %v4315 = vadd.f32 %v4250, %v4314
      %4316 = vdwg.mxu0
      %v4317 = vtanh.pop %v4270
      %v4318 = vtanh.pop %v4273
      %v4319 = vtanh.pop %v4276
      %v4320 = vtanh.pop %v4279
      %v4321 = vtanh.pop %v4282
      %v4322 = vtanh.pop %v4285
      %v4323 = vtanh.pop %v4288
      %v4324 = vtanh.pop %v4291
      %v4325 = vtanh.pop %v4294
      %v4326 = vtanh.pop %v4297
      %v4327 = vtanh.pop %v4300
      %v4328 = vtanh.pop %v4303
      %v4329 = vtanh.pop %v4306
      %v4330 = vtanh.pop %v4309
      %v4331 = vtanh.pop %v4312
      %v4332 = vtanh.pop %v4315
      %v4333 = vmul.f32 %v4317, 2.0
      %v4334 = vmul.f32 %v4318, 2.0
      %v4335 = vmul.f32 %v4319, 2.0
      %v4336 = vmul.f32 %v4320, 2.0
      %v4337 = vmul.f32 %v4321, 2.0
      %v4338 = vmul.f32 %v4322, 2.0
      %v4339 = vmul.f32 %v4323, 2.0
      %v4340 = vmul.f32 %v4324, 2.0
      %v4341 = vmul.f32 %v4325, 2.0
      %v4342 = vmul.f32 %v4326, 2.0
      %v4343 = vmul.f32 %v4327, 2.0
      %v4344 = vmul.f32 %v4328, 2.0
      %v4345 = vmul.f32 %v4329, 2.0
      %v4346 = vmul.f32 %v4330, 2.0
      %v4347 = vmul.f32 %v4331, 2.0
      %v4348 = vmul.f32 %v4332, 2.0
      %v4349 = vmul.f32 %v4333, 1.442695
      %v4350 = vpow.pop %v4349
      %v4351 = vmul.f32 %v4334, 1.442695
      %v4352 = vpow.pop %v4351
      %v4353 = vmul.f32 %v4335, 1.442695
      %v4354 = vpow.pop %v4353
      %v4355 = vmul.f32 %v4336, 1.442695
      %v4356 = vpow.pop %v4355
      %v4357 = vmul.f32 %v4337, 1.442695
      %v4358 = vpow.pop %v4357
      %v4359 = vmul.f32 %v4338, 1.442695
      %v4360 = vpow.pop %v4359
      %v4361 = vmul.f32 %v4339, 1.442695
      %v4362 = vpow.pop %v4361
      %v4363 = vmul.f32 %v4340, 1.442695
      %v4364 = vpow.pop %v4363
      %v4365 = vmul.f32 %v4341, 1.442695
      %v4366 = vpow.pop %v4365
      %v4367 = vmul.f32 %v4342, 1.442695
      %v4368 = vpow.pop %v4367
      %v4369 = vmul.f32 %v4343, 1.442695
      %v4370 = vpow.pop %v4369
      %v4371 = vmul.f32 %v4344, 1.442695
      %v4372 = vpow.pop %v4371
      %v4373 = vmul.f32 %v4345, 1.442695
      %v4374 = vpow.pop %v4373
      %v4375 = vmul.f32 %v4346, 1.442695
      %v4376 = vpow.pop %v4375
      %v4377 = vmul.f32 %v4347, 1.442695
      %v4378 = vpow.pop %v4377
      %v4379 = vmul.f32 %v4348, 1.442695
      %v4380 = vpow.pop %v4379
      %4397 = vrot.lane.b32.xlu0 %v4350, 16
      %v4398 = vpop.permute.xlu0 %4397
      %4399 = vrot.lane.b32.xlu0 %v4352, 16
      %v4400 = vpop.permute.xlu0 %4399
      %4401 = vrot.lane.b32.xlu0 %v4354, 16
      %v4402 = vpop.permute.xlu0 %4401
      %4403 = vrot.lane.b32.xlu0 %v4356, 16
      %v4404 = vpop.permute.xlu0 %4403
      %4405 = vrot.lane.b32.xlu0 %v4358, 16
      %v4406 = vpop.permute.xlu0 %4405
      %4407 = vrot.lane.b32.xlu0 %v4360, 16
      %v4408 = vpop.permute.xlu0 %4407
      %4409 = vrot.lane.b32.xlu0 %v4362, 16
      %v4410 = vpop.permute.xlu0 %4409
      %4411 = vrot.lane.b32.xlu0 %v4364, 16
      %v4412 = vpop.permute.xlu0 %4411
      %4413 = vrot.lane.b32.xlu0 %v4366, 16
      %v4414 = vpop.permute.xlu0 %4413
      %4415 = vrot.lane.b32.xlu0 %v4368, 16
      %v4416 = vpop.permute.xlu0 %4415
      %4417 = vrot.lane.b32.xlu0 %v4370, 16
      %v4418 = vpop.permute.xlu0 %4417
      %4419 = vrot.lane.b32.xlu0 %v4372, 16
      %v4420 = vpop.permute.xlu0 %4419
      %4421 = vrot.lane.b32.xlu0 %v4374, 16
      %v4422 = vpop.permute.xlu0 %4421
      %4423 = vrot.lane.b32.xlu0 %v4376, 16
      %v4424 = vpop.permute.xlu0 %4423
      %4425 = vrot.lane.b32.xlu0 %v4378, 16
      %v4426 = vpop.permute.xlu0 %4425
      %4427 = vrot.lane.b32.xlu0 %v4380, 16
      %v4428 = vpop.permute.xlu0 %4427
      %v4445 = vmul.f32 %v3543, %v4398
      %v4446 = vmul.f32 %v3546, %v4400
      %v4447 = vmul.f32 %v3549, %v4402
      %v4448 = vmul.f32 %v3552, %v4404
      %v4449 = vmul.f32 %v3555, %v4406
      %v4450 = vmul.f32 %v3558, %v4408
      %v4451 = vmul.f32 %v3561, %v4410
      %v4452 = vmul.f32 %v3564, %v4412
      %v4453 = vmul.f32 %v3567, %v4414
      %v4454 = vmul.f32 %v3570, %v4416
      %v4455 = vmul.f32 %v3573, %v4418
      %v4456 = vmul.f32 %v3576, %v4420
      %v4457 = vmul.f32 %v3579, %v4422
      %v4458 = vmul.f32 %v3582, %v4424
      %v4459 = vmul.f32 %v3585, %v4426
      %v4460 = vmul.f32 %v3588, %v4428
      %v4461 = vadd.f32 %v4445, %v4270
      %v4462 = vadd.f32 %v4446, %v4273
      %v4463 = vadd.f32 %v4447, %v4276
      %v4464 = vadd.f32 %v4448, %v4279
      %v4465 = vadd.f32 %v4449, %v4282
      %v4466 = vadd.f32 %v4450, %v4285
      %v4467 = vadd.f32 %v4451, %v4288
      %v4468 = vadd.f32 %v4452, %v4291
      %v4469 = vadd.f32 %v4453, %v4294
      %v4470 = vadd.f32 %v4454, %v4297
      %v4471 = vadd.f32 %v4455, %v4300
      %v4472 = vadd.f32 %v4456, %v4303
      %v4473 = vadd.f32 %v4457, %v4306
      %v4474 = vadd.f32 %v4458, %v4309
      %v4475 = vadd.f32 %v4459, %v4312
      %v4476 = vadd.f32 %v4460, %v4315
      %v4477 = vsel %vm425, %v4333, 0.0
      %4478 = vadd.xlane.f32.xlu0 %v4477
      %v4479 = vpop.xlane.xlu0 %4478
      %v4480 = vsel %vm425, %v4334, 0.0
      %4481 = vadd.xlane.f32.xlu0 %v4480
      %v4482 = vpop.xlane.xlu0 %4481
      %v4483 = vsel %vm425, %v4335, 0.0
      %4484 = vadd.xlane.f32.xlu0 %v4483
      %v4485 = vpop.xlane.xlu0 %4484
      %v4486 = vsel %vm425, %v4336, 0.0
      %4487 = vadd.xlane.f32.xlu0 %v4486
      %v4488 = vpop.xlane.xlu0 %4487
      %v4489 = vsel %vm425, %v4337, 0.0
      %4490 = vadd.xlane.f32.xlu0 %v4489
      %v4491 = vpop.xlane.xlu0 %4490
      %v4492 = vsel %vm425, %v4338, 0.0
      %4493 = vadd.xlane.f32.xlu0 %v4492
      %v4494 = vpop.xlane.xlu0 %4493
      %v4495 = vsel %vm425, %v4339, 0.0
      %4496 = vadd.xlane.f32.xlu0 %v4495
      %v4497 = vpop.xlane.xlu0 %4496
      %v4498 = vsel %vm425, %v4340, 0.0
      %4499 = vadd.xlane.f32.xlu0 %v4498
      %v4500 = vpop.xlane.xlu0 %4499
      %v4501 = vsel %vm425, %v4341, 0.0
      %4502 = vadd.xlane.f32.xlu0 %v4501
      %v4503 = vpop.xlane.xlu0 %4502
      %v4504 = vsel %vm425, %v4342, 0.0
      %4505 = vadd.xlane.f32.xlu0 %v4504
      %v4506 = vpop.xlane.xlu0 %4505
      %v4507 = vsel %vm425, %v4343, 0.0
      %4508 = vadd.xlane.f32.xlu0 %v4507
      %v4509 = vpop.xlane.xlu0 %4508
      %v4510 = vsel %vm425, %v4344, 0.0
      %4511 = vadd.xlane.f32.xlu0 %v4510
      %v4512 = vpop.xlane.xlu0 %4511
      %v4513 = vsel %vm425, %v4345, 0.0
      %4514 = vadd.xlane.f32.xlu0 %v4513
      %v4515 = vpop.xlane.xlu0 %4514
      %v4516 = vsel %vm425, %v4346, 0.0
      %4517 = vadd.xlane.f32.xlu0 %v4516
      %v4518 = vpop.xlane.xlu0 %4517
      %v4519 = vsel %vm425, %v4347, 0.0
      %4520 = vadd.xlane.f32.xlu0 %v4519
      %v4521 = vpop.xlane.xlu0 %4520
      %v4522 = vsel %vm425, %v4348, 0.0
      %4523 = vadd.xlane.f32.xlu0 %v4522
      %v4524 = vpop.xlane.xlu0 %4523
      %v4525 = vadd.f32 %v3440, %v4479
      %v4526 = vadd.f32 %v3441, %v4482
      %v4527 = vadd.f32 %v3442, %v4485
      %v4528 = vadd.f32 %v3443, %v4488
      %v4529 = vadd.f32 %v3444, %v4491
      %v4530 = vadd.f32 %v3445, %v4494
      %v4531 = vadd.f32 %v3446, %v4497
      %v4532 = vadd.f32 %v3447, %v4500
      %v4533 = vadd.f32 %v3448, %v4503
      %v4534 = vadd.f32 %v3449, %v4506
      %v4535 = vadd.f32 %v3450, %v4509
      %v4536 = vadd.f32 %v3451, %v4512
      %v4537 = vadd.f32 %v3452, %v4515
      %v4538 = vadd.f32 %v3453, %v4518
      %v4539 = vadd.f32 %v3454, %v4521
      %v4540 = vadd.f32 %v3455, %v4524
      %v4541 = vsel %vm425, %v3543, %v4461
      %v4542 = vsel %vm425, %v3546, %v4462
      %v4543 = vsel %vm425, %v3549, %v4463
      %v4544 = vsel %vm425, %v3552, %v4464
      %v4545 = vsel %vm425, %v3555, %v4465
      %v4546 = vsel %vm425, %v3558, %v4466
      %v4547 = vsel %vm425, %v3561, %v4467
      %v4548 = vsel %vm425, %v3564, %v4468
      %v4549 = vsel %vm425, %v3567, %v4469
      %v4550 = vsel %vm425, %v3570, %v4470
      %v4551 = vsel %vm425, %v3573, %v4471
      %v4552 = vsel %vm425, %v3576, %v4472
      %v4553 = vsel %vm425, %v3579, %v4473
      %v4554 = vsel %vm425, %v3582, %v4474
      %v4555 = vsel %vm425, %v3585, %v4475
      %v4556 = vsel %vm425, %v3588, %v4476
      %s4557 = scalar_lea.vmem %s6, 3
      %v4558 = vld [vmem:[%s4557] sm:$0x1]
      %v4560 = vperm.slane %v4558, 0
      %v4563 = vsel %vm1306, %v4541, 0
      %v4566 = vsel %vm1306, %v4542, 0
      %v4569 = vsel %vm1306, %v4543, 0
      %v4572 = vsel %vm1306, %v4544, 0
      %v4575 = vsel %vm1306, %v4545, 0
      %v4578 = vsel %vm1306, %v4546, 0
      %v4581 = vsel %vm1306, %v4547, 0
      %v4584 = vsel %vm1306, %v4548, 0
      %v4587 = vsel %vm1306, %v4549, 0
      %v4590 = vsel %vm1306, %v4550, 0
      %v4593 = vsel %vm1306, %v4551, 0
      %v4596 = vsel %vm1306, %v4552, 0
      %v4599 = vsel %vm1306, %v4553, 0
      %v4602 = vsel %vm1306, %v4554, 0
      %v4605 = vsel %vm1306, %v4555, 0
      %v4608 = vsel %vm1306, %v4556, 0
      %4610 = vmatpush.msra.mxu0 0.0
      %4611 = vmatpush.msra.mxu0 0.0
      %4612 = vmatpush.msra.mxu0 0.0
      %4613 = vmatpush.msra.mxu0 0.0
      %4614 = vmatpush.msra.mxu0 0.0
      %4615 = vmatpush.msra.mxu0 0.0
      %4616 = vmatpush.msra.mxu0 0.0
      %4617 = vmatpush.msra.mxu0 0.0
      %4618 = vmatpush.msra.mxu0 0.0
      %4619 = vmatpush.msra.mxu0 0.0
      %4620 = vmatpush.msra.mxu0 0.0
      %4621 = vmatpush.msra.mxu0 0.0
      %4622 = vmatpush.msra.mxu0 %v3668
      %4623 = vmatpush.msra.mxu0 %v3667
      %4624 = vmatpush.msra.mxu0 %v3666
      %4625 = vmatpush.msra.mxu0 %v3665
      %4626 = vmatmul.f32.gmra.mxu0 %v4563
      %v4627 = vpop.f32.mrf.mxu0
      %v4628 = vadd.f32 %v4560, %v4627
      %4629 = vmatmul.f32.gmra.mxu0 %v4566
      %v4630 = vpop.f32.mrf.mxu0
      %v4631 = vadd.f32 %v4560, %v4630
      %4632 = vmatmul.f32.gmra.mxu0 %v4569
      %v4633 = vpop.f32.mrf.mxu0
      %v4634 = vadd.f32 %v4560, %v4633
      %4635 = vmatmul.f32.gmra.mxu0 %v4572
      %v4636 = vpop.f32.mrf.mxu0
      %v4637 = vadd.f32 %v4560, %v4636
      %4638 = vmatmul.f32.gmra.mxu0 %v4575
      %v4639 = vpop.f32.mrf.mxu0
      %v4640 = vadd.f32 %v4560, %v4639
      %4641 = vmatmul.f32.gmra.mxu0 %v4578
      %v4642 = vpop.f32.mrf.mxu0
      %v4643 = vadd.f32 %v4560, %v4642
      %4644 = vmatmul.f32.gmra.mxu0 %v4581
      %v4645 = vpop.f32.mrf.mxu0
      %v4646 = vadd.f32 %v4560, %v4645
      %4647 = vmatmul.f32.gmra.mxu0 %v4584
      %v4648 = vpop.f32.mrf.mxu0
      %v4649 = vadd.f32 %v4560, %v4648
      %4650 = vmatmul.f32.gmra.mxu0 %v4587
      %v4651 = vpop.f32.mrf.mxu0
      %v4652 = vadd.f32 %v4560, %v4651
      %4653 = vmatmul.f32.gmra.mxu0 %v4590
      %v4654 = vpop.f32.mrf.mxu0
      %v4655 = vadd.f32 %v4560, %v4654
      %4656 = vmatmul.f32.gmra.mxu0 %v4593
      %v4657 = vpop.f32.mrf.mxu0
      %v4658 = vadd.f32 %v4560, %v4657
      %4659 = vmatmul.f32.gmra.mxu0 %v4596
      %v4660 = vpop.f32.mrf.mxu0
      %v4661 = vadd.f32 %v4560, %v4660
      %4662 = vmatmul.f32.gmra.mxu0 %v4599
      %v4663 = vpop.f32.mrf.mxu0
      %v4664 = vadd.f32 %v4560, %v4663
      %4665 = vmatmul.f32.gmra.mxu0 %v4602
      %v4666 = vpop.f32.mrf.mxu0
      %v4667 = vadd.f32 %v4560, %v4666
      %4668 = vmatmul.f32.gmra.mxu0 %v4605
      %v4669 = vpop.f32.mrf.mxu0
      %v4670 = vadd.f32 %v4560, %v4669
      %4671 = vmatmul.f32.gmra.mxu0 %v4608
      %v4672 = vpop.f32.mrf.mxu0
      %v4673 = vadd.f32 %v4560, %v4672
      %4674 = vdwg.mxu0
      %4675 = vst.msk [vmem:[%s315] sm:$0xff] %vm1306, %v4628
      %4676 = vst.msk [vmem:[%s315 + $0x8] sm:$0xff] %vm1306, %v4631
      %4677 = vst.msk [vmem:[%s315 + $0x10] sm:$0xff] %vm1306, %v4634
      %4678 = vst.msk [vmem:[%s315 + $0x18] sm:$0xff] %vm1306, %v4637
      %4679 = vst.msk [vmem:[%s315 + $0x20] sm:$0xff] %vm1306, %v4640
      %4680 = vst.msk [vmem:[%s315 + $0x28] sm:$0xff] %vm1306, %v4643
      %4681 = vst.msk [vmem:[%s315 + $0x30] sm:$0xff] %vm1306, %v4646
      %4682 = vst.msk [vmem:[%s315 + $0x38] sm:$0xff] %vm1306, %v4649
      %4683 = vst.msk [vmem:[%s315 + $0x40] sm:$0xff] %vm1306, %v4652
      %4684 = vst.msk [vmem:[%s315 + $0x48] sm:$0xff] %vm1306, %v4655
      %4685 = vst.msk [vmem:[%s315 + $0x50] sm:$0xff] %vm1306, %v4658
      %4686 = vst.msk [vmem:[%s315 + $0x58] sm:$0xff] %vm1306, %v4661
      %4687 = vst.msk [vmem:[%s315 + $0x60] sm:$0xff] %vm1306, %v4664
      %4688 = vst.msk [vmem:[%s315 + $0x68] sm:$0xff] %vm1306, %v4667
      %4689 = vst.msk [vmem:[%s315 + $0x70] sm:$0xff] %vm1306, %v4670
      %4690 = vst.msk [vmem:[%s315 + $0x78] sm:$0xff] %vm1306, %v4673
      %vm4691 = vcmask 7168
      %4692 = vst.msk [vmem:[%s321] sm:$0xff] %vm4691, %v4525
      %4693 = vst.msk [vmem:[%s321 + $0x8] sm:$0xff] %vm4691, %v4526
      %4694 = vst.msk [vmem:[%s321 + $0x10] sm:$0xff] %vm4691, %v4527
      %4695 = vst.msk [vmem:[%s321 + $0x18] sm:$0xff] %vm4691, %v4528
      %4696 = vst.msk [vmem:[%s321 + $0x20] sm:$0xff] %vm4691, %v4529
      %4697 = vst.msk [vmem:[%s321 + $0x28] sm:$0xff] %vm4691, %v4530
      %4698 = vst.msk [vmem:[%s321 + $0x30] sm:$0xff] %vm4691, %v4531
      %4699 = vst.msk [vmem:[%s321 + $0x38] sm:$0xff] %vm4691, %v4532
      %4700 = vst.msk [vmem:[%s321 + $0x40] sm:$0xff] %vm4691, %v4533
      %4701 = vst.msk [vmem:[%s321 + $0x48] sm:$0xff] %vm4691, %v4534
      %4702 = vst.msk [vmem:[%s321 + $0x50] sm:$0xff] %vm4691, %v4535
      %4703 = vst.msk [vmem:[%s321 + $0x58] sm:$0xff] %vm4691, %v4536
      %4704 = vst.msk [vmem:[%s321 + $0x60] sm:$0xff] %vm4691, %v4537
      %4705 = vst.msk [vmem:[%s321 + $0x68] sm:$0xff] %vm4691, %v4538
      %4706 = vst.msk [vmem:[%s321 + $0x70] sm:$0xff] %vm4691, %v4539
      %4707 = vst.msk [vmem:[%s321 + $0x78] sm:$0xff] %vm4691, %v4540
      %s4708 = smul.u32 16, %s20
      %p4709 = scmp.lt.s32.totalorder %s4708, 31
      %s4710 = scalar_select %p4709, %s4708, 31
      %s4711 = smul.addr %s4710, 8
      %s4712 = scalar_lea.vmem %s7, %s4711
      %s4713 = smul.u32 16, %s20
      %p4714 = scmp.lt.s32.totalorder %s4713, 31
      %s4715 = scalar_select %p4714, %s4713, 31
      %s4716 = smul.addr %s4715, 8
      %s4717 = scalar_lea.vmem %s8, %s4716
      // Predicated region
      $region49: #{tpu_custom_call.1} parent=47 // pred_check
        %p4718 = pneg %p190
      $region50: #{tpu_custom_call.1} parent=47 // pred_check_branch
        %4720 = sbr.rel (%p4718) target = $region52
      $region51: #{tpu_custom_call.1} parent=47 // pred_region
        %s4721 = smul.u32 16, %s20
      $region52: #{tpu_custom_call.1} parent=47 // pred_fallthru
        _
      // Predicated region
      $region53: #{tpu_custom_call.1} parent=47 // pred_check
        %p4722 = pneg %p216
      $region54: #{tpu_custom_call.1} parent=47 // pred_check_branch
        %4724 = sbr.rel (%p4722) target = $region56
      $region55: #{tpu_custom_call.1} parent=47 // pred_region
        %s4725 = smul.u32 16, %s20
      $region56: #{tpu_custom_call.1} parent=47 // pred_fallthru
        _
    $region48: #{tpu_custom_call.1} parent=5 // pred_fallthru
      _
    %p4726 = scmp.le.s32.totalorder 2, %s15
    // Predicated region
    $region57: #{tpu_custom_call.1} parent=5 // pred_check
      %p4727 = pneg %p4726
    $region58: #{tpu_custom_call.1} parent=5 // pred_check_branch
      %4729 = sbr.rel (%p4727) target = $region60
    $region59: #{tpu_custom_call.1} parent=5 // pred_region
      %s4730 = ssub.s32 %s15, 2
      // Predicated region
      $region61: #{tpu_custom_call.1} parent=59 // pred_check
        %p4731 = pneg %p196
      $region62: #{tpu_custom_call.1} parent=59 // pred_check_branch
        %4733 = sbr.rel (%p4731) target = $region64
      $region63: #{tpu_custom_call.1} parent=59 // pred_region
        %s4734 = smul.u32 16, %s21
        %p4735 = scmp.lt.s32.totalorder %s4734, 31
        %s4736 = scalar_select %p4735, %s4734, 31
        %s4737 = smul.addr %s4736, 8
        %s4738 = scalar_lea.vmem %s7, %s4737
      $region64: #{tpu_custom_call.1} parent=59 // pred_fallthru
        _
      // Predicated region
      $region65: #{tpu_custom_call.1} parent=59 // pred_check
        %p4739 = pneg %p222
      $region66: #{tpu_custom_call.1} parent=59 // pred_check_branch
        %4741 = sbr.rel (%p4739) target = $region68
      $region67: #{tpu_custom_call.1} parent=59 // pred_region
        %s4742 = smul.u32 16, %s21
        %p4743 = scmp.lt.s32.totalorder %s4742, 31
        %s4744 = scalar_select %p4743, %s4742, 31
        %s4745 = smul.addr %s4744, 8
        %s4746 = scalar_lea.vmem %s8, %s4745
      $region68: #{tpu_custom_call.1} parent=59 // pred_fallthru
        _
    $region60: #{tpu_custom_call.1} parent=5 // pred_fallthru
      _
  $region6: #{tpu_custom_call.1} parent=0 // loop_footer
    %s19 = sadd.s32 1, %s15
  $region7: #{tpu_custom_call.1} parent=0 // loop_footer_branch
    %14 = sbr.rel target = $region3
  $region8: #{tpu_custom_call.1} parent=0 // loop_exit
    _

</llo_original>
